<compile_context>
chip_gen: v7x
topology: tpu7x:2x2x1
jax: 0.10.0
libtpu: 0.0.40
codegen_flags: <defaults>
</compile_context>

<pallas_src>
import functools

import jax
import jax.numpy as jnp
from jax.experimental import pallas as pl
from jax.experimental.pallas import tpu as pltpu


# ----------------------------- kernel -----------------------------

def _layernorm(v, g, b, eps=1e-5):
    mu = jnp.mean(v, axis=-1, keepdims=True)
    var = jnp.mean(jnp.square(v - mu), axis=-1, keepdims=True)
    return (v - mu) * jax.lax.rsqrt(var + eps) * g + b


def gpt_kernel(m_ref, tgt_ref,
               wemb_ref, bret_ref, bst_ref,
               g1_ref, b1_ref, wqkv_ref, bqkv_ref, wo_ref, bo_ref,
               g2_ref, b2_ref, w1_ref, bb1_ref, w2_ref, bb2_ref,
               gf_ref, bf_ref, whead_ref,
               logits_ref, nll_ref, cnt_ref, *, n_head):
    L = m_ref.shape[1]            # 3*T interleaved sequence length
    D = wemb_ref.shape[1]
    T = tgt_ref.shape[1]
    n_layer = g1_ref.shape[0]
    hd = D // n_head
    scale = 1.0 / (hd ** 0.5)
    bf16 = jnp.bfloat16

    # --- fused token embedding: one matmul over interleaved [rtg | state | onehot(act)] ---
    feats = m_ref[0]                                                   # (L, 10) f32
    tok = jnp.dot(feats, wemb_ref[...], preferred_element_type=jnp.float32)
    rowtype = jax.lax.broadcasted_iota(jnp.int32, (L, 1), 0) % 3       # 0=rtg,1=state,2=action
    tok = tok + jnp.where(rowtype == 0, bret_ref[...], 0.0) \
              + jnp.where(rowtype == 1, bst_ref[...], 0.0)
    x = jnp.where(rowtype == 2, jnp.tanh(tok), tok)                    # (L, D) f32

    # causal mask over the interleaved sequence (assumes block_size >= 3*T as in the config)
    rr = jax.lax.broadcasted_iota(jnp.int32, (L, L), 0)
    cc = jax.lax.broadcasted_iota(jnp.int32, (L, L), 1)
    causal = rr >= cc

    # --- transformer blocks (weights resident; unrolled layer loop) ---
    for l in range(n_layer):
        # causal self-attention with fused QKV projection
        h = _layernorm(x, g1_ref[l], b1_ref[l])
        qkv = jnp.dot(h.astype(bf16), wqkv_ref[l],
                      preferred_element_type=jnp.float32) + bqkv_ref[l]   # (L, 3D) f32
        wo_l = wo_ref[l]                                                  # (D, D) bf16
        y = jnp.zeros((L, D), jnp.float32)
        for hh in range(n_head):
            lo = hh * hd
            qh = qkv[:, lo:lo + hd]
            kh = qkv[:, D + lo:D + lo + hd]
            vh = qkv[:, 2 * D + lo:2 * D + lo + hd]
            att = jnp.dot(qh, kh.T, preferred_element_type=jnp.float32) * scale
            att = jnp.where(causal, att, -1e30)
            att = att - jnp.max(att, axis=-1, keepdims=True)
            p = jnp.exp(att)
            p = p * pl.reciprocal(jnp.sum(p, axis=-1, keepdims=True), approx=True)
            oh = jnp.dot(p, vh, preferred_element_type=jnp.float32)       # (L, hd)
            # accumulate through the matching rows of the output projection (no concat)
            y = y + jnp.dot(oh.astype(bf16), wo_l[lo:lo + hd, :],
                            preferred_element_type=jnp.float32)
        x = x + y + bo_ref[l]

        # MLP
        h2 = _layernorm(x, g2_ref[l], b2_ref[l])
        mm = jnp.dot(h2.astype(bf16), w1_ref[l],
                     preferred_element_type=jnp.float32) + bb1_ref[l]
        mm = jax.nn.gelu(mm, approximate=True)
        mm = jnp.dot(mm.astype(bf16), w2_ref[l],
                     preferred_element_type=jnp.float32) + bb2_ref[l]
        x = x + mm

    # --- pick state rows (1::3) via a 0/1 selection matmul, then ln_f + head ---
    rs = jax.lax.broadcasted_iota(jnp.int32, (T, L), 0)
    cs = jax.lax.broadcasted_iota(jnp.int32, (T, L), 1)
    sel = (cs == 3 * rs + 1).astype(jnp.float32)                        # (T, L)
    xs = jnp.dot(sel, x, preferred_element_type=jnp.float32)            # (T, D)
    hf = _layernorm(xs, gf_ref[...], bf_ref[...])
    logits = jnp.dot(hf.astype(bf16), whead_ref[...],
                     preferred_element_type=jnp.float32)                 # (T, 4)
    logits_ref[0] = logits

    # --- cross-entropy partials (ignore_index = -10), reduced to per-batch scalars ---
    tgt = tgt_ref[0]                                                    # (T, 1) int32
    valid = tgt != -10
    tsafe = jnp.where(valid, tgt, 0)
    z = logits - jnp.max(logits, axis=-1, keepdims=True)
    lse = jnp.log(jnp.sum(jnp.exp(z), axis=-1, keepdims=True))          # (T, 1)
    cls = jax.lax.broadcasted_iota(jnp.int32, (T, logits.shape[1]), 1)
    picked = jnp.sum(jnp.where(cls == tsafe, z, 0.0), axis=-1, keepdims=True)
    nll = jnp.where(valid, lse - picked, 0.0)                           # (T, 1)
    nll_ref[0] = jnp.sum(nll, axis=0, keepdims=True)                    # (1, 1)
    cnt_ref[0] = jnp.sum(valid.astype(jnp.float32), axis=0, keepdims=True)


# ----------------------------- wrapper -----------------------------

def gpt_forward(params, states, actions, rtgs, targets, n_embd, n_head):
    """model_type='reward_conditioned', actions is not None, targets is not None."""
    B, T, _ = states.shape
    L = 3 * T
    assert n_embd % n_head == 0

    states = states.astype(jnp.float32)
    rtgs = rtgs.astype(jnp.float32)
    act = jnp.where(actions == -10, 4, actions)[..., 0].astype(jnp.int32)   # map -10 -> idx 4
    onehot = jax.nn.one_hot(act, 5, dtype=jnp.float32)                      # (B, T, 5)

    # interleaved per-token feature rows: [rtg(1) | state(4) | action one-hot(5)]
    z1 = jnp.zeros((B, T, 1), jnp.float32)
    z4 = jnp.zeros((B, T, 4), jnp.float32)
    z5 = jnp.zeros((B, T, 5), jnp.float32)
    ret_rows = jnp.concatenate([rtgs, z4, z5], axis=-1)
    st_rows = jnp.concatenate([z1, states, z5], axis=-1)
    act_rows = jnp.concatenate([z1, z4, onehot], axis=-1)
    m = jnp.stack([ret_rows, st_rows, act_rows], axis=2).reshape(B, L, 10)   # contiguous interleave

    tgt3 = targets.reshape(B, T, 1).astype(jnp.int32)

    weight_args = (
        params["wemb"], params["bret"], params["bst"],
        params["g1"], params["b1"], params["wqkv"], params["bqkv"],
        params["wo"], params["bo"], params["g2"], params["b2"],
        params["w1"], params["bb1"], params["w2"], params["bb2"],
        params["gf"], params["bf"], params["whead"],
    )

    def _batched(shape):
        n = len(shape)
        return pl.BlockSpec((1,) + tuple(shape[1:]),
                            lambda b, _n=n: (b,) + (0,) * (_n - 1))

    def _const(shape):
        n = len(shape)
        return pl.BlockSpec(tuple(shape), lambda b, _n=n: (0,) * _n)

    in_specs = [_batched(m.shape), _batched(tgt3.shape)]
    in_specs += [_const(w.shape) for w in weight_args]

    out_shape = (
        jax.ShapeDtypeStruct((B, T, 4), jnp.float32),   # state-position logits
        jax.ShapeDtypeStruct((B, 1, 1), jnp.float32),   # per-batch sum of NLL
        jax.ShapeDtypeStruct((B, 1, 1), jnp.float32),   # per-batch valid-target count
    )
    out_specs = (
        pl.BlockSpec((1, T, 4), lambda b: (b, 0, 0)),
        pl.BlockSpec((1, 1, 1), lambda b: (b, 0, 0)),
        pl.BlockSpec((1, 1, 1), lambda b: (b, 0, 0)),
    )

    logits, nll_sum, valid_cnt = pl.pallas_call(
        functools.partial(gpt_kernel, n_head=n_head),
        out_shape=out_shape,
        grid=(B,),
        in_specs=in_specs,
        out_specs=out_specs,
        compiler_params=pltpu.CompilerParams(dimension_semantics=("parallel",)),
    )(m, tgt3, *weight_args)

    loss = jnp.sum(nll_sum) / jnp.maximum(jnp.sum(valid_cnt), 1.0)
    return logits.reshape(-1, logits.shape[-1]), loss     # matches PyTorch return (targets given)


# ----------------------------- params -----------------------------

def init_params(key, n_embd, n_layer):
    D = n_embd
    std = 0.02
    bf16 = jnp.bfloat16

    def normal(k, shape):
        return jax.random.normal(k, shape, dtype=jnp.float32) * std

    ks = iter(jax.random.split(key, 8 + 6 * n_layer))
    # fused embedding weight rows: [ret_emb.W (1,D); state_encoder.W (4,D); action Emb (5,D)]
    wr = normal(next(ks), (1, D))
    ws = normal(next(ks), (4, D))
    aemb = normal(next(ks), (5, D))
    params = {
        "wemb": jnp.concatenate([wr, ws, aemb], axis=0),              # (10, D) f32
        "bret": jnp.zeros((1, D), jnp.float32),
        "bst": jnp.zeros((1, D), jnp.float32),
        "gf": jnp.ones((1, D), jnp.float32),
        "bf": jnp.zeros((1, D), jnp.float32),
        "whead": normal(next(ks), (D, 4)).astype(bf16),               # head (no bias)
    }
    g1, b1, wqkv, bqkv, wo, bo, g2, b2, w1, bb1, w2, bb2 = ([] for _ in range(12))
    for _ in range(n_layer):
        g1.append(jnp.ones((1, D), jnp.float32)); b1.append(jnp.zeros((1, D), jnp.float32))
        wq = normal(next(ks), (D, D)); wk = normal(next(ks), (D, D)); wv = normal(next(ks), (D, D))
        wqkv.append(jnp.concatenate([wq, wk, wv], axis=1).astype(bf16))      # (D, 3D)
        bqkv.append(jnp.zeros((1, 3 * D), jnp.float32))
        wo.append(normal(next(ks), (D, D)).astype(bf16)); bo.append(jnp.zeros((1, D), jnp.float32))
        g2.append(jnp.ones((1, D), jnp.float32)); b2.append(jnp.zeros((1, D), jnp.float32))
        w1.append(normal(next(ks), (D, 4 * D)).astype(bf16)); bb1.append(jnp.zeros((1, 4 * D), jnp.float32))
        w2.append(normal(next(ks), (4 * D, D)).astype(bf16)); bb2.append(jnp.zeros((1, D), jnp.float32))

    stack = lambda xs: jnp.stack(xs, axis=0)
    params.update({
        "g1": stack(g1), "b1": stack(b1), "wqkv": stack(wqkv), "bqkv": stack(bqkv),
        "wo": stack(wo), "bo": stack(bo), "g2": stack(g2), "b2": stack(b2),
        "w1": stack(w1), "bb1": stack(bb1), "w2": stack(w2), "bb2": stack(bb2),
    })
    return params


# ----------------------------- main -----------------------------

if __name__ == "__main__":
    B, T = 2, 8
    n_embd, n_head, n_layer = 32, 4, 2

    key = jax.random.PRNGKey(0)
    k_par, k_s, k_a, k_r, k_t = jax.random.split(key, 5)

    params = init_params(k_par, n_embd, n_layer)

    states = jax.random.normal(k_s, (B, T, 4), dtype=jnp.float32)
    actions = jax.random.randint(k_a, (B, T, 1), 0, 4, dtype=jnp.int32)
    actions = actions.at[0, -1, 0].set(-10)                # exercise the -10 -> 4 mapping
    rtgs = jax.random.normal(k_r, (B, T, 1), dtype=jnp.float32)
    targets = jax.random.randint(k_t, (B, T), 0, 4, dtype=jnp.int32)
    targets = targets.at[1, -1].set(-10)                   # exercise ignore_index

    fwd = jax.jit(functools.partial(gpt_forward, n_embd=n_embd, n_head=n_head))
    logits, loss = fwd(params, states, actions, rtgs, targets)
    jax.block_until_ready((logits, loss))

    assert logits.shape == (B * T, 4)
    assert jnp.isfinite(loss)
    print("KERNEL_OK")
</pallas_src>

<mosaic_0001>
module attributes {stable_mosaic.version = 11 : i64} {
  func.func @gpt_kernel(%arg0: i32, %arg1: memref<1x24x10xf32, #tpu.memory_space<vmem>>, %arg2: memref<1x8x1xi32, #tpu.memory_space<vmem>>, %arg3: memref<10x32xf32, #tpu.memory_space<vmem>>, %arg4: memref<1x32xf32, #tpu.memory_space<vmem>>, %arg5: memref<1x32xf32, #tpu.memory_space<vmem>>, %arg6: memref<2x1x32xf32, #tpu.memory_space<vmem>>, %arg7: memref<2x1x32xf32, #tpu.memory_space<vmem>>, %arg8: memref<2x32x96xbf16, #tpu.memory_space<vmem>>, %arg9: memref<2x1x96xf32, #tpu.memory_space<vmem>>, %arg10: memref<2x32x32xbf16, #tpu.memory_space<vmem>>, %arg11: memref<2x1x32xf32, #tpu.memory_space<vmem>>, %arg12: memref<2x1x32xf32, #tpu.memory_space<vmem>>, %arg13: memref<2x1x32xf32, #tpu.memory_space<vmem>>, %arg14: memref<2x32x128xbf16, #tpu.memory_space<vmem>>, %arg15: memref<2x1x128xf32, #tpu.memory_space<vmem>>, %arg16: memref<2x128x32xbf16, #tpu.memory_space<vmem>>, %arg17: memref<2x1x32xf32, #tpu.memory_space<vmem>>, %arg18: memref<1x32xf32, #tpu.memory_space<vmem>>, %arg19: memref<1x32xf32, #tpu.memory_space<vmem>>, %arg20: memref<32x4xbf16, #tpu.memory_space<vmem>>, %arg21: memref<1x8x4xf32, #tpu.memory_space<vmem>>, %arg22: memref<1x1x1xf32, #tpu.memory_space<vmem>>, %arg23: memref<1x1x1xf32, #tpu.memory_space<vmem>>) attributes {dimension_semantics = [#tpu.dimension_semantics<parallel>], iteration_bounds = array<i64: 2>, scalar_prefetch = 0 : i64, scratch_operands = 0 : i64, tpu.core_type = #tpu.core_type<tc>, window_params = [{transform_indices = @transform_0, window_bounds = array<i64: 1, 24, 10>}, {transform_indices = @transform_1, window_bounds = array<i64: 1, 8, 1>}, {pipeline_mode = #tpu.pipeline_mode<synchronous>, transform_indices = @transform_2, window_bounds = array<i64: 10, 32>}, {pipeline_mode = #tpu.pipeline_mode<synchronous>, transform_indices = @transform_3, window_bounds = array<i64: 1, 32>}, {pipeline_mode = #tpu.pipeline_mode<synchronous>, transform_indices = @transform_4, window_bounds = array<i64: 1, 32>}, {pipeline_mode = #tpu.pipeline_mode<synchronous>, transform_indices = @transform_5, window_bounds = array<i64: 2, 1, 32>}, {pipeline_mode = #tpu.pipeline_mode<synchronous>, transform_indices = @transform_6, window_bounds = array<i64: 2, 1, 32>}, {pipeline_mode = #tpu.pipeline_mode<synchronous>, transform_indices = @transform_7, window_bounds = array<i64: 2, 32, 96>}, {pipeline_mode = #tpu.pipeline_mode<synchronous>, transform_indices = @transform_8, window_bounds = array<i64: 2, 1, 96>}, {pipeline_mode = #tpu.pipeline_mode<synchronous>, transform_indices = @transform_9, window_bounds = array<i64: 2, 32, 32>}, {pipeline_mode = #tpu.pipeline_mode<synchronous>, transform_indices = @transform_10, window_bounds = array<i64: 2, 1, 32>}, {pipeline_mode = #tpu.pipeline_mode<synchronous>, transform_indices = @transform_11, window_bounds = array<i64: 2, 1, 32>}, {pipeline_mode = #tpu.pipeline_mode<synchronous>, transform_indices = @transform_12, window_bounds = array<i64: 2, 1, 32>}, {pipeline_mode = #tpu.pipeline_mode<synchronous>, transform_indices = @transform_13, window_bounds = array<i64: 2, 32, 128>}, {pipeline_mode = #tpu.pipeline_mode<synchronous>, transform_indices = @transform_14, window_bounds = array<i64: 2, 1, 128>}, {pipeline_mode = #tpu.pipeline_mode<synchronous>, transform_indices = @transform_15, window_bounds = array<i64: 2, 128, 32>}, {pipeline_mode = #tpu.pipeline_mode<synchronous>, transform_indices = @transform_16, window_bounds = array<i64: 2, 1, 32>}, {pipeline_mode = #tpu.pipeline_mode<synchronous>, transform_indices = @transform_17, window_bounds = array<i64: 1, 32>}, {pipeline_mode = #tpu.pipeline_mode<synchronous>, transform_indices = @transform_18, window_bounds = array<i64: 1, 32>}, {pipeline_mode = #tpu.pipeline_mode<synchronous>, transform_indices = @transform_19, window_bounds = array<i64: 32, 4>}, {transform_indices = @transform_20, window_bounds = array<i64: 1, 8, 4>}, {transform_indices = @transform_21, window_bounds = array<i64: 1, 1, 1>}, {transform_indices = @transform_22, window_bounds = array<i64: 1, 1, 1>}]} {
    %c0 = arith.constant 0 : index
    %c0_0 = arith.constant 0 : index
    %c0_1 = arith.constant 0 : index
    %0 = vector.load %arg1[%c0, %c0_0, %c0_1] : memref<1x24x10xf32, #tpu.memory_space<vmem>>, vector<1x24x10xf32>
    %1 = vector.shape_cast %0 : vector<1x24x10xf32> to vector<24x10xf32>
    %c0_2 = arith.constant 0 : index
    %c0_3 = arith.constant 0 : index
    %2 = vector.load %arg3[%c0_2, %c0_3] : memref<10x32xf32, #tpu.memory_space<vmem>>, vector<10x32xf32>
    %cst = arith.constant dense<0.000000e+00> : vector<24x32xf32>
    %3 = tpu.matmul %1, %2, %cst {dimension_numbers = #tpu.dot_dimension_numbers<[1], [0], [0], [1], [0, 0, 1, 1], [], []>} : vector<24x10xf32>, vector<10x32xf32>, vector<24x32xf32> -> vector<24x32xf32>
    %4 = tpu.iota {dimensions = array<i32: 0>} : vector<24x1xi32>
    %c3_i32 = arith.constant 3 : i32
    %c0_i32 = arith.constant 0 : i32
    %5 = arith.cmpi eq, %c3_i32, %c0_i32 : i32
    %c1_i32 = arith.constant 1 : i32
    %6 = arith.select %5, %c1_i32, %c3_i32 : i32
    %7 = vector.broadcast %6 : i32 to vector<24x1xi32>
    %8 = arith.remsi %4, %7 : vector<24x1xi32>
    %c0_i32_4 = arith.constant 0 : i32
    %9 = vector.broadcast %c0_i32_4 : i32 to vector<24x1xi32>
    %10 = arith.cmpi ne, %8, %9 : vector<24x1xi32>
    %c0_i32_5 = arith.constant 0 : i32
    %11 = vector.broadcast %c0_i32_5 : i32 to vector<24x1xi32>
    %12 = arith.cmpi slt, %8, %11 : vector<24x1xi32>
    %c0_i32_6 = arith.constant 0 : i32
    %13 = arith.cmpi slt, %6, %c0_i32_6 : i32
    %14 = vector.broadcast %13 : i1 to vector<24x1xi1>
    %15 = vector.broadcast %14 : vector<24x1xi1> to vector<24x1xi1>
    %16 = arith.xori %12, %15 : vector<24x1xi1>
    %17 = arith.andi %16, %10 : vector<24x1xi1>
    %18 = vector.broadcast %6 : i32 to vector<24x1xi32>
    %19 = arith.addi %8, %18 : vector<24x1xi32>
    %20 = arith.select %17, %19, %8 : vector<24x1xi1>, vector<24x1xi32>
    %c0_i32_7 = arith.constant 0 : i32
    %21 = vector.broadcast %c0_i32_7 : i32 to vector<24x1xi32>
    %22 = arith.cmpi eq, %20, %21 : vector<24x1xi32>
    %c0_8 = arith.constant 0 : index
    %c0_9 = arith.constant 0 : index
    %23 = vector.load %arg4[%c0_8, %c0_9] : memref<1x32xf32, #tpu.memory_space<vmem>>, vector<1x32xf32>
    %cst_10 = arith.constant 0.000000e+00 : f32
    %24 = vector.shape_cast %22 : vector<24x1xi1> to vector<24x1xi1>
    %25 = vector.broadcast %24 : vector<24x1xi1> to vector<24x32xi1>
    %26 = vector.shape_cast %23 : vector<1x32xf32> to vector<1x32xf32>
    %27 = vector.broadcast %26 : vector<1x32xf32> to vector<24x32xf32>
    %28 = vector.broadcast %cst_10 : f32 to vector<24x32xf32>
    %29 = arith.select %25, %27, %28 : vector<24x32xi1>, vector<24x32xf32>
    %30 = arith.addf %3, %29 : vector<24x32xf32>
    %c1_i32_11 = arith.constant 1 : i32
    %31 = vector.broadcast %c1_i32_11 : i32 to vector<24x1xi32>
    %32 = arith.cmpi eq, %20, %31 : vector<24x1xi32>
    %c0_12 = arith.constant 0 : index
    %c0_13 = arith.constant 0 : index
    %33 = vector.load %arg5[%c0_12, %c0_13] : memref<1x32xf32, #tpu.memory_space<vmem>>, vector<1x32xf32>
    %cst_14 = arith.constant 0.000000e+00 : f32
    %34 = vector.shape_cast %32 : vector<24x1xi1> to vector<24x1xi1>
    %35 = vector.broadcast %34 : vector<24x1xi1> to vector<24x32xi1>
    %36 = vector.shape_cast %33 : vector<1x32xf32> to vector<1x32xf32>
    %37 = vector.broadcast %36 : vector<1x32xf32> to vector<24x32xf32>
    %38 = vector.broadcast %cst_14 : f32 to vector<24x32xf32>
    %39 = arith.select %35, %37, %38 : vector<24x32xi1>, vector<24x32xf32>
    %40 = arith.addf %30, %39 : vector<24x32xf32>
    %c2_i32 = arith.constant 2 : i32
    %41 = vector.broadcast %c2_i32 : i32 to vector<24x1xi32>
    %42 = arith.cmpi eq, %20, %41 : vector<24x1xi32>
    %43 = math.tanh %40 : vector<24x32xf32>
    %44 = vector.shape_cast %42 : vector<24x1xi1> to vector<24x1xi1>
    %45 = vector.broadcast %44 : vector<24x1xi1> to vector<24x32xi1>
    %46 = arith.select %45, %43, %40 : vector<24x32xi1>, vector<24x32xf32>
    %47 = tpu.iota {dimensions = array<i32: 0>} : vector<24x24xi32>
    %48 = tpu.iota {dimensions = array<i32: 1>} : vector<24x24xi32>
    %49 = arith.cmpi sge, %47, %48 : vector<24x24xi32>
    %c0_15 = arith.constant 0 : index
    %c0_16 = arith.constant 0 : index
    %c0_17 = arith.constant 0 : index
    %50 = vector.load %arg6[%c0_15, %c0_16, %c0_17] : memref<2x1x32xf32, #tpu.memory_space<vmem>>, vector<1x1x32xf32>
    %51 = vector.shape_cast %50 : vector<1x1x32xf32> to vector<1x32xf32>
    %c0_18 = arith.constant 0 : index
    %c0_19 = arith.constant 0 : index
    %c0_20 = arith.constant 0 : index
    %52 = vector.load %arg7[%c0_18, %c0_19, %c0_20] : memref<2x1x32xf32, #tpu.memory_space<vmem>>, vector<1x1x32xf32>
    %53 = vector.shape_cast %52 : vector<1x1x32xf32> to vector<1x32xf32>
    %cst_21 = arith.constant dense<0.000000e+00> : vector<24xf32>
    %54 = vector.multi_reduction <add>, %46, %cst_21 [1] : vector<24x32xf32> to vector<24xf32>
    %55 = vector.shape_cast %54 : vector<24xf32> to vector<24x1xf32>
    %cst_22 = arith.constant 3.200000e+01 : f32
    %56 = vector.broadcast %cst_22 : f32 to vector<24x1xf32>
    %57 = arith.divf %55, %56 : vector<24x1xf32>
    %58 = vector.broadcast %57 : vector<24x1xf32> to vector<24x32xf32>
    %59 = arith.subf %46, %58 : vector<24x32xf32>
    %60 = arith.mulf %59, %59 : vector<24x32xf32>
    %cst_23 = arith.constant dense<0.000000e+00> : vector<24xf32>
    %61 = vector.multi_reduction <add>, %60, %cst_23 [1] : vector<24x32xf32> to vector<24xf32>
    %62 = vector.shape_cast %61 : vector<24xf32> to vector<24x1xf32>
    %cst_24 = arith.constant 3.200000e+01 : f32
    %63 = vector.broadcast %cst_24 : f32 to vector<24x1xf32>
    %64 = arith.divf %62, %63 : vector<24x1xf32>
    %65 = vector.broadcast %57 : vector<24x1xf32> to vector<24x32xf32>
    %66 = arith.subf %46, %65 : vector<24x32xf32>
    %cst_25 = arith.constant 9.99999974E-6 : f32
    %67 = vector.broadcast %cst_25 : f32 to vector<24x1xf32>
    %68 = arith.addf %64, %67 : vector<24x1xf32>
    %69 = math.rsqrt %68 : vector<24x1xf32>
    %70 = vector.broadcast %69 : vector<24x1xf32> to vector<24x32xf32>
    %71 = arith.mulf %66, %70 : vector<24x32xf32>
    %72 = vector.broadcast %51 : vector<1x32xf32> to vector<24x32xf32>
    %73 = arith.mulf %71, %72 : vector<24x32xf32>
    %74 = vector.broadcast %53 : vector<1x32xf32> to vector<24x32xf32>
    %75 = arith.addf %73, %74 : vector<24x32xf32>
    %76 = arith.truncf %75 : vector<24x32xf32> to vector<24x32xbf16>
    %c0_26 = arith.constant 0 : index
    %c0_27 = arith.constant 0 : index
    %c0_28 = arith.constant 0 : index
    %77 = vector.load %arg8[%c0_26, %c0_27, %c0_28] : memref<2x32x96xbf16, #tpu.memory_space<vmem>>, vector<1x32x96xbf16>
    %78 = vector.shape_cast %77 : vector<1x32x96xbf16> to vector<32x96xbf16>
    %cst_29 = arith.constant dense<0.000000e+00> : vector<24x96xf32>
    %79 = tpu.matmul %76, %78, %cst_29 {dimension_numbers = #tpu.dot_dimension_numbers<[1], [0], [0], [1], [0, 0, 1, 1], [], []>} : vector<24x32xbf16>, vector<32x96xbf16>, vector<24x96xf32> -> vector<24x96xf32>
    %c0_30 = arith.constant 0 : index
    %c0_31 = arith.constant 0 : index
    %c0_32 = arith.constant 0 : index
    %80 = vector.load %arg9[%c0_30, %c0_31, %c0_32] : memref<2x1x96xf32, #tpu.memory_space<vmem>>, vector<1x1x96xf32>
    %81 = vector.shape_cast %80 : vector<1x1x96xf32> to vector<1x96xf32>
    %82 = vector.broadcast %81 : vector<1x96xf32> to vector<24x96xf32>
    %83 = arith.addf %79, %82 : vector<24x96xf32>
    %c0_33 = arith.constant 0 : index
    %c0_34 = arith.constant 0 : index
    %c0_35 = arith.constant 0 : index
    %84 = vector.load %arg10[%c0_33, %c0_34, %c0_35] : memref<2x32x32xbf16, #tpu.memory_space<vmem>>, vector<1x32x32xbf16>
    %85 = vector.shape_cast %84 : vector<1x32x32xbf16> to vector<32x32xbf16>
    %cst_36 = arith.constant 0.000000e+00 : f32
    %86 = vector.broadcast %cst_36 : f32 to vector<24x32xf32>
    %87 = vector.extract_strided_slice %83 {offsets = [0, 0], sizes = [24, 8], strides = [1, 1]} : vector<24x96xf32> to vector<24x8xf32>
    %88 = vector.extract_strided_slice %83 {offsets = [0, 32], sizes = [24, 8], strides = [1, 1]} : vector<24x96xf32> to vector<24x8xf32>
    %89 = vector.extract_strided_slice %83 {offsets = [0, 64], sizes = [24, 8], strides = [1, 1]} : vector<24x96xf32> to vector<24x8xf32>
    %90 = tpu.transpose %88, [1, 0] : vector<24x8xf32> -> vector<8x24xf32>
    %cst_37 = arith.constant dense<0.000000e+00> : vector<24x24xf32>
    %91 = tpu.matmul %87, %90, %cst_37 {dimension_numbers = #tpu.dot_dimension_numbers<[1], [0], [0], [1], [0, 0, 1, 1], [], []>} : vector<24x8xf32>, vector<8x24xf32>, vector<24x24xf32> -> vector<24x24xf32>
    %cst_38 = arith.constant 0.353553385 : f32
    %92 = vector.broadcast %cst_38 : f32 to vector<24x24xf32>
    %93 = arith.mulf %91, %92 : vector<24x24xf32>
    %cst_39 = arith.constant -1.000000e+30 : f32
    %94 = vector.broadcast %cst_39 : f32 to vector<24x24xf32>
    %95 = arith.select %49, %93, %94 : vector<24x24xi1>, vector<24x24xf32>
    %cst_40 = arith.constant dense<0xFF800000> : vector<24xf32>
    %96 = vector.multi_reduction <maximumf>, %95, %cst_40 [1] : vector<24x24xf32> to vector<24xf32>
    %97 = vector.shape_cast %96 : vector<24xf32> to vector<24x1xf32>
    %98 = vector.broadcast %97 : vector<24x1xf32> to vector<24x24xf32>
    %99 = arith.subf %95, %98 : vector<24x24xf32>
    %100 = math.exp %99 : vector<24x24xf32>
    %cst_41 = arith.constant dense<0.000000e+00> : vector<24xf32>
    %101 = vector.multi_reduction <add>, %100, %cst_41 [1] : vector<24x24xf32> to vector<24xf32>
    %102 = vector.shape_cast %101 : vector<24xf32> to vector<24x1xf32>
    %103 = tpu.reciprocal %102 {approx = true} : vector<24x1xf32> -> vector<24x1xf32>
    %104 = vector.broadcast %103 : vector<24x1xf32> to vector<24x24xf32>
    %105 = arith.mulf %100, %104 : vector<24x24xf32>
    %cst_42 = arith.constant dense<0.000000e+00> : vector<24x8xf32>
    %106 = tpu.matmul %105, %89, %cst_42 {dimension_numbers = #tpu.dot_dimension_numbers<[1], [0], [0], [1], [0, 0, 1, 1], [], []>} : vector<24x24xf32>, vector<24x8xf32>, vector<24x8xf32> -> vector<24x8xf32>
    %107 = arith.truncf %106 : vector<24x8xf32> to vector<24x8xbf16>
    %108 = vector.extract_strided_slice %85 {offsets = [0, 0], sizes = [8, 32], strides = [1, 1]} : vector<32x32xbf16> to vector<8x32xbf16>
    %cst_43 = arith.constant dense<0.000000e+00> : vector<24x32xf32>
    %109 = tpu.matmul %107, %108, %cst_43 {dimension_numbers = #tpu.dot_dimension_numbers<[1], [0], [0], [1], [0, 0, 1, 1], [], []>} : vector<24x8xbf16>, vector<8x32xbf16>, vector<24x32xf32> -> vector<24x32xf32>
    %110 = arith.addf %86, %109 : vector<24x32xf32>
    %111 = vector.extract_strided_slice %83 {offsets = [0, 8], sizes = [24, 8], strides = [1, 1]} : vector<24x96xf32> to vector<24x8xf32>
    %112 = vector.extract_strided_slice %83 {offsets = [0, 40], sizes = [24, 8], strides = [1, 1]} : vector<24x96xf32> to vector<24x8xf32>
    %113 = vector.extract_strided_slice %83 {offsets = [0, 72], sizes = [24, 8], strides = [1, 1]} : vector<24x96xf32> to vector<24x8xf32>
    %114 = tpu.transpose %112, [1, 0] : vector<24x8xf32> -> vector<8x24xf32>
    %cst_44 = arith.constant dense<0.000000e+00> : vector<24x24xf32>
    %115 = tpu.matmul %111, %114, %cst_44 {dimension_numbers = #tpu.dot_dimension_numbers<[1], [0], [0], [1], [0, 0, 1, 1], [], []>} : vector<24x8xf32>, vector<8x24xf32>, vector<24x24xf32> -> vector<24x24xf32>
    %cst_45 = arith.constant 0.353553385 : f32
    %116 = vector.broadcast %cst_45 : f32 to vector<24x24xf32>
    %117 = arith.mulf %115, %116 : vector<24x24xf32>
    %cst_46 = arith.constant -1.000000e+30 : f32
    %118 = vector.broadcast %cst_46 : f32 to vector<24x24xf32>
    %119 = arith.select %49, %117, %118 : vector<24x24xi1>, vector<24x24xf32>
    %cst_47 = arith.constant dense<0xFF800000> : vector<24xf32>
    %120 = vector.multi_reduction <maximumf>, %119, %cst_47 [1] : vector<24x24xf32> to vector<24xf32>
    %121 = vector.shape_cast %120 : vector<24xf32> to vector<24x1xf32>
    %122 = vector.broadcast %121 : vector<24x1xf32> to vector<24x24xf32>
    %123 = arith.subf %119, %122 : vector<24x24xf32>
    %124 = math.exp %123 : vector<24x24xf32>
    %cst_48 = arith.constant dense<0.000000e+00> : vector<24xf32>
    %125 = vector.multi_reduction <add>, %124, %cst_48 [1] : vector<24x24xf32> to vector<24xf32>
    %126 = vector.shape_cast %125 : vector<24xf32> to vector<24x1xf32>
    %127 = tpu.reciprocal %126 {approx = true} : vector<24x1xf32> -> vector<24x1xf32>
    %128 = vector.broadcast %127 : vector<24x1xf32> to vector<24x24xf32>
    %129 = arith.mulf %124, %128 : vector<24x24xf32>
    %cst_49 = arith.constant dense<0.000000e+00> : vector<24x8xf32>
    %130 = tpu.matmul %129, %113, %cst_49 {dimension_numbers = #tpu.dot_dimension_numbers<[1], [0], [0], [1], [0, 0, 1, 1], [], []>} : vector<24x24xf32>, vector<24x8xf32>, vector<24x8xf32> -> vector<24x8xf32>
    %131 = arith.truncf %130 : vector<24x8xf32> to vector<24x8xbf16>
    %132 = vector.extract_strided_slice %85 {offsets = [8, 0], sizes = [8, 32], strides = [1, 1]} : vector<32x32xbf16> to vector<8x32xbf16>
    %cst_50 = arith.constant dense<0.000000e+00> : vector<24x32xf32>
    %133 = tpu.matmul %131, %132, %cst_50 {dimension_numbers = #tpu.dot_dimension_numbers<[1], [0], [0], [1], [0, 0, 1, 1], [], []>} : vector<24x8xbf16>, vector<8x32xbf16>, vector<24x32xf32> -> vector<24x32xf32>
    %134 = arith.addf %110, %133 : vector<24x32xf32>
    %135 = vector.extract_strided_slice %83 {offsets = [0, 16], sizes = [24, 8], strides = [1, 1]} : vector<24x96xf32> to vector<24x8xf32>
    %136 = vector.extract_strided_slice %83 {offsets = [0, 48], sizes = [24, 8], strides = [1, 1]} : vector<24x96xf32> to vector<24x8xf32>
    %137 = vector.extract_strided_slice %83 {offsets = [0, 80], sizes = [24, 8], strides = [1, 1]} : vector<24x96xf32> to vector<24x8xf32>
    %138 = tpu.transpose %136, [1, 0] : vector<24x8xf32> -> vector<8x24xf32>
    %cst_51 = arith.constant dense<0.000000e+00> : vector<24x24xf32>
    %139 = tpu.matmul %135, %138, %cst_51 {dimension_numbers = #tpu.dot_dimension_numbers<[1], [0], [0], [1], [0, 0, 1, 1], [], []>} : vector<24x8xf32>, vector<8x24xf32>, vector<24x24xf32> -> vector<24x24xf32>
    %cst_52 = arith.constant 0.353553385 : f32
    %140 = vector.broadcast %cst_52 : f32 to vector<24x24xf32>
    %141 = arith.mulf %139, %140 : vector<24x24xf32>
    %cst_53 = arith.constant -1.000000e+30 : f32
    %142 = vector.broadcast %cst_53 : f32 to vector<24x24xf32>
    %143 = arith.select %49, %141, %142 : vector<24x24xi1>, vector<24x24xf32>
    %cst_54 = arith.constant dense<0xFF800000> : vector<24xf32>
    %144 = vector.multi_reduction <maximumf>, %143, %cst_54 [1] : vector<24x24xf32> to vector<24xf32>
    %145 = vector.shape_cast %144 : vector<24xf32> to vector<24x1xf32>
    %146 = vector.broadcast %145 : vector<24x1xf32> to vector<24x24xf32>
    %147 = arith.subf %143, %146 : vector<24x24xf32>
    %148 = math.exp %147 : vector<24x24xf32>
    %cst_55 = arith.constant dense<0.000000e+00> : vector<24xf32>
    %149 = vector.multi_reduction <add>, %148, %cst_55 [1] : vector<24x24xf32> to vector<24xf32>
    %150 = vector.shape_cast %149 : vector<24xf32> to vector<24x1xf32>
    %151 = tpu.reciprocal %150 {approx = true} : vector<24x1xf32> -> vector<24x1xf32>
    %152 = vector.broadcast %151 : vector<24x1xf32> to vector<24x24xf32>
    %153 = arith.mulf %148, %152 : vector<24x24xf32>
    %cst_56 = arith.constant dense<0.000000e+00> : vector<24x8xf32>
    %154 = tpu.matmul %153, %137, %cst_56 {dimension_numbers = #tpu.dot_dimension_numbers<[1], [0], [0], [1], [0, 0, 1, 1], [], []>} : vector<24x24xf32>, vector<24x8xf32>, vector<24x8xf32> -> vector<24x8xf32>
    %155 = arith.truncf %154 : vector<24x8xf32> to vector<24x8xbf16>
    %156 = vector.extract_strided_slice %85 {offsets = [16, 0], sizes = [8, 32], strides = [1, 1]} : vector<32x32xbf16> to vector<8x32xbf16>
    %cst_57 = arith.constant dense<0.000000e+00> : vector<24x32xf32>
    %157 = tpu.matmul %155, %156, %cst_57 {dimension_numbers = #tpu.dot_dimension_numbers<[1], [0], [0], [1], [0, 0, 1, 1], [], []>} : vector<24x8xbf16>, vector<8x32xbf16>, vector<24x32xf32> -> vector<24x32xf32>
    %158 = arith.addf %134, %157 : vector<24x32xf32>
    %159 = vector.extract_strided_slice %83 {offsets = [0, 24], sizes = [24, 8], strides = [1, 1]} : vector<24x96xf32> to vector<24x8xf32>
    %160 = vector.extract_strided_slice %83 {offsets = [0, 56], sizes = [24, 8], strides = [1, 1]} : vector<24x96xf32> to vector<24x8xf32>
    %161 = vector.extract_strided_slice %83 {offsets = [0, 88], sizes = [24, 8], strides = [1, 1]} : vector<24x96xf32> to vector<24x8xf32>
    %162 = tpu.transpose %160, [1, 0] : vector<24x8xf32> -> vector<8x24xf32>
    %cst_58 = arith.constant dense<0.000000e+00> : vector<24x24xf32>
    %163 = tpu.matmul %159, %162, %cst_58 {dimension_numbers = #tpu.dot_dimension_numbers<[1], [0], [0], [1], [0, 0, 1, 1], [], []>} : vector<24x8xf32>, vector<8x24xf32>, vector<24x24xf32> -> vector<24x24xf32>
    %cst_59 = arith.constant 0.353553385 : f32
    %164 = vector.broadcast %cst_59 : f32 to vector<24x24xf32>
    %165 = arith.mulf %163, %164 : vector<24x24xf32>
    %cst_60 = arith.constant -1.000000e+30 : f32
    %166 = vector.broadcast %cst_60 : f32 to vector<24x24xf32>
    %167 = arith.select %49, %165, %166 : vector<24x24xi1>, vector<24x24xf32>
    %cst_61 = arith.constant dense<0xFF800000> : vector<24xf32>
    %168 = vector.multi_reduction <maximumf>, %167, %cst_61 [1] : vector<24x24xf32> to vector<24xf32>
    %169 = vector.shape_cast %168 : vector<24xf32> to vector<24x1xf32>
    %170 = vector.broadcast %169 : vector<24x1xf32> to vector<24x24xf32>
    %171 = arith.subf %167, %170 : vector<24x24xf32>
    %172 = math.exp %171 : vector<24x24xf32>
    %cst_62 = arith.constant dense<0.000000e+00> : vector<24xf32>
    %173 = vector.multi_reduction <add>, %172, %cst_62 [1] : vector<24x24xf32> to vector<24xf32>
    %174 = vector.shape_cast %173 : vector<24xf32> to vector<24x1xf32>
    %175 = tpu.reciprocal %174 {approx = true} : vector<24x1xf32> -> vector<24x1xf32>
    %176 = vector.broadcast %175 : vector<24x1xf32> to vector<24x24xf32>
    %177 = arith.mulf %172, %176 : vector<24x24xf32>
    %cst_63 = arith.constant dense<0.000000e+00> : vector<24x8xf32>
    %178 = tpu.matmul %177, %161, %cst_63 {dimension_numbers = #tpu.dot_dimension_numbers<[1], [0], [0], [1], [0, 0, 1, 1], [], []>} : vector<24x24xf32>, vector<24x8xf32>, vector<24x8xf32> -> vector<24x8xf32>
    %179 = arith.truncf %178 : vector<24x8xf32> to vector<24x8xbf16>
    %180 = vector.extract_strided_slice %85 {offsets = [24, 0], sizes = [8, 32], strides = [1, 1]} : vector<32x32xbf16> to vector<8x32xbf16>
    %cst_64 = arith.constant dense<0.000000e+00> : vector<24x32xf32>
    %181 = tpu.matmul %179, %180, %cst_64 {dimension_numbers = #tpu.dot_dimension_numbers<[1], [0], [0], [1], [0, 0, 1, 1], [], []>} : vector<24x8xbf16>, vector<8x32xbf16>, vector<24x32xf32> -> vector<24x32xf32>
    %182 = arith.addf %158, %181 : vector<24x32xf32>
    %183 = arith.addf %46, %182 : vector<24x32xf32>
    %c0_65 = arith.constant 0 : index
    %c0_66 = arith.constant 0 : index
    %c0_67 = arith.constant 0 : index
    %184 = vector.load %arg11[%c0_65, %c0_66, %c0_67] : memref<2x1x32xf32, #tpu.memory_space<vmem>>, vector<1x1x32xf32>
    %185 = vector.shape_cast %184 : vector<1x1x32xf32> to vector<1x32xf32>
    %186 = vector.broadcast %185 : vector<1x32xf32> to vector<24x32xf32>
    %187 = arith.addf %183, %186 : vector<24x32xf32>
    %c0_68 = arith.constant 0 : index
    %c0_69 = arith.constant 0 : index
    %c0_70 = arith.constant 0 : index
    %188 = vector.load %arg12[%c0_68, %c0_69, %c0_70] : memref<2x1x32xf32, #tpu.memory_space<vmem>>, vector<1x1x32xf32>
    %189 = vector.shape_cast %188 : vector<1x1x32xf32> to vector<1x32xf32>
    %c0_71 = arith.constant 0 : index
    %c0_72 = arith.constant 0 : index
    %c0_73 = arith.constant 0 : index
    %190 = vector.load %arg13[%c0_71, %c0_72, %c0_73] : memref<2x1x32xf32, #tpu.memory_space<vmem>>, vector<1x1x32xf32>
    %191 = vector.shape_cast %190 : vector<1x1x32xf32> to vector<1x32xf32>
    %cst_74 = arith.constant dense<0.000000e+00> : vector<24xf32>
    %192 = vector.multi_reduction <add>, %187, %cst_74 [1] : vector<24x32xf32> to vector<24xf32>
    %193 = vector.shape_cast %192 : vector<24xf32> to vector<24x1xf32>
    %cst_75 = arith.constant 3.200000e+01 : f32
    %194 = vector.broadcast %cst_75 : f32 to vector<24x1xf32>
    %195 = arith.divf %193, %194 : vector<24x1xf32>
    %196 = vector.broadcast %195 : vector<24x1xf32> to vector<24x32xf32>
    %197 = arith.subf %187, %196 : vector<24x32xf32>
    %198 = arith.mulf %197, %197 : vector<24x32xf32>
    %cst_76 = arith.constant dense<0.000000e+00> : vector<24xf32>
    %199 = vector.multi_reduction <add>, %198, %cst_76 [1] : vector<24x32xf32> to vector<24xf32>
    %200 = vector.shape_cast %199 : vector<24xf32> to vector<24x1xf32>
    %cst_77 = arith.constant 3.200000e+01 : f32
    %201 = vector.broadcast %cst_77 : f32 to vector<24x1xf32>
    %202 = arith.divf %200, %201 : vector<24x1xf32>
    %203 = vector.broadcast %195 : vector<24x1xf32> to vector<24x32xf32>
    %204 = arith.subf %187, %203 : vector<24x32xf32>
    %cst_78 = arith.constant 9.99999974E-6 : f32
    %205 = vector.broadcast %cst_78 : f32 to vector<24x1xf32>
    %206 = arith.addf %202, %205 : vector<24x1xf32>
    %207 = math.rsqrt %206 : vector<24x1xf32>
    %208 = vector.broadcast %207 : vector<24x1xf32> to vector<24x32xf32>
    %209 = arith.mulf %204, %208 : vector<24x32xf32>
    %210 = vector.broadcast %189 : vector<1x32xf32> to vector<24x32xf32>
    %211 = arith.mulf %209, %210 : vector<24x32xf32>
    %212 = vector.broadcast %191 : vector<1x32xf32> to vector<24x32xf32>
    %213 = arith.addf %211, %212 : vector<24x32xf32>
    %214 = arith.truncf %213 : vector<24x32xf32> to vector<24x32xbf16>
    %c0_79 = arith.constant 0 : index
    %c0_80 = arith.constant 0 : index
    %c0_81 = arith.constant 0 : index
    %215 = vector.load %arg14[%c0_79, %c0_80, %c0_81] : memref<2x32x128xbf16, #tpu.memory_space<vmem>>, vector<1x32x128xbf16>
    %216 = vector.shape_cast %215 : vector<1x32x128xbf16> to vector<32x128xbf16>
    %cst_82 = arith.constant dense<0.000000e+00> : vector<24x128xf32>
    %217 = tpu.matmul %214, %216, %cst_82 {dimension_numbers = #tpu.dot_dimension_numbers<[1], [0], [0], [1], [0, 0, 1, 1], [], []>} : vector<24x32xbf16>, vector<32x128xbf16>, vector<24x128xf32> -> vector<24x128xf32>
    %c0_83 = arith.constant 0 : index
    %c0_84 = arith.constant 0 : index
    %c0_85 = arith.constant 0 : index
    %218 = vector.load %arg15[%c0_83, %c0_84, %c0_85] : memref<2x1x128xf32, #tpu.memory_space<vmem>>, vector<1x1x128xf32>
    %219 = vector.shape_cast %218 : vector<1x1x128xf32> to vector<1x128xf32>
    %220 = vector.broadcast %219 : vector<1x128xf32> to vector<24x128xf32>
    %221 = arith.addf %217, %220 : vector<24x128xf32>
    %222 = arith.mulf %221, %221 : vector<24x128xf32>
    %223 = arith.mulf %221, %222 : vector<24x128xf32>
    %cst_86 = arith.constant 4.471500e-02 : f32
    %224 = vector.broadcast %cst_86 : f32 to vector<24x128xf32>
    %225 = arith.mulf %224, %223 : vector<24x128xf32>
    %226 = arith.addf %221, %225 : vector<24x128xf32>
    %cst_87 = arith.constant 0.797884583 : f32
    %227 = vector.broadcast %cst_87 : f32 to vector<24x128xf32>
    %228 = arith.mulf %227, %226 : vector<24x128xf32>
    %229 = math.tanh %228 : vector<24x128xf32>
    %cst_88 = arith.constant 1.000000e+00 : f32
    %230 = vector.broadcast %cst_88 : f32 to vector<24x128xf32>
    %231 = arith.addf %230, %229 : vector<24x128xf32>
    %cst_89 = arith.constant 5.000000e-01 : f32
    %232 = vector.broadcast %cst_89 : f32 to vector<24x128xf32>
    %233 = arith.mulf %232, %231 : vector<24x128xf32>
    %234 = arith.mulf %221, %233 : vector<24x128xf32>
    %235 = arith.truncf %234 : vector<24x128xf32> to vector<24x128xbf16>
    %c0_90 = arith.constant 0 : index
    %c0_91 = arith.constant 0 : index
    %c0_92 = arith.constant 0 : index
    %236 = vector.load %arg16[%c0_90, %c0_91, %c0_92] : memref<2x128x32xbf16, #tpu.memory_space<vmem>>, vector<1x128x32xbf16>
    %237 = vector.shape_cast %236 : vector<1x128x32xbf16> to vector<128x32xbf16>
    %cst_93 = arith.constant dense<0.000000e+00> : vector<24x32xf32>
    %238 = tpu.matmul %235, %237, %cst_93 {dimension_numbers = #tpu.dot_dimension_numbers<[1], [0], [0], [1], [0, 0, 1, 1], [], []>} : vector<24x128xbf16>, vector<128x32xbf16>, vector<24x32xf32> -> vector<24x32xf32>
    %c0_94 = arith.constant 0 : index
    %c0_95 = arith.constant 0 : index
    %c0_96 = arith.constant 0 : index
    %239 = vector.load %arg17[%c0_94, %c0_95, %c0_96] : memref<2x1x32xf32, #tpu.memory_space<vmem>>, vector<1x1x32xf32>
    %240 = vector.shape_cast %239 : vector<1x1x32xf32> to vector<1x32xf32>
    %241 = vector.broadcast %240 : vector<1x32xf32> to vector<24x32xf32>
    %242 = arith.addf %238, %241 : vector<24x32xf32>
    %243 = arith.addf %187, %242 : vector<24x32xf32>
    %c1 = arith.constant 1 : index
    %c0_97 = arith.constant 0 : index
    %c0_98 = arith.constant 0 : index
    %244 = vector.load %arg6[%c1, %c0_97, %c0_98] : memref<2x1x32xf32, #tpu.memory_space<vmem>>, vector<1x1x32xf32>
    %245 = vector.shape_cast %244 : vector<1x1x32xf32> to vector<1x32xf32>
    %c1_99 = arith.constant 1 : index
    %c0_100 = arith.constant 0 : index
    %c0_101 = arith.constant 0 : index
    %246 = vector.load %arg7[%c1_99, %c0_100, %c0_101] : memref<2x1x32xf32, #tpu.memory_space<vmem>>, vector<1x1x32xf32>
    %247 = vector.shape_cast %246 : vector<1x1x32xf32> to vector<1x32xf32>
    %cst_102 = arith.constant dense<0.000000e+00> : vector<24xf32>
    %248 = vector.multi_reduction <add>, %243, %cst_102 [1] : vector<24x32xf32> to vector<24xf32>
    %249 = vector.shape_cast %248 : vector<24xf32> to vector<24x1xf32>
    %cst_103 = arith.constant 3.200000e+01 : f32
    %250 = vector.broadcast %cst_103 : f32 to vector<24x1xf32>
    %251 = arith.divf %249, %250 : vector<24x1xf32>
    %252 = vector.broadcast %251 : vector<24x1xf32> to vector<24x32xf32>
    %253 = arith.subf %243, %252 : vector<24x32xf32>
    %254 = arith.mulf %253, %253 : vector<24x32xf32>
    %cst_104 = arith.constant dense<0.000000e+00> : vector<24xf32>
    %255 = vector.multi_reduction <add>, %254, %cst_104 [1] : vector<24x32xf32> to vector<24xf32>
    %256 = vector.shape_cast %255 : vector<24xf32> to vector<24x1xf32>
    %cst_105 = arith.constant 3.200000e+01 : f32
    %257 = vector.broadcast %cst_105 : f32 to vector<24x1xf32>
    %258 = arith.divf %256, %257 : vector<24x1xf32>
    %259 = vector.broadcast %251 : vector<24x1xf32> to vector<24x32xf32>
    %260 = arith.subf %243, %259 : vector<24x32xf32>
    %cst_106 = arith.constant 9.99999974E-6 : f32
    %261 = vector.broadcast %cst_106 : f32 to vector<24x1xf32>
    %262 = arith.addf %258, %261 : vector<24x1xf32>
    %263 = math.rsqrt %262 : vector<24x1xf32>
    %264 = vector.broadcast %263 : vector<24x1xf32> to vector<24x32xf32>
    %265 = arith.mulf %260, %264 : vector<24x32xf32>
    %266 = vector.broadcast %245 : vector<1x32xf32> to vector<24x32xf32>
    %267 = arith.mulf %265, %266 : vector<24x32xf32>
    %268 = vector.broadcast %247 : vector<1x32xf32> to vector<24x32xf32>
    %269 = arith.addf %267, %268 : vector<24x32xf32>
    %270 = arith.truncf %269 : vector<24x32xf32> to vector<24x32xbf16>
    %c1_107 = arith.constant 1 : index
    %c0_108 = arith.constant 0 : index
    %c0_109 = arith.constant 0 : index
    %271 = vector.load %arg8[%c1_107, %c0_108, %c0_109] : memref<2x32x96xbf16, #tpu.memory_space<vmem>>, vector<1x32x96xbf16>
    %272 = vector.shape_cast %271 : vector<1x32x96xbf16> to vector<32x96xbf16>
    %cst_110 = arith.constant dense<0.000000e+00> : vector<24x96xf32>
    %273 = tpu.matmul %270, %272, %cst_110 {dimension_numbers = #tpu.dot_dimension_numbers<[1], [0], [0], [1], [0, 0, 1, 1], [], []>} : vector<24x32xbf16>, vector<32x96xbf16>, vector<24x96xf32> -> vector<24x96xf32>
    %c1_111 = arith.constant 1 : index
    %c0_112 = arith.constant 0 : index
    %c0_113 = arith.constant 0 : index
    %274 = vector.load %arg9[%c1_111, %c0_112, %c0_113] : memref<2x1x96xf32, #tpu.memory_space<vmem>>, vector<1x1x96xf32>
    %275 = vector.shape_cast %274 : vector<1x1x96xf32> to vector<1x96xf32>
    %276 = vector.broadcast %275 : vector<1x96xf32> to vector<24x96xf32>
    %277 = arith.addf %273, %276 : vector<24x96xf32>
    %c1_114 = arith.constant 1 : index
    %c0_115 = arith.constant 0 : index
    %c0_116 = arith.constant 0 : index
    %278 = vector.load %arg10[%c1_114, %c0_115, %c0_116] : memref<2x32x32xbf16, #tpu.memory_space<vmem>>, vector<1x32x32xbf16>
    %279 = vector.shape_cast %278 : vector<1x32x32xbf16> to vector<32x32xbf16>
    %cst_117 = arith.constant 0.000000e+00 : f32
    %280 = vector.broadcast %cst_117 : f32 to vector<24x32xf32>
    %281 = vector.extract_strided_slice %277 {offsets = [0, 0], sizes = [24, 8], strides = [1, 1]} : vector<24x96xf32> to vector<24x8xf32>
    %282 = vector.extract_strided_slice %277 {offsets = [0, 32], sizes = [24, 8], strides = [1, 1]} : vector<24x96xf32> to vector<24x8xf32>
    %283 = vector.extract_strided_slice %277 {offsets = [0, 64], sizes = [24, 8], strides = [1, 1]} : vector<24x96xf32> to vector<24x8xf32>
    %284 = tpu.transpose %282, [1, 0] : vector<24x8xf32> -> vector<8x24xf32>
    %cst_118 = arith.constant dense<0.000000e+00> : vector<24x24xf32>
    %285 = tpu.matmul %281, %284, %cst_118 {dimension_numbers = #tpu.dot_dimension_numbers<[1], [0], [0], [1], [0, 0, 1, 1], [], []>} : vector<24x8xf32>, vector<8x24xf32>, vector<24x24xf32> -> vector<24x24xf32>
    %cst_119 = arith.constant 0.353553385 : f32
    %286 = vector.broadcast %cst_119 : f32 to vector<24x24xf32>
    %287 = arith.mulf %285, %286 : vector<24x24xf32>
    %cst_120 = arith.constant -1.000000e+30 : f32
    %288 = vector.broadcast %cst_120 : f32 to vector<24x24xf32>
    %289 = arith.select %49, %287, %288 : vector<24x24xi1>, vector<24x24xf32>
    %cst_121 = arith.constant dense<0xFF800000> : vector<24xf32>
    %290 = vector.multi_reduction <maximumf>, %289, %cst_121 [1] : vector<24x24xf32> to vector<24xf32>
    %291 = vector.shape_cast %290 : vector<24xf32> to vector<24x1xf32>
    %292 = vector.broadcast %291 : vector<24x1xf32> to vector<24x24xf32>
    %293 = arith.subf %289, %292 : vector<24x24xf32>
    %294 = math.exp %293 : vector<24x24xf32>
    %cst_122 = arith.constant dense<0.000000e+00> : vector<24xf32>
    %295 = vector.multi_reduction <add>, %294, %cst_122 [1] : vector<24x24xf32> to vector<24xf32>
    %296 = vector.shape_cast %295 : vector<24xf32> to vector<24x1xf32>
    %297 = tpu.reciprocal %296 {approx = true} : vector<24x1xf32> -> vector<24x1xf32>
    %298 = vector.broadcast %297 : vector<24x1xf32> to vector<24x24xf32>
    %299 = arith.mulf %294, %298 : vector<24x24xf32>
    %cst_123 = arith.constant dense<0.000000e+00> : vector<24x8xf32>
    %300 = tpu.matmul %299, %283, %cst_123 {dimension_numbers = #tpu.dot_dimension_numbers<[1], [0], [0], [1], [0, 0, 1, 1], [], []>} : vector<24x24xf32>, vector<24x8xf32>, vector<24x8xf32> -> vector<24x8xf32>
    %301 = arith.truncf %300 : vector<24x8xf32> to vector<24x8xbf16>
    %302 = vector.extract_strided_slice %279 {offsets = [0, 0], sizes = [8, 32], strides = [1, 1]} : vector<32x32xbf16> to vector<8x32xbf16>
    %cst_124 = arith.constant dense<0.000000e+00> : vector<24x32xf32>
    %303 = tpu.matmul %301, %302, %cst_124 {dimension_numbers = #tpu.dot_dimension_numbers<[1], [0], [0], [1], [0, 0, 1, 1], [], []>} : vector<24x8xbf16>, vector<8x32xbf16>, vector<24x32xf32> -> vector<24x32xf32>
    %304 = arith.addf %280, %303 : vector<24x32xf32>
    %305 = vector.extract_strided_slice %277 {offsets = [0, 8], sizes = [24, 8], strides = [1, 1]} : vector<24x96xf32> to vector<24x8xf32>
    %306 = vector.extract_strided_slice %277 {offsets = [0, 40], sizes = [24, 8], strides = [1, 1]} : vector<24x96xf32> to vector<24x8xf32>
    %307 = vector.extract_strided_slice %277 {offsets = [0, 72], sizes = [24, 8], strides = [1, 1]} : vector<24x96xf32> to vector<24x8xf32>
    %308 = tpu.transpose %306, [1, 0] : vector<24x8xf32> -> vector<8x24xf32>
    %cst_125 = arith.constant dense<0.000000e+00> : vector<24x24xf32>
    %309 = tpu.matmul %305, %308, %cst_125 {dimension_numbers = #tpu.dot_dimension_numbers<[1], [0], [0], [1], [0, 0, 1, 1], [], []>} : vector<24x8xf32>, vector<8x24xf32>, vector<24x24xf32> -> vector<24x24xf32>
    %cst_126 = arith.constant 0.353553385 : f32
    %310 = vector.broadcast %cst_126 : f32 to vector<24x24xf32>
    %311 = arith.mulf %309, %310 : vector<24x24xf32>
    %cst_127 = arith.constant -1.000000e+30 : f32
    %312 = vector.broadcast %cst_127 : f32 to vector<24x24xf32>
    %313 = arith.select %49, %311, %312 : vector<24x24xi1>, vector<24x24xf32>
    %cst_128 = arith.constant dense<0xFF800000> : vector<24xf32>
    %314 = vector.multi_reduction <maximumf>, %313, %cst_128 [1] : vector<24x24xf32> to vector<24xf32>
    %315 = vector.shape_cast %314 : vector<24xf32> to vector<24x1xf32>
    %316 = vector.broadcast %315 : vector<24x1xf32> to vector<24x24xf32>
    %317 = arith.subf %313, %316 : vector<24x24xf32>
    %318 = math.exp %317 : vector<24x24xf32>
    %cst_129 = arith.constant dense<0.000000e+00> : vector<24xf32>
    %319 = vector.multi_reduction <add>, %318, %cst_129 [1] : vector<24x24xf32> to vector<24xf32>
    %320 = vector.shape_cast %319 : vector<24xf32> to vector<24x1xf32>
    %321 = tpu.reciprocal %320 {approx = true} : vector<24x1xf32> -> vector<24x1xf32>
    %322 = vector.broadcast %321 : vector<24x1xf32> to vector<24x24xf32>
    %323 = arith.mulf %318, %322 : vector<24x24xf32>
    %cst_130 = arith.constant dense<0.000000e+00> : vector<24x8xf32>
    %324 = tpu.matmul %323, %307, %cst_130 {dimension_numbers = #tpu.dot_dimension_numbers<[1], [0], [0], [1], [0, 0, 1, 1], [], []>} : vector<24x24xf32>, vector<24x8xf32>, vector<24x8xf32> -> vector<24x8xf32>
    %325 = arith.truncf %324 : vector<24x8xf32> to vector<24x8xbf16>
    %326 = vector.extract_strided_slice %279 {offsets = [8, 0], sizes = [8, 32], strides = [1, 1]} : vector<32x32xbf16> to vector<8x32xbf16>
    %cst_131 = arith.constant dense<0.000000e+00> : vector<24x32xf32>
    %327 = tpu.matmul %325, %326, %cst_131 {dimension_numbers = #tpu.dot_dimension_numbers<[1], [0], [0], [1], [0, 0, 1, 1], [], []>} : vector<24x8xbf16>, vector<8x32xbf16>, vector<24x32xf32> -> vector<24x32xf32>
    %328 = arith.addf %304, %327 : vector<24x32xf32>
    %329 = vector.extract_strided_slice %277 {offsets = [0, 16], sizes = [24, 8], strides = [1, 1]} : vector<24x96xf32> to vector<24x8xf32>
    %330 = vector.extract_strided_slice %277 {offsets = [0, 48], sizes = [24, 8], strides = [1, 1]} : vector<24x96xf32> to vector<24x8xf32>
    %331 = vector.extract_strided_slice %277 {offsets = [0, 80], sizes = [24, 8], strides = [1, 1]} : vector<24x96xf32> to vector<24x8xf32>
    %332 = tpu.transpose %330, [1, 0] : vector<24x8xf32> -> vector<8x24xf32>
    %cst_132 = arith.constant dense<0.000000e+00> : vector<24x24xf32>
    %333 = tpu.matmul %329, %332, %cst_132 {dimension_numbers = #tpu.dot_dimension_numbers<[1], [0], [0], [1], [0, 0, 1, 1], [], []>} : vector<24x8xf32>, vector<8x24xf32>, vector<24x24xf32> -> vector<24x24xf32>
    %cst_133 = arith.constant 0.353553385 : f32
    %334 = vector.broadcast %cst_133 : f32 to vector<24x24xf32>
    %335 = arith.mulf %333, %334 : vector<24x24xf32>
    %cst_134 = arith.constant -1.000000e+30 : f32
    %336 = vector.broadcast %cst_134 : f32 to vector<24x24xf32>
    %337 = arith.select %49, %335, %336 : vector<24x24xi1>, vector<24x24xf32>
    %cst_135 = arith.constant dense<0xFF800000> : vector<24xf32>
    %338 = vector.multi_reduction <maximumf>, %337, %cst_135 [1] : vector<24x24xf32> to vector<24xf32>
    %339 = vector.shape_cast %338 : vector<24xf32> to vector<24x1xf32>
    %340 = vector.broadcast %339 : vector<24x1xf32> to vector<24x24xf32>
    %341 = arith.subf %337, %340 : vector<24x24xf32>
    %342 = math.exp %341 : vector<24x24xf32>
    %cst_136 = arith.constant dense<0.000000e+00> : vector<24xf32>
    %343 = vector.multi_reduction <add>, %342, %cst_136 [1] : vector<24x24xf32> to vector<24xf32>
    %344 = vector.shape_cast %343 : vector<24xf32> to vector<24x1xf32>
    %345 = tpu.reciprocal %344 {approx = true} : vector<24x1xf32> -> vector<24x1xf32>
    %346 = vector.broadcast %345 : vector<24x1xf32> to vector<24x24xf32>
    %347 = arith.mulf %342, %346 : vector<24x24xf32>
    %cst_137 = arith.constant dense<0.000000e+00> : vector<24x8xf32>
    %348 = tpu.matmul %347, %331, %cst_137 {dimension_numbers = #tpu.dot_dimension_numbers<[1], [0], [0], [1], [0, 0, 1, 1], [], []>} : vector<24x24xf32>, vector<24x8xf32>, vector<24x8xf32> -> vector<24x8xf32>
    %349 = arith.truncf %348 : vector<24x8xf32> to vector<24x8xbf16>
    %350 = vector.extract_strided_slice %279 {offsets = [16, 0], sizes = [8, 32], strides = [1, 1]} : vector<32x32xbf16> to vector<8x32xbf16>
    %cst_138 = arith.constant dense<0.000000e+00> : vector<24x32xf32>
    %351 = tpu.matmul %349, %350, %cst_138 {dimension_numbers = #tpu.dot_dimension_numbers<[1], [0], [0], [1], [0, 0, 1, 1], [], []>} : vector<24x8xbf16>, vector<8x32xbf16>, vector<24x32xf32> -> vector<24x32xf32>
    %352 = arith.addf %328, %351 : vector<24x32xf32>
    %353 = vector.extract_strided_slice %277 {offsets = [0, 24], sizes = [24, 8], strides = [1, 1]} : vector<24x96xf32> to vector<24x8xf32>
    %354 = vector.extract_strided_slice %277 {offsets = [0, 56], sizes = [24, 8], strides = [1, 1]} : vector<24x96xf32> to vector<24x8xf32>
    %355 = vector.extract_strided_slice %277 {offsets = [0, 88], sizes = [24, 8], strides = [1, 1]} : vector<24x96xf32> to vector<24x8xf32>
    %356 = tpu.transpose %354, [1, 0] : vector<24x8xf32> -> vector<8x24xf32>
    %cst_139 = arith.constant dense<0.000000e+00> : vector<24x24xf32>
    %357 = tpu.matmul %353, %356, %cst_139 {dimension_numbers = #tpu.dot_dimension_numbers<[1], [0], [0], [1], [0, 0, 1, 1], [], []>} : vector<24x8xf32>, vector<8x24xf32>, vector<24x24xf32> -> vector<24x24xf32>
    %cst_140 = arith.constant 0.353553385 : f32
    %358 = vector.broadcast %cst_140 : f32 to vector<24x24xf32>
    %359 = arith.mulf %357, %358 : vector<24x24xf32>
    %cst_141 = arith.constant -1.000000e+30 : f32
    %360 = vector.broadcast %cst_141 : f32 to vector<24x24xf32>
    %361 = arith.select %49, %359, %360 : vector<24x24xi1>, vector<24x24xf32>
    %cst_142 = arith.constant dense<0xFF800000> : vector<24xf32>
    %362 = vector.multi_reduction <maximumf>, %361, %cst_142 [1] : vector<24x24xf32> to vector<24xf32>
    %363 = vector.shape_cast %362 : vector<24xf32> to vector<24x1xf32>
    %364 = vector.broadcast %363 : vector<24x1xf32> to vector<24x24xf32>
    %365 = arith.subf %361, %364 : vector<24x24xf32>
    %366 = math.exp %365 : vector<24x24xf32>
    %cst_143 = arith.constant dense<0.000000e+00> : vector<24xf32>
    %367 = vector.multi_reduction <add>, %366, %cst_143 [1] : vector<24x24xf32> to vector<24xf32>
    %368 = vector.shape_cast %367 : vector<24xf32> to vector<24x1xf32>
    %369 = tpu.reciprocal %368 {approx = true} : vector<24x1xf32> -> vector<24x1xf32>
    %370 = vector.broadcast %369 : vector<24x1xf32> to vector<24x24xf32>
    %371 = arith.mulf %366, %370 : vector<24x24xf32>
    %cst_144 = arith.constant dense<0.000000e+00> : vector<24x8xf32>
    %372 = tpu.matmul %371, %355, %cst_144 {dimension_numbers = #tpu.dot_dimension_numbers<[1], [0], [0], [1], [0, 0, 1, 1], [], []>} : vector<24x24xf32>, vector<24x8xf32>, vector<24x8xf32> -> vector<24x8xf32>
    %373 = arith.truncf %372 : vector<24x8xf32> to vector<24x8xbf16>
    %374 = vector.extract_strided_slice %279 {offsets = [24, 0], sizes = [8, 32], strides = [1, 1]} : vector<32x32xbf16> to vector<8x32xbf16>
    %cst_145 = arith.constant dense<0.000000e+00> : vector<24x32xf32>
    %375 = tpu.matmul %373, %374, %cst_145 {dimension_numbers = #tpu.dot_dimension_numbers<[1], [0], [0], [1], [0, 0, 1, 1], [], []>} : vector<24x8xbf16>, vector<8x32xbf16>, vector<24x32xf32> -> vector<24x32xf32>
    %376 = arith.addf %352, %375 : vector<24x32xf32>
    %377 = arith.addf %243, %376 : vector<24x32xf32>
    %c1_146 = arith.constant 1 : index
    %c0_147 = arith.constant 0 : index
    %c0_148 = arith.constant 0 : index
    %378 = vector.load %arg11[%c1_146, %c0_147, %c0_148] : memref<2x1x32xf32, #tpu.memory_space<vmem>>, vector<1x1x32xf32>
    %379 = vector.shape_cast %378 : vector<1x1x32xf32> to vector<1x32xf32>
    %380 = vector.broadcast %379 : vector<1x32xf32> to vector<24x32xf32>
    %381 = arith.addf %377, %380 : vector<24x32xf32>
    %c1_149 = arith.constant 1 : index
    %c0_150 = arith.constant 0 : index
    %c0_151 = arith.constant 0 : index
    %382 = vector.load %arg12[%c1_149, %c0_150, %c0_151] : memref<2x1x32xf32, #tpu.memory_space<vmem>>, vector<1x1x32xf32>
    %383 = vector.shape_cast %382 : vector<1x1x32xf32> to vector<1x32xf32>
    %c1_152 = arith.constant 1 : index
    %c0_153 = arith.constant 0 : index
    %c0_154 = arith.constant 0 : index
    %384 = vector.load %arg13[%c1_152, %c0_153, %c0_154] : memref<2x1x32xf32, #tpu.memory_space<vmem>>, vector<1x1x32xf32>
    %385 = vector.shape_cast %384 : vector<1x1x32xf32> to vector<1x32xf32>
    %cst_155 = arith.constant dense<0.000000e+00> : vector<24xf32>
    %386 = vector.multi_reduction <add>, %381, %cst_155 [1] : vector<24x32xf32> to vector<24xf32>
    %387 = vector.shape_cast %386 : vector<24xf32> to vector<24x1xf32>
    %cst_156 = arith.constant 3.200000e+01 : f32
    %388 = vector.broadcast %cst_156 : f32 to vector<24x1xf32>
    %389 = arith.divf %387, %388 : vector<24x1xf32>
    %390 = vector.broadcast %389 : vector<24x1xf32> to vector<24x32xf32>
    %391 = arith.subf %381, %390 : vector<24x32xf32>
    %392 = arith.mulf %391, %391 : vector<24x32xf32>
    %cst_157 = arith.constant dense<0.000000e+00> : vector<24xf32>
    %393 = vector.multi_reduction <add>, %392, %cst_157 [1] : vector<24x32xf32> to vector<24xf32>
    %394 = vector.shape_cast %393 : vector<24xf32> to vector<24x1xf32>
    %cst_158 = arith.constant 3.200000e+01 : f32
    %395 = vector.broadcast %cst_158 : f32 to vector<24x1xf32>
    %396 = arith.divf %394, %395 : vector<24x1xf32>
    %397 = vector.broadcast %389 : vector<24x1xf32> to vector<24x32xf32>
    %398 = arith.subf %381, %397 : vector<24x32xf32>
    %cst_159 = arith.constant 9.99999974E-6 : f32
    %399 = vector.broadcast %cst_159 : f32 to vector<24x1xf32>
    %400 = arith.addf %396, %399 : vector<24x1xf32>
    %401 = math.rsqrt %400 : vector<24x1xf32>
    %402 = vector.broadcast %401 : vector<24x1xf32> to vector<24x32xf32>
    %403 = arith.mulf %398, %402 : vector<24x32xf32>
    %404 = vector.broadcast %383 : vector<1x32xf32> to vector<24x32xf32>
    %405 = arith.mulf %403, %404 : vector<24x32xf32>
    %406 = vector.broadcast %385 : vector<1x32xf32> to vector<24x32xf32>
    %407 = arith.addf %405, %406 : vector<24x32xf32>
    %408 = arith.truncf %407 : vector<24x32xf32> to vector<24x32xbf16>
    %c1_160 = arith.constant 1 : index
    %c0_161 = arith.constant 0 : index
    %c0_162 = arith.constant 0 : index
    %409 = vector.load %arg14[%c1_160, %c0_161, %c0_162] : memref<2x32x128xbf16, #tpu.memory_space<vmem>>, vector<1x32x128xbf16>
    %410 = vector.shape_cast %409 : vector<1x32x128xbf16> to vector<32x128xbf16>
    %cst_163 = arith.constant dense<0.000000e+00> : vector<24x128xf32>
    %411 = tpu.matmul %408, %410, %cst_163 {dimension_numbers = #tpu.dot_dimension_numbers<[1], [0], [0], [1], [0, 0, 1, 1], [], []>} : vector<24x32xbf16>, vector<32x128xbf16>, vector<24x128xf32> -> vector<24x128xf32>
    %c1_164 = arith.constant 1 : index
    %c0_165 = arith.constant 0 : index
    %c0_166 = arith.constant 0 : index
    %412 = vector.load %arg15[%c1_164, %c0_165, %c0_166] : memref<2x1x128xf32, #tpu.memory_space<vmem>>, vector<1x1x128xf32>
    %413 = vector.shape_cast %412 : vector<1x1x128xf32> to vector<1x128xf32>
    %414 = vector.broadcast %413 : vector<1x128xf32> to vector<24x128xf32>
    %415 = arith.addf %411, %414 : vector<24x128xf32>
    %416 = arith.mulf %415, %415 : vector<24x128xf32>
    %417 = arith.mulf %415, %416 : vector<24x128xf32>
    %cst_167 = arith.constant 4.471500e-02 : f32
    %418 = vector.broadcast %cst_167 : f32 to vector<24x128xf32>
    %419 = arith.mulf %418, %417 : vector<24x128xf32>
    %420 = arith.addf %415, %419 : vector<24x128xf32>
    %cst_168 = arith.constant 0.797884583 : f32
    %421 = vector.broadcast %cst_168 : f32 to vector<24x128xf32>
    %422 = arith.mulf %421, %420 : vector<24x128xf32>
    %423 = math.tanh %422 : vector<24x128xf32>
    %cst_169 = arith.constant 1.000000e+00 : f32
    %424 = vector.broadcast %cst_169 : f32 to vector<24x128xf32>
    %425 = arith.addf %424, %423 : vector<24x128xf32>
    %cst_170 = arith.constant 5.000000e-01 : f32
    %426 = vector.broadcast %cst_170 : f32 to vector<24x128xf32>
    %427 = arith.mulf %426, %425 : vector<24x128xf32>
    %428 = arith.mulf %415, %427 : vector<24x128xf32>
    %429 = arith.truncf %428 : vector<24x128xf32> to vector<24x128xbf16>
    %c1_171 = arith.constant 1 : index
    %c0_172 = arith.constant 0 : index
    %c0_173 = arith.constant 0 : index
    %430 = vector.load %arg16[%c1_171, %c0_172, %c0_173] : memref<2x128x32xbf16, #tpu.memory_space<vmem>>, vector<1x128x32xbf16>
    %431 = vector.shape_cast %430 : vector<1x128x32xbf16> to vector<128x32xbf16>
    %cst_174 = arith.constant dense<0.000000e+00> : vector<24x32xf32>
    %432 = tpu.matmul %429, %431, %cst_174 {dimension_numbers = #tpu.dot_dimension_numbers<[1], [0], [0], [1], [0, 0, 1, 1], [], []>} : vector<24x128xbf16>, vector<128x32xbf16>, vector<24x32xf32> -> vector<24x32xf32>
    %c1_175 = arith.constant 1 : index
    %c0_176 = arith.constant 0 : index
    %c0_177 = arith.constant 0 : index
    %433 = vector.load %arg17[%c1_175, %c0_176, %c0_177] : memref<2x1x32xf32, #tpu.memory_space<vmem>>, vector<1x1x32xf32>
    %434 = vector.shape_cast %433 : vector<1x1x32xf32> to vector<1x32xf32>
    %435 = vector.broadcast %434 : vector<1x32xf32> to vector<24x32xf32>
    %436 = arith.addf %432, %435 : vector<24x32xf32>
    %437 = arith.addf %381, %436 : vector<24x32xf32>
    %438 = tpu.iota {dimensions = array<i32: 0>} : vector<8x24xi32>
    %439 = tpu.iota {dimensions = array<i32: 1>} : vector<8x24xi32>
    %c3_i32_178 = arith.constant 3 : i32
    %440 = vector.broadcast %c3_i32_178 : i32 to vector<8x24xi32>
    %441 = arith.muli %440, %438 : vector<8x24xi32>
    %c1_i32_179 = arith.constant 1 : i32
    %442 = vector.broadcast %c1_i32_179 : i32 to vector<8x24xi32>
    %443 = arith.addi %441, %442 : vector<8x24xi32>
    %444 = arith.cmpi eq, %439, %443 : vector<8x24xi32>
    %445 = arith.extui %444 : vector<8x24xi1> to vector<8x24xi32>
    %446 = arith.sitofp %445 : vector<8x24xi32> to vector<8x24xf32>
    %cst_180 = arith.constant dense<0.000000e+00> : vector<8x32xf32>
    %447 = tpu.matmul %446, %437, %cst_180 {dimension_numbers = #tpu.dot_dimension_numbers<[1], [0], [0], [1], [0, 0, 1, 1], [], []>} : vector<8x24xf32>, vector<24x32xf32>, vector<8x32xf32> -> vector<8x32xf32>
    %c0_181 = arith.constant 0 : index
    %c0_182 = arith.constant 0 : index
    %448 = vector.load %arg18[%c0_181, %c0_182] : memref<1x32xf32, #tpu.memory_space<vmem>>, vector<1x32xf32>
    %c0_183 = arith.constant 0 : index
    %c0_184 = arith.constant 0 : index
    %449 = vector.load %arg19[%c0_183, %c0_184] : memref<1x32xf32, #tpu.memory_space<vmem>>, vector<1x32xf32>
    %cst_185 = arith.constant dense<0.000000e+00> : vector<8xf32>
    %450 = vector.multi_reduction <add>, %447, %cst_185 [1] : vector<8x32xf32> to vector<8xf32>
    %451 = vector.shape_cast %450 : vector<8xf32> to vector<8x1xf32>
    %cst_186 = arith.constant 3.200000e+01 : f32
    %452 = vector.broadcast %cst_186 : f32 to vector<8x1xf32>
    %453 = arith.divf %451, %452 : vector<8x1xf32>
    %454 = vector.broadcast %453 : vector<8x1xf32> to vector<8x32xf32>
    %455 = arith.subf %447, %454 : vector<8x32xf32>
    %456 = arith.mulf %455, %455 : vector<8x32xf32>
    %cst_187 = arith.constant dense<0.000000e+00> : vector<8xf32>
    %457 = vector.multi_reduction <add>, %456, %cst_187 [1] : vector<8x32xf32> to vector<8xf32>
    %458 = vector.shape_cast %457 : vector<8xf32> to vector<8x1xf32>
    %cst_188 = arith.constant 3.200000e+01 : f32
    %459 = vector.broadcast %cst_188 : f32 to vector<8x1xf32>
    %460 = arith.divf %458, %459 : vector<8x1xf32>
    %461 = vector.broadcast %453 : vector<8x1xf32> to vector<8x32xf32>
    %462 = arith.subf %447, %461 : vector<8x32xf32>
    %cst_189 = arith.constant 9.99999974E-6 : f32
    %463 = vector.broadcast %cst_189 : f32 to vector<8x1xf32>
    %464 = arith.addf %460, %463 : vector<8x1xf32>
    %465 = math.rsqrt %464 : vector<8x1xf32>
    %466 = vector.broadcast %465 : vector<8x1xf32> to vector<8x32xf32>
    %467 = arith.mulf %462, %466 : vector<8x32xf32>
    %468 = vector.broadcast %448 : vector<1x32xf32> to vector<8x32xf32>
    %469 = arith.mulf %467, %468 : vector<8x32xf32>
    %470 = vector.broadcast %449 : vector<1x32xf32> to vector<8x32xf32>
    %471 = arith.addf %469, %470 : vector<8x32xf32>
    %472 = arith.truncf %471 : vector<8x32xf32> to vector<8x32xbf16>
    %c0_190 = arith.constant 0 : index
    %c0_191 = arith.constant 0 : index
    %473 = vector.load %arg20[%c0_190, %c0_191] : memref<32x4xbf16, #tpu.memory_space<vmem>>, vector<32x4xbf16>
    %cst_192 = arith.constant dense<0.000000e+00> : vector<8x4xf32>
    %474 = tpu.matmul %472, %473, %cst_192 {dimension_numbers = #tpu.dot_dimension_numbers<[1], [0], [0], [1], [0, 0, 1, 1], [], []>} : vector<8x32xbf16>, vector<32x4xbf16>, vector<8x4xf32> -> vector<8x4xf32>
    %c0_193 = arith.constant 0 : index
    %c0_194 = arith.constant 0 : index
    %c0_195 = arith.constant 0 : index
    %475 = vector.load %arg21[%c0_193, %c0_194, %c0_195] : memref<1x8x4xf32, #tpu.memory_space<vmem>>, vector<1x8x4xf32>
    %476 = vector.shape_cast %475 : vector<1x8x4xf32> to vector<8x4xf32>
    %477 = vector.shape_cast %474 : vector<8x4xf32> to vector<1x8x4xf32>
    tpu.vector_store %arg21[%c0_193, %c0_194, %c0_195], %477 {strides = array<i32>} : memref<1x8x4xf32, #tpu.memory_space<vmem>>, vector<1x8x4xf32>,
    %c0_196 = arith.constant 0 : index
    %c0_197 = arith.constant 0 : index
    %c0_198 = arith.constant 0 : index
    %478 = vector.load %arg2[%c0_196, %c0_197, %c0_198] : memref<1x8x1xi32, #tpu.memory_space<vmem>>, vector<1x8x1xi32>
    %479 = vector.shape_cast %478 : vector<1x8x1xi32> to vector<8x1xi32>
    %c-10_i32 = arith.constant -10 : i32
    %480 = vector.broadcast %c-10_i32 : i32 to vector<8x1xi32>
    %481 = arith.cmpi ne, %479, %480 : vector<8x1xi32>
    %c0_i32_199 = arith.constant 0 : i32
    %482 = vector.broadcast %c0_i32_199 : i32 to vector<8x1xi32>
    %483 = arith.select %481, %479, %482 : vector<8x1xi1>, vector<8x1xi32>
    %cst_200 = arith.constant dense<0xFF800000> : vector<8xf32>
    %484 = vector.multi_reduction <maximumf>, %474, %cst_200 [1] : vector<8x4xf32> to vector<8xf32>
    %485 = vector.shape_cast %484 : vector<8xf32> to vector<8x1xf32>
    %486 = vector.broadcast %485 : vector<8x1xf32> to vector<8x4xf32>
    %487 = arith.subf %474, %486 : vector<8x4xf32>
    %488 = math.exp %487 : vector<8x4xf32>
    %cst_201 = arith.constant dense<0.000000e+00> : vector<8xf32>
    %489 = vector.multi_reduction <add>, %488, %cst_201 [1] : vector<8x4xf32> to vector<8xf32>
    %490 = vector.shape_cast %489 : vector<8xf32> to vector<8x1xf32>
    %491 = math.log %490 : vector<8x1xf32>
    %492 = tpu.iota {dimensions = array<i32: 1>} : vector<8x4xi32>
    %493 = vector.broadcast %483 : vector<8x1xi32> to vector<8x4xi32>
    %494 = arith.cmpi eq, %492, %493 : vector<8x4xi32>
    %cst_202 = arith.constant 0.000000e+00 : f32
    %495 = vector.broadcast %cst_202 : f32 to vector<8x4xf32>
    %496 = arith.select %494, %487, %495 : vector<8x4xi1>, vector<8x4xf32>
    %cst_203 = arith.constant dense<0.000000e+00> : vector<8xf32>
    %497 = vector.multi_reduction <add>, %496, %cst_203 [1] : vector<8x4xf32> to vector<8xf32>
    %498 = vector.shape_cast %497 : vector<8xf32> to vector<8x1xf32>
    %499 = arith.subf %491, %498 : vector<8x1xf32>
    %cst_204 = arith.constant 0.000000e+00 : f32
    %500 = vector.broadcast %cst_204 : f32 to vector<8x1xf32>
    %501 = arith.select %481, %499, %500 : vector<8x1xi1>, vector<8x1xf32>
    %cst_205 = arith.constant dense<0.000000e+00> : vector<1xf32>
    %502 = vector.multi_reduction <add>, %501, %cst_205 [0] : vector<8x1xf32> to vector<1xf32>
    %503 = vector.shape_cast %502 : vector<1xf32> to vector<1x1xf32>
    %c0_206 = arith.constant 0 : index
    %c0_207 = arith.constant 0 : index
    %c0_208 = arith.constant 0 : index
    %504 = vector.load %arg22[%c0_206, %c0_207, %c0_208] : memref<1x1x1xf32, #tpu.memory_space<vmem>>, vector<1x1x1xf32>
    %505 = vector.shape_cast %504 : vector<1x1x1xf32> to vector<1x1xf32>
    %506 = vector.shape_cast %503 : vector<1x1xf32> to vector<1x1x1xf32>
    tpu.vector_store %arg22[%c0_206, %c0_207, %c0_208], %506 {strides = array<i32>} : memref<1x1x1xf32, #tpu.memory_space<vmem>>, vector<1x1x1xf32>,
    %507 = arith.extui %481 : vector<8x1xi1> to vector<8x1xi32>
    %508 = arith.sitofp %507 : vector<8x1xi32> to vector<8x1xf32>
    %cst_209 = arith.constant dense<0.000000e+00> : vector<1xf32>
    %509 = vector.multi_reduction <add>, %508, %cst_209 [0] : vector<8x1xf32> to vector<1xf32>
    %510 = vector.shape_cast %509 : vector<1xf32> to vector<1x1xf32>
    %c0_210 = arith.constant 0 : index
    %c0_211 = arith.constant 0 : index
    %c0_212 = arith.constant 0 : index
    %511 = vector.load %arg23[%c0_210, %c0_211, %c0_212] : memref<1x1x1xf32, #tpu.memory_space<vmem>>, vector<1x1x1xf32>
    %512 = vector.shape_cast %511 : vector<1x1x1xf32> to vector<1x1xf32>
    %513 = vector.shape_cast %510 : vector<1x1xf32> to vector<1x1x1xf32>
    tpu.vector_store %arg23[%c0_210, %c0_211, %c0_212], %513 {strides = array<i32>} : memref<1x1x1xf32, #tpu.memory_space<vmem>>, vector<1x1x1xf32>,
    return
  }
  func.func @transform_0(%arg0: i32) -> (i32, i32, i32) {
    %c0_i32 = arith.constant 0 : i32
    %c0_i32_0 = arith.constant 0 : i32
    %c0_i32_1 = arith.constant 0 : i32
    return %arg0, %c0_i32, %c0_i32_0 : i32, i32, i32
  }
  func.func @transform_1(%arg0: i32) -> (i32, i32, i32) {
    %c0_i32 = arith.constant 0 : i32
    %c0_i32_0 = arith.constant 0 : i32
    %c0_i32_1 = arith.constant 0 : i32
    return %arg0, %c0_i32, %c0_i32_0 : i32, i32, i32
  }
  func.func @transform_2(%arg0: i32) -> (i32, i32) {
    %c0_i32 = arith.constant 0 : i32
    %c0_i32_0 = arith.constant 0 : i32
    %c0_i32_1 = arith.constant 0 : i32
    return %c0_i32, %c0_i32_0 : i32, i32
  }
  func.func @transform_3(%arg0: i32) -> (i32, i32) {
    %c0_i32 = arith.constant 0 : i32
    %c0_i32_0 = arith.constant 0 : i32
    %c0_i32_1 = arith.constant 0 : i32
    return %c0_i32, %c0_i32_0 : i32, i32
  }
  func.func @transform_4(%arg0: i32) -> (i32, i32) {
    %c0_i32 = arith.constant 0 : i32
    %c0_i32_0 = arith.constant 0 : i32
    %c0_i32_1 = arith.constant 0 : i32
    return %c0_i32, %c0_i32_0 : i32, i32
  }
  func.func @transform_5(%arg0: i32) -> (i32, i32, i32) {
    %c0_i32 = arith.constant 0 : i32
    %c0_i32_0 = arith.constant 0 : i32
    %c0_i32_1 = arith.constant 0 : i32
    %c0_i32_2 = arith.constant 0 : i32
    return %c0_i32, %c0_i32_0, %c0_i32_1 : i32, i32, i32
  }
  func.func @transform_6(%arg0: i32) -> (i32, i32, i32) {
    %c0_i32 = arith.constant 0 : i32
    %c0_i32_0 = arith.constant 0 : i32
    %c0_i32_1 = arith.constant 0 : i32
    %c0_i32_2 = arith.constant 0 : i32
    return %c0_i32, %c0_i32_0, %c0_i32_1 : i32, i32, i32
  }
  func.func @transform_7(%arg0: i32) -> (i32, i32, i32) {
    %c0_i32 = arith.constant 0 : i32
    %c0_i32_0 = arith.constant 0 : i32
    %c0_i32_1 = arith.constant 0 : i32
    %c0_i32_2 = arith.constant 0 : i32
    return %c0_i32, %c0_i32_0, %c0_i32_1 : i32, i32, i32
  }
  func.func @transform_8(%arg0: i32) -> (i32, i32, i32) {
    %c0_i32 = arith.constant 0 : i32
    %c0_i32_0 = arith.constant 0 : i32
    %c0_i32_1 = arith.constant 0 : i32
    %c0_i32_2 = arith.constant 0 : i32
    return %c0_i32, %c0_i32_0, %c0_i32_1 : i32, i32, i32
  }
  func.func @transform_9(%arg0: i32) -> (i32, i32, i32) {
    %c0_i32 = arith.constant 0 : i32
    %c0_i32_0 = arith.constant 0 : i32
    %c0_i32_1 = arith.constant 0 : i32
    %c0_i32_2 = arith.constant 0 : i32
    return %c0_i32, %c0_i32_0, %c0_i32_1 : i32, i32, i32
  }
  func.func @transform_10(%arg0: i32) -> (i32, i32, i32) {
    %c0_i32 = arith.constant 0 : i32
    %c0_i32_0 = arith.constant 0 : i32
    %c0_i32_1 = arith.constant 0 : i32
    %c0_i32_2 = arith.constant 0 : i32
    return %c0_i32, %c0_i32_0, %c0_i32_1 : i32, i32, i32
  }
  func.func @transform_11(%arg0: i32) -> (i32, i32, i32) {
    %c0_i32 = arith.constant 0 : i32
    %c0_i32_0 = arith.constant 0 : i32
    %c0_i32_1 = arith.constant 0 : i32
    %c0_i32_2 = arith.constant 0 : i32
    return %c0_i32, %c0_i32_0, %c0_i32_1 : i32, i32, i32
  }
  func.func @transform_12(%arg0: i32) -> (i32, i32, i32) {
    %c0_i32 = arith.constant 0 : i32
    %c0_i32_0 = arith.constant 0 : i32
    %c0_i32_1 = arith.constant 0 : i32
    %c0_i32_2 = arith.constant 0 : i32
    return %c0_i32, %c0_i32_0, %c0_i32_1 : i32, i32, i32
  }
  func.func @transform_13(%arg0: i32) -> (i32, i32, i32) {
    %c0_i32 = arith.constant 0 : i32
    %c0_i32_0 = arith.constant 0 : i32
    %c0_i32_1 = arith.constant 0 : i32
    %c0_i32_2 = arith.constant 0 : i32
    return %c0_i32, %c0_i32_0, %c0_i32_1 : i32, i32, i32
  }
  func.func @transform_14(%arg0: i32) -> (i32, i32, i32) {
    %c0_i32 = arith.constant 0 : i32
    %c0_i32_0 = arith.constant 0 : i32
    %c0_i32_1 = arith.constant 0 : i32
    %c0_i32_2 = arith.constant 0 : i32
    return %c0_i32, %c0_i32_0, %c0_i32_1 : i32, i32, i32
  }
  func.func @transform_15(%arg0: i32) -> (i32, i32, i32) {
    %c0_i32 = arith.constant 0 : i32
    %c0_i32_0 = arith.constant 0 : i32
    %c0_i32_1 = arith.constant 0 : i32
    %c0_i32_2 = arith.constant 0 : i32
    return %c0_i32, %c0_i32_0, %c0_i32_1 : i32, i32, i32
  }
  func.func @transform_16(%arg0: i32) -> (i32, i32, i32) {
    %c0_i32 = arith.constant 0 : i32
    %c0_i32_0 = arith.constant 0 : i32
    %c0_i32_1 = arith.constant 0 : i32
    %c0_i32_2 = arith.constant 0 : i32
    return %c0_i32, %c0_i32_0, %c0_i32_1 : i32, i32, i32
  }
  func.func @transform_17(%arg0: i32) -> (i32, i32) {
    %c0_i32 = arith.constant 0 : i32
    %c0_i32_0 = arith.constant 0 : i32
    %c0_i32_1 = arith.constant 0 : i32
    return %c0_i32, %c0_i32_0 : i32, i32
  }
  func.func @transform_18(%arg0: i32) -> (i32, i32) {
    %c0_i32 = arith.constant 0 : i32
    %c0_i32_0 = arith.constant 0 : i32
    %c0_i32_1 = arith.constant 0 : i32
    return %c0_i32, %c0_i32_0 : i32, i32
  }
  func.func @transform_19(%arg0: i32) -> (i32, i32) {
    %c0_i32 = arith.constant 0 : i32
    %c0_i32_0 = arith.constant 0 : i32
    %c0_i32_1 = arith.constant 0 : i32
    return %c0_i32, %c0_i32_0 : i32, i32
  }
  func.func @transform_20(%arg0: i32) -> (i32, i32, i32) {
    %c0_i32 = arith.constant 0 : i32
    %c0_i32_0 = arith.constant 0 : i32
    %c0_i32_1 = arith.constant 0 : i32
    return %arg0, %c0_i32, %c0_i32_0 : i32, i32, i32
  }
  func.func @transform_21(%arg0: i32) -> (i32, i32, i32) {
    %c0_i32 = arith.constant 0 : i32
    %c0_i32_0 = arith.constant 0 : i32
    %c0_i32_1 = arith.constant 0 : i32
    return %arg0, %c0_i32, %c0_i32_0 : i32, i32, i32
  }
  func.func @transform_22(%arg0: i32) -> (i32, i32, i32) {
    %c0_i32 = arith.constant 0 : i32
    %c0_i32_0 = arith.constant 0 : i32
    %c0_i32_1 = arith.constant 0 : i32
    return %arg0, %c0_i32, %c0_i32_0 : i32, i32, i32
  }
}

</mosaic_0001>

<llo_original>
// kernel: gpt_forward.1
$region0: #{gpt_forward.1}
  #allocation0 [shape = 'u32[]', space=smem, size = 0x4, offset = 0x4, fixed_abs, tag = 'smem constant byte address 0x4 - core index']
  #allocation1 [shape = 'u32[144,128]{1,0:T(1,128)}', space=vmem, size = 0x12000, scoped, tag = 'internal scratch']
  %s0 = inlined_call_operand.vmem [shape: f32[2,24,10], index: 0, kind: input, shape index: {}]
  %s1 = inlined_call_operand.vmem [shape: s32[2,8,1], index: 1, kind: input, shape index: {}]
  %s2 = inlined_call_operand.vmem [shape: f32[10,32], index: 2, kind: input, shape index: {}]
  %s3 = inlined_call_operand.vmem [shape: f32[1,32], index: 3, kind: input, shape index: {}]
  %s4 = inlined_call_operand.vmem [shape: f32[1,32], index: 4, kind: input, shape index: {}]
  %s5 = inlined_call_operand.vmem [shape: f32[2,1,32], index: 5, kind: input, shape index: {}]
  %s6 = inlined_call_operand.vmem [shape: f32[2,1,32], index: 6, kind: input, shape index: {}]
  %s7 = inlined_call_operand.vmem [shape: bf16[2,32,96], index: 7, kind: input, shape index: {}]
  %s8 = inlined_call_operand.vmem [shape: f32[2,1,96], index: 8, kind: input, shape index: {}]
  %s9 = inlined_call_operand.vmem [shape: bf16[2,32,32], index: 9, kind: input, shape index: {}]
  %s10 = inlined_call_operand.vmem [shape: f32[2,1,32], index: 10, kind: input, shape index: {}]
  %s11 = inlined_call_operand.vmem [shape: f32[2,1,32], index: 11, kind: input, shape index: {}]
  %s12 = inlined_call_operand.vmem [shape: f32[2,1,32], index: 12, kind: input, shape index: {}]
  %s13 = inlined_call_operand.vmem [shape: bf16[2,32,128], index: 13, kind: input, shape index: {}]
  %s14 = inlined_call_operand.vmem [shape: f32[2,1,128], index: 14, kind: input, shape index: {}]
  %s15 = inlined_call_operand.vmem [shape: bf16[2,128,32], index: 15, kind: input, shape index: {}]
  %s16 = inlined_call_operand.vmem [shape: f32[2,1,32], index: 16, kind: input, shape index: {}]
  %s17 = inlined_call_operand.vmem [shape: f32[1,32], index: 17, kind: input, shape index: {}]
  %s18 = inlined_call_operand.vmem [shape: f32[1,32], index: 18, kind: input, shape index: {}]
  %s19 = inlined_call_operand.vmem [shape: bf16[32,4], index: 19, kind: input, shape index: {}]
  %s20 = inlined_call_operand.vmem [shape: f32[2,8,4], index: 20, kind: output, shape index: {0}]
  %s21 = inlined_call_operand.vmem [shape: f32[2,1,1], index: 21, kind: output, shape index: {1}]
  %s22 = inlined_call_operand.vmem [shape: f32[2,1,1], index: 22, kind: output, shape index: {2}]
  %23 = xla_tuple %s20, %s21, %s22
  %s24 = sld [smem:[#allocation0]]
  $region129: #{gpt_forward.1} parent=0
    _
  %s26 = ssub.s32 1, %s24
  %s27 = scalar_select 0, %s26, %s24
  loop: start=0, step=1, limit=4
  $region2: #{gpt_forward.1} parent=0 // loop_pre_header
    _
  $region3: #{gpt_forward.1} parent=0 // loop_header
    %s29 = sphi 0, %s33
    %p30 = scmp.ge.s32.totalorder %s29, 4
    %s39 = sphi 0, %s41
    %s42 = sphi 0, %s39
    %s43 = sphi 0, %s42
    %s59 = sphi 0, %s43
    %s65 = sphi 0, %s67
    %s68 = sphi 0, %s65
    %s69 = sphi 0, %s68
    %s85 = sphi 0, %s69
    %s89 = sphi 0, %s89
    %s91 = sphi 0, %s89
    %s92 = sphi 0, %s91
    %s106 = sphi 0, %s92
    %s110 = sphi 0, %s110
    %s112 = sphi 0, %s110
    %s113 = sphi 0, %s112
    %s127 = sphi 0, %s113
    %s131 = sphi 0, %s131
    %s133 = sphi 0, %s131
    %s134 = sphi 0, %s133
    %s148 = sphi 0, %s134
    %s152 = sphi 0, %s152
    %s154 = sphi 0, %s152
    %s155 = sphi 0, %s154
    %s169 = sphi 0, %s155
    %s173 = sphi 0, %s173
    %s175 = sphi 0, %s173
    %s176 = sphi 0, %s175
    %s190 = sphi 0, %s176
    %s194 = sphi 0, %s194
    %s196 = sphi 0, %s194
    %s197 = sphi 0, %s196
    %s211 = sphi 0, %s197
    %s215 = sphi 0, %s215
    %s217 = sphi 0, %s215
    %s218 = sphi 0, %s217
    %s232 = sphi 0, %s218
    %s236 = sphi 0, %s236
    %s238 = sphi 0, %s236
    %s239 = sphi 0, %s238
    %s253 = sphi 0, %s239
    %s257 = sphi 0, %s257
    %s259 = sphi 0, %s257
    %s260 = sphi 0, %s259
    %s274 = sphi 0, %s260
    %s278 = sphi 0, %s278
    %s280 = sphi 0, %s278
    %s281 = sphi 0, %s280
    %s295 = sphi 0, %s281
    %s299 = sphi 0, %s299
    %s301 = sphi 0, %s299
    %s302 = sphi 0, %s301
    %s316 = sphi 0, %s302
    %s320 = sphi 0, %s320
    %s322 = sphi 0, %s320
    %s323 = sphi 0, %s322
    %s337 = sphi 0, %s323
    %s341 = sphi 0, %s341
    %s343 = sphi 0, %s341
    %s344 = sphi 0, %s343
    %s358 = sphi 0, %s344
    %s362 = sphi 0, %s362
    %s364 = sphi 0, %s362
    %s365 = sphi 0, %s364
    %s379 = sphi 0, %s365
    %s383 = sphi 0, %s383
    %s385 = sphi 0, %s383
    %s386 = sphi 0, %s385
    %s400 = sphi 0, %s386
    %s404 = sphi 0, %s404
    %s406 = sphi 0, %s404
    %s407 = sphi 0, %s406
    %s421 = sphi 0, %s407
    %s425 = sphi 0, %s425
    %s427 = sphi 0, %s425
    %s428 = sphi 0, %s427
    %s442 = sphi 0, %s428
    %s446 = sphi 0, %s446
    %s448 = sphi 0, %s446
    %s449 = sphi 0, %s448
    %s463 = sphi 0, %s449
    %s469 = sphi 0, %s471
    %s472 = sphi 0, %s469
    %s473 = sphi 0, %s472
    %s489 = sphi 0, %s473
    %s495 = sphi 0, %s497
    %s498 = sphi 0, %s495
    %s499 = sphi 0, %s498
    %s515 = sphi 0, %s499
    %s521 = sphi 0, %s523
    %s524 = sphi 0, %s521
    %s525 = sphi 0, %s524
    %s541 = sphi 0, %s525
  $region4: #{gpt_forward.1} parent=0 // loop_header_branch
    %32 = sbr.rel (%p30) target = $region8
  $region5: #{gpt_forward.1} parent=0 // loop_body
    %s34 = ssub.s32 %s29, 1
    %s35 = ssub.s32 %s29, 2
    %s36 = sadd.s32 %s29, 1
    %s37 = ssub.s32 %s29, %s36
    %p38 = scmp.eq.s32.totalorder %s37, 0
    %s40 = sadd.s32 %s39, 1
    %s41 = scalar_select %p38, %s39, %s40
    %p44 = pneg %p38
    %p45 = scmp.eq.s32.totalorder %s29, 1
    %p46 = por %p44, %p45
    %p47 = scmp.ne.s32.totalorder %s39, %s42
    %p48 = scmp.eq.s32.totalorder %s29, 0
    %p49 = por %p47, %p48
    %p50 = scmp.ne.s32.totalorder %s39, %s42
    %p51 = scmp.eq.s32.totalorder %s34, 1
    %p52 = por %p50, %p51
    %p53 = scmp.ne.s32.totalorder %s42, %s43
    %p54 = scmp.eq.s32.totalorder %s34, 0
    %p55 = por %p53, %p54
    %p56 = scmp.ne.s32.totalorder %s42, %s43
    %p57 = scmp.eq.s32.totalorder %s35, 1
    %p58 = por %p56, %p57
    %p60 = scmp.ne.s32.totalorder %s43, %s59
    %p61 = scmp.eq.s32.totalorder %s35, 0
    %p62 = por %p60, %p61
    %s63 = ssub.s32 %s29, %s36
    %p64 = scmp.eq.s32.totalorder %s63, 0
    %s66 = sadd.s32 %s65, 1
    %s67 = scalar_select %p64, %s65, %s66
    %p70 = pneg %p64
    %p71 = scmp.eq.s32.totalorder %s29, 1
    %p72 = por %p70, %p71
    %p73 = scmp.ne.s32.totalorder %s65, %s68
    %p74 = scmp.eq.s32.totalorder %s29, 0
    %p75 = por %p73, %p74
    %p76 = scmp.ne.s32.totalorder %s65, %s68
    %p77 = scmp.eq.s32.totalorder %s34, 1
    %p78 = por %p76, %p77
    %p79 = scmp.ne.s32.totalorder %s68, %s69
    %p80 = scmp.eq.s32.totalorder %s34, 0
    %p81 = por %p79, %p80
    %p82 = scmp.ne.s32.totalorder %s68, %s69
    %p83 = scmp.eq.s32.totalorder %s35, 1
    %p84 = por %p82, %p83
    %p86 = scmp.ne.s32.totalorder %s69, %s85
    %p87 = scmp.eq.s32.totalorder %s35, 0
    %p88 = por %p86, %p87
    %s90 = sadd.s32 %s89, 1
    %p93 = scmp.eq.s32.totalorder %s29, 1
    %p94 = scmp.ne.s32.totalorder %s89, %s91
    %p95 = scmp.eq.s32.totalorder %s29, 0
    %p96 = por %p94, %p95
    %p97 = scmp.ne.s32.totalorder %s89, %s91
    %p98 = scmp.eq.s32.totalorder %s34, 1
    %p99 = por %p97, %p98
    %p100 = scmp.ne.s32.totalorder %s91, %s92
    %p101 = scmp.eq.s32.totalorder %s34, 0
    %p102 = por %p100, %p101
    %p103 = scmp.ne.s32.totalorder %s91, %s92
    %p104 = scmp.eq.s32.totalorder %s35, 1
    %p105 = por %p103, %p104
    %p107 = scmp.ne.s32.totalorder %s92, %s106
    %p108 = scmp.eq.s32.totalorder %s35, 0
    %p109 = por %p107, %p108
    %s111 = sadd.s32 %s110, 1
    %p114 = scmp.eq.s32.totalorder %s29, 1
    %p115 = scmp.ne.s32.totalorder %s110, %s112
    %p116 = scmp.eq.s32.totalorder %s29, 0
    %p117 = por %p115, %p116
    %p118 = scmp.ne.s32.totalorder %s110, %s112
    %p119 = scmp.eq.s32.totalorder %s34, 1
    %p120 = por %p118, %p119
    %p121 = scmp.ne.s32.totalorder %s112, %s113
    %p122 = scmp.eq.s32.totalorder %s34, 0
    %p123 = por %p121, %p122
    %p124 = scmp.ne.s32.totalorder %s112, %s113
    %p125 = scmp.eq.s32.totalorder %s35, 1
    %p126 = por %p124, %p125
    %p128 = scmp.ne.s32.totalorder %s113, %s127
    %p129 = scmp.eq.s32.totalorder %s35, 0
    %p130 = por %p128, %p129
    %s132 = sadd.s32 %s131, 1
    %p135 = scmp.eq.s32.totalorder %s29, 1
    %p136 = scmp.ne.s32.totalorder %s131, %s133
    %p137 = scmp.eq.s32.totalorder %s29, 0
    %p138 = por %p136, %p137
    %p139 = scmp.ne.s32.totalorder %s131, %s133
    %p140 = scmp.eq.s32.totalorder %s34, 1
    %p141 = por %p139, %p140
    %p142 = scmp.ne.s32.totalorder %s133, %s134
    %p143 = scmp.eq.s32.totalorder %s34, 0
    %p144 = por %p142, %p143
    %p145 = scmp.ne.s32.totalorder %s133, %s134
    %p146 = scmp.eq.s32.totalorder %s35, 1
    %p147 = por %p145, %p146
    %p149 = scmp.ne.s32.totalorder %s134, %s148
    %p150 = scmp.eq.s32.totalorder %s35, 0
    %p151 = por %p149, %p150
    %s153 = sadd.s32 %s152, 1
    %p156 = scmp.eq.s32.totalorder %s29, 1
    %p157 = scmp.ne.s32.totalorder %s152, %s154
    %p158 = scmp.eq.s32.totalorder %s29, 0
    %p159 = por %p157, %p158
    %p160 = scmp.ne.s32.totalorder %s152, %s154
    %p161 = scmp.eq.s32.totalorder %s34, 1
    %p162 = por %p160, %p161
    %p163 = scmp.ne.s32.totalorder %s154, %s155
    %p164 = scmp.eq.s32.totalorder %s34, 0
    %p165 = por %p163, %p164
    %p166 = scmp.ne.s32.totalorder %s154, %s155
    %p167 = scmp.eq.s32.totalorder %s35, 1
    %p168 = por %p166, %p167
    %p170 = scmp.ne.s32.totalorder %s155, %s169
    %p171 = scmp.eq.s32.totalorder %s35, 0
    %p172 = por %p170, %p171
    %s174 = sadd.s32 %s173, 1
    %p177 = scmp.eq.s32.totalorder %s29, 1
    %p178 = scmp.ne.s32.totalorder %s173, %s175
    %p179 = scmp.eq.s32.totalorder %s29, 0
    %p180 = por %p178, %p179
    %p181 = scmp.ne.s32.totalorder %s173, %s175
    %p182 = scmp.eq.s32.totalorder %s34, 1
    %p183 = por %p181, %p182
    %p184 = scmp.ne.s32.totalorder %s175, %s176
    %p185 = scmp.eq.s32.totalorder %s34, 0
    %p186 = por %p184, %p185
    %p187 = scmp.ne.s32.totalorder %s175, %s176
    %p188 = scmp.eq.s32.totalorder %s35, 1
    %p189 = por %p187, %p188
    %p191 = scmp.ne.s32.totalorder %s176, %s190
    %p192 = scmp.eq.s32.totalorder %s35, 0
    %p193 = por %p191, %p192
    %s195 = sadd.s32 %s194, 1
    %p198 = scmp.eq.s32.totalorder %s29, 1
    %p199 = scmp.ne.s32.totalorder %s194, %s196
    %p200 = scmp.eq.s32.totalorder %s29, 0
    %p201 = por %p199, %p200
    %p202 = scmp.ne.s32.totalorder %s194, %s196
    %p203 = scmp.eq.s32.totalorder %s34, 1
    %p204 = por %p202, %p203
    %p205 = scmp.ne.s32.totalorder %s196, %s197
    %p206 = scmp.eq.s32.totalorder %s34, 0
    %p207 = por %p205, %p206
    %p208 = scmp.ne.s32.totalorder %s196, %s197
    %p209 = scmp.eq.s32.totalorder %s35, 1
    %p210 = por %p208, %p209
    %p212 = scmp.ne.s32.totalorder %s197, %s211
    %p213 = scmp.eq.s32.totalorder %s35, 0
    %p214 = por %p212, %p213
    %s216 = sadd.s32 %s215, 1
    %p219 = scmp.eq.s32.totalorder %s29, 1
    %p220 = scmp.ne.s32.totalorder %s215, %s217
    %p221 = scmp.eq.s32.totalorder %s29, 0
    %p222 = por %p220, %p221
    %p223 = scmp.ne.s32.totalorder %s215, %s217
    %p224 = scmp.eq.s32.totalorder %s34, 1
    %p225 = por %p223, %p224
    %p226 = scmp.ne.s32.totalorder %s217, %s218
    %p227 = scmp.eq.s32.totalorder %s34, 0
    %p228 = por %p226, %p227
    %p229 = scmp.ne.s32.totalorder %s217, %s218
    %p230 = scmp.eq.s32.totalorder %s35, 1
    %p231 = por %p229, %p230
    %p233 = scmp.ne.s32.totalorder %s218, %s232
    %p234 = scmp.eq.s32.totalorder %s35, 0
    %p235 = por %p233, %p234
    %s237 = sadd.s32 %s236, 1
    %p240 = scmp.eq.s32.totalorder %s29, 1
    %p241 = scmp.ne.s32.totalorder %s236, %s238
    %p242 = scmp.eq.s32.totalorder %s29, 0
    %p243 = por %p241, %p242
    %p244 = scmp.ne.s32.totalorder %s236, %s238
    %p245 = scmp.eq.s32.totalorder %s34, 1
    %p246 = por %p244, %p245
    %p247 = scmp.ne.s32.totalorder %s238, %s239
    %p248 = scmp.eq.s32.totalorder %s34, 0
    %p249 = por %p247, %p248
    %p250 = scmp.ne.s32.totalorder %s238, %s239
    %p251 = scmp.eq.s32.totalorder %s35, 1
    %p252 = por %p250, %p251
    %p254 = scmp.ne.s32.totalorder %s239, %s253
    %p255 = scmp.eq.s32.totalorder %s35, 0
    %p256 = por %p254, %p255
    %s258 = sadd.s32 %s257, 1
    %p261 = scmp.eq.s32.totalorder %s29, 1
    %p262 = scmp.ne.s32.totalorder %s257, %s259
    %p263 = scmp.eq.s32.totalorder %s29, 0
    %p264 = por %p262, %p263
    %p265 = scmp.ne.s32.totalorder %s257, %s259
    %p266 = scmp.eq.s32.totalorder %s34, 1
    %p267 = por %p265, %p266
    %p268 = scmp.ne.s32.totalorder %s259, %s260
    %p269 = scmp.eq.s32.totalorder %s34, 0
    %p270 = por %p268, %p269
    %p271 = scmp.ne.s32.totalorder %s259, %s260
    %p272 = scmp.eq.s32.totalorder %s35, 1
    %p273 = por %p271, %p272
    %p275 = scmp.ne.s32.totalorder %s260, %s274
    %p276 = scmp.eq.s32.totalorder %s35, 0
    %p277 = por %p275, %p276
    %s279 = sadd.s32 %s278, 1
    %p282 = scmp.eq.s32.totalorder %s29, 1
    %p283 = scmp.ne.s32.totalorder %s278, %s280
    %p284 = scmp.eq.s32.totalorder %s29, 0
    %p285 = por %p283, %p284
    %p286 = scmp.ne.s32.totalorder %s278, %s280
    %p287 = scmp.eq.s32.totalorder %s34, 1
    %p288 = por %p286, %p287
    %p289 = scmp.ne.s32.totalorder %s280, %s281
    %p290 = scmp.eq.s32.totalorder %s34, 0
    %p291 = por %p289, %p290
    %p292 = scmp.ne.s32.totalorder %s280, %s281
    %p293 = scmp.eq.s32.totalorder %s35, 1
    %p294 = por %p292, %p293
    %p296 = scmp.ne.s32.totalorder %s281, %s295
    %p297 = scmp.eq.s32.totalorder %s35, 0
    %p298 = por %p296, %p297
    %s300 = sadd.s32 %s299, 1
    %p303 = scmp.eq.s32.totalorder %s29, 1
    %p304 = scmp.ne.s32.totalorder %s299, %s301
    %p305 = scmp.eq.s32.totalorder %s29, 0
    %p306 = por %p304, %p305
    %p307 = scmp.ne.s32.totalorder %s299, %s301
    %p308 = scmp.eq.s32.totalorder %s34, 1
    %p309 = por %p307, %p308
    %p310 = scmp.ne.s32.totalorder %s301, %s302
    %p311 = scmp.eq.s32.totalorder %s34, 0
    %p312 = por %p310, %p311
    %p313 = scmp.ne.s32.totalorder %s301, %s302
    %p314 = scmp.eq.s32.totalorder %s35, 1
    %p315 = por %p313, %p314
    %p317 = scmp.ne.s32.totalorder %s302, %s316
    %p318 = scmp.eq.s32.totalorder %s35, 0
    %p319 = por %p317, %p318
    %s321 = sadd.s32 %s320, 1
    %p324 = scmp.eq.s32.totalorder %s29, 1
    %p325 = scmp.ne.s32.totalorder %s320, %s322
    %p326 = scmp.eq.s32.totalorder %s29, 0
    %p327 = por %p325, %p326
    %p328 = scmp.ne.s32.totalorder %s320, %s322
    %p329 = scmp.eq.s32.totalorder %s34, 1
    %p330 = por %p328, %p329
    %p331 = scmp.ne.s32.totalorder %s322, %s323
    %p332 = scmp.eq.s32.totalorder %s34, 0
    %p333 = por %p331, %p332
    %p334 = scmp.ne.s32.totalorder %s322, %s323
    %p335 = scmp.eq.s32.totalorder %s35, 1
    %p336 = por %p334, %p335
    %p338 = scmp.ne.s32.totalorder %s323, %s337
    %p339 = scmp.eq.s32.totalorder %s35, 0
    %p340 = por %p338, %p339
    %s342 = sadd.s32 %s341, 1
    %p345 = scmp.eq.s32.totalorder %s29, 1
    %p346 = scmp.ne.s32.totalorder %s341, %s343
    %p347 = scmp.eq.s32.totalorder %s29, 0
    %p348 = por %p346, %p347
    %p349 = scmp.ne.s32.totalorder %s341, %s343
    %p350 = scmp.eq.s32.totalorder %s34, 1
    %p351 = por %p349, %p350
    %p352 = scmp.ne.s32.totalorder %s343, %s344
    %p353 = scmp.eq.s32.totalorder %s34, 0
    %p354 = por %p352, %p353
    %p355 = scmp.ne.s32.totalorder %s343, %s344
    %p356 = scmp.eq.s32.totalorder %s35, 1
    %p357 = por %p355, %p356
    %p359 = scmp.ne.s32.totalorder %s344, %s358
    %p360 = scmp.eq.s32.totalorder %s35, 0
    %p361 = por %p359, %p360
    %s363 = sadd.s32 %s362, 1
    %p366 = scmp.eq.s32.totalorder %s29, 1
    %p367 = scmp.ne.s32.totalorder %s362, %s364
    %p368 = scmp.eq.s32.totalorder %s29, 0
    %p369 = por %p367, %p368
    %p370 = scmp.ne.s32.totalorder %s362, %s364
    %p371 = scmp.eq.s32.totalorder %s34, 1
    %p372 = por %p370, %p371
    %p373 = scmp.ne.s32.totalorder %s364, %s365
    %p374 = scmp.eq.s32.totalorder %s34, 0
    %p375 = por %p373, %p374
    %p376 = scmp.ne.s32.totalorder %s364, %s365
    %p377 = scmp.eq.s32.totalorder %s35, 1
    %p378 = por %p376, %p377
    %p380 = scmp.ne.s32.totalorder %s365, %s379
    %p381 = scmp.eq.s32.totalorder %s35, 0
    %p382 = por %p380, %p381
    %s384 = sadd.s32 %s383, 1
    %p387 = scmp.eq.s32.totalorder %s29, 1
    %p388 = scmp.ne.s32.totalorder %s383, %s385
    %p389 = scmp.eq.s32.totalorder %s29, 0
    %p390 = por %p388, %p389
    %p391 = scmp.ne.s32.totalorder %s383, %s385
    %p392 = scmp.eq.s32.totalorder %s34, 1
    %p393 = por %p391, %p392
    %p394 = scmp.ne.s32.totalorder %s385, %s386
    %p395 = scmp.eq.s32.totalorder %s34, 0
    %p396 = por %p394, %p395
    %p397 = scmp.ne.s32.totalorder %s385, %s386
    %p398 = scmp.eq.s32.totalorder %s35, 1
    %p399 = por %p397, %p398
    %p401 = scmp.ne.s32.totalorder %s386, %s400
    %p402 = scmp.eq.s32.totalorder %s35, 0
    %p403 = por %p401, %p402
    %s405 = sadd.s32 %s404, 1
    %p408 = scmp.eq.s32.totalorder %s29, 1
    %p409 = scmp.ne.s32.totalorder %s404, %s406
    %p410 = scmp.eq.s32.totalorder %s29, 0
    %p411 = por %p409, %p410
    %p412 = scmp.ne.s32.totalorder %s404, %s406
    %p413 = scmp.eq.s32.totalorder %s34, 1
    %p414 = por %p412, %p413
    %p415 = scmp.ne.s32.totalorder %s406, %s407
    %p416 = scmp.eq.s32.totalorder %s34, 0
    %p417 = por %p415, %p416
    %p418 = scmp.ne.s32.totalorder %s406, %s407
    %p419 = scmp.eq.s32.totalorder %s35, 1
    %p420 = por %p418, %p419
    %p422 = scmp.ne.s32.totalorder %s407, %s421
    %p423 = scmp.eq.s32.totalorder %s35, 0
    %p424 = por %p422, %p423
    %s426 = sadd.s32 %s425, 1
    %p429 = scmp.eq.s32.totalorder %s29, 1
    %p430 = scmp.ne.s32.totalorder %s425, %s427
    %p431 = scmp.eq.s32.totalorder %s29, 0
    %p432 = por %p430, %p431
    %p433 = scmp.ne.s32.totalorder %s425, %s427
    %p434 = scmp.eq.s32.totalorder %s34, 1
    %p435 = por %p433, %p434
    %p436 = scmp.ne.s32.totalorder %s427, %s428
    %p437 = scmp.eq.s32.totalorder %s34, 0
    %p438 = por %p436, %p437
    %p439 = scmp.ne.s32.totalorder %s427, %s428
    %p440 = scmp.eq.s32.totalorder %s35, 1
    %p441 = por %p439, %p440
    %p443 = scmp.ne.s32.totalorder %s428, %s442
    %p444 = scmp.eq.s32.totalorder %s35, 0
    %p445 = por %p443, %p444
    %s447 = sadd.s32 %s446, 1
    %p450 = scmp.eq.s32.totalorder %s29, 1
    %p451 = scmp.ne.s32.totalorder %s446, %s448
    %p452 = scmp.eq.s32.totalorder %s29, 0
    %p453 = por %p451, %p452
    %p454 = scmp.ne.s32.totalorder %s446, %s448
    %p455 = scmp.eq.s32.totalorder %s34, 1
    %p456 = por %p454, %p455
    %p457 = scmp.ne.s32.totalorder %s448, %s449
    %p458 = scmp.eq.s32.totalorder %s34, 0
    %p459 = por %p457, %p458
    %p460 = scmp.ne.s32.totalorder %s448, %s449
    %p461 = scmp.eq.s32.totalorder %s35, 1
    %p462 = por %p460, %p461
    %p464 = scmp.ne.s32.totalorder %s449, %s463
    %p465 = scmp.eq.s32.totalorder %s35, 0
    %p466 = por %p464, %p465
    %s467 = ssub.s32 %s29, %s36
    %p468 = scmp.eq.s32.totalorder %s467, 0
    %s470 = sadd.s32 %s469, 1
    %s471 = scalar_select %p468, %s469, %s470
    %p474 = pneg %p468
    %p475 = scmp.eq.s32.totalorder %s29, 1
    %p476 = por %p474, %p475
    %p477 = scmp.ne.s32.totalorder %s469, %s472
    %p478 = scmp.eq.s32.totalorder %s29, 0
    %p479 = por %p477, %p478
    %p480 = scmp.ne.s32.totalorder %s469, %s472
    %p481 = scmp.eq.s32.totalorder %s34, 1
    %p482 = por %p480, %p481
    %p483 = scmp.ne.s32.totalorder %s472, %s473
    %p484 = scmp.eq.s32.totalorder %s34, 0
    %p485 = por %p483, %p484
    %p486 = scmp.ne.s32.totalorder %s472, %s473
    %p487 = scmp.eq.s32.totalorder %s35, 1
    %p488 = por %p486, %p487
    %p490 = scmp.ne.s32.totalorder %s473, %s489
    %p491 = scmp.eq.s32.totalorder %s35, 0
    %p492 = por %p490, %p491
    %s493 = ssub.s32 %s29, %s36
    %p494 = scmp.eq.s32.totalorder %s493, 0
    %s496 = sadd.s32 %s495, 1
    %s497 = scalar_select %p494, %s495, %s496
    %p500 = pneg %p494
    %p501 = scmp.eq.s32.totalorder %s29, 1
    %p502 = por %p500, %p501
    %p503 = scmp.ne.s32.totalorder %s495, %s498
    %p504 = scmp.eq.s32.totalorder %s29, 0
    %p505 = por %p503, %p504
    %p506 = scmp.ne.s32.totalorder %s495, %s498
    %p507 = scmp.eq.s32.totalorder %s34, 1
    %p508 = por %p506, %p507
    %p509 = scmp.ne.s32.totalorder %s498, %s499
    %p510 = scmp.eq.s32.totalorder %s34, 0
    %p511 = por %p509, %p510
    %p512 = scmp.ne.s32.totalorder %s498, %s499
    %p513 = scmp.eq.s32.totalorder %s35, 1
    %p514 = por %p512, %p513
    %p516 = scmp.ne.s32.totalorder %s499, %s515
    %p517 = scmp.eq.s32.totalorder %s35, 0
    %p518 = por %p516, %p517
    %s519 = ssub.s32 %s29, %s36
    %p520 = scmp.eq.s32.totalorder %s519, 0
    %s522 = sadd.s32 %s521, 1
    %s523 = scalar_select %p520, %s521, %s522
    %p526 = pneg %p520
    %p527 = scmp.eq.s32.totalorder %s29, 1
    %p528 = por %p526, %p527
    %p529 = scmp.ne.s32.totalorder %s521, %s524
    %p530 = scmp.eq.s32.totalorder %s29, 0
    %p531 = por %p529, %p530
    %p532 = scmp.ne.s32.totalorder %s521, %s524
    %p533 = scmp.eq.s32.totalorder %s34, 1
    %p534 = por %p532, %p533
    %p535 = scmp.ne.s32.totalorder %s524, %s525
    %p536 = scmp.eq.s32.totalorder %s34, 0
    %p537 = por %p535, %p536
    %p538 = scmp.ne.s32.totalorder %s524, %s525
    %p539 = scmp.eq.s32.totalorder %s35, 1
    %p540 = por %p538, %p539
    %p542 = scmp.ne.s32.totalorder %s525, %s541
    %p543 = scmp.eq.s32.totalorder %s35, 0
    %p544 = por %p542, %p543
    %p545 = scmp.le.s32.totalorder 1, %s29
    %p546 = scmp.lt.s32.totalorder %s29, 3
    %p547 = pnand %p545, %p546
    %p548 = pneg %p547
    // Predicated region
    $region9: #{gpt_forward.1} parent=5 // pred_check
      _
    $region10: #{gpt_forward.1} parent=5 // pred_check_branch
      %550 = sbr.rel (%p547) target = $region12
    $region11: #{gpt_forward.1} parent=5 // pred_region
      %s551 = ssub.s32 %s29, 1
      // Predicated region
      $region13: #{gpt_forward.1} parent=11 // pred_check
        %p552 = pneg %p102
      $region14: #{gpt_forward.1} parent=11 // pred_check_branch
        %554 = sbr.rel (%p552) target = $region16
      $region15: #{gpt_forward.1} parent=11 // pred_region
        _
      $region16: #{gpt_forward.1} parent=11 // pred_fallthru
        _
      // Predicated region
      $region17: #{gpt_forward.1} parent=11 // pred_check
        %p555 = pneg %p123
      $region18: #{gpt_forward.1} parent=11 // pred_check_branch
        %557 = sbr.rel (%p555) target = $region20
      $region19: #{gpt_forward.1} parent=11 // pred_region
        _
      $region20: #{gpt_forward.1} parent=11 // pred_fallthru
        _
      // Predicated region
      $region21: #{gpt_forward.1} parent=11 // pred_check
        %p558 = pneg %p144
      $region22: #{gpt_forward.1} parent=11 // pred_check_branch
        %560 = sbr.rel (%p558) target = $region24
      $region23: #{gpt_forward.1} parent=11 // pred_region
        _
      $region24: #{gpt_forward.1} parent=11 // pred_fallthru
        _
      // Predicated region
      $region25: #{gpt_forward.1} parent=11 // pred_check
        %p561 = pneg %p165
      $region26: #{gpt_forward.1} parent=11 // pred_check_branch
        %563 = sbr.rel (%p561) target = $region28
      $region27: #{gpt_forward.1} parent=11 // pred_region
        _
      $region28: #{gpt_forward.1} parent=11 // pred_fallthru
        _
      // Predicated region
      $region29: #{gpt_forward.1} parent=11 // pred_check
        %p564 = pneg %p186
      $region30: #{gpt_forward.1} parent=11 // pred_check_branch
        %566 = sbr.rel (%p564) target = $region32
      $region31: #{gpt_forward.1} parent=11 // pred_region
        _
      $region32: #{gpt_forward.1} parent=11 // pred_fallthru
        _
      // Predicated region
      $region33: #{gpt_forward.1} parent=11 // pred_check
        %p567 = pneg %p207
      $region34: #{gpt_forward.1} parent=11 // pred_check_branch
        %569 = sbr.rel (%p567) target = $region36
      $region35: #{gpt_forward.1} parent=11 // pred_region
        _
      $region36: #{gpt_forward.1} parent=11 // pred_fallthru
        _
      // Predicated region
      $region37: #{gpt_forward.1} parent=11 // pred_check
        %p570 = pneg %p228
      $region38: #{gpt_forward.1} parent=11 // pred_check_branch
        %572 = sbr.rel (%p570) target = $region40
      $region39: #{gpt_forward.1} parent=11 // pred_region
        _
      $region40: #{gpt_forward.1} parent=11 // pred_fallthru
        _
      // Predicated region
      $region41: #{gpt_forward.1} parent=11 // pred_check
        %p573 = pneg %p249
      $region42: #{gpt_forward.1} parent=11 // pred_check_branch
        %575 = sbr.rel (%p573) target = $region44
      $region43: #{gpt_forward.1} parent=11 // pred_region
        _
      $region44: #{gpt_forward.1} parent=11 // pred_fallthru
        _
      // Predicated region
      $region45: #{gpt_forward.1} parent=11 // pred_check
        %p576 = pneg %p270
      $region46: #{gpt_forward.1} parent=11 // pred_check_branch
        %578 = sbr.rel (%p576) target = $region48
      $region47: #{gpt_forward.1} parent=11 // pred_region
        _
      $region48: #{gpt_forward.1} parent=11 // pred_fallthru
        _
      // Predicated region
      $region49: #{gpt_forward.1} parent=11 // pred_check
        %p579 = pneg %p291
      $region50: #{gpt_forward.1} parent=11 // pred_check_branch
        %581 = sbr.rel (%p579) target = $region52
      $region51: #{gpt_forward.1} parent=11 // pred_region
        _
      $region52: #{gpt_forward.1} parent=11 // pred_fallthru
        _
      // Predicated region
      $region53: #{gpt_forward.1} parent=11 // pred_check
        %p582 = pneg %p312
      $region54: #{gpt_forward.1} parent=11 // pred_check_branch
        %584 = sbr.rel (%p582) target = $region56
      $region55: #{gpt_forward.1} parent=11 // pred_region
        _
      $region56: #{gpt_forward.1} parent=11 // pred_fallthru
        _
      // Predicated region
      $region57: #{gpt_forward.1} parent=11 // pred_check
        %p585 = pneg %p333
      $region58: #{gpt_forward.1} parent=11 // pred_check_branch
        %587 = sbr.rel (%p585) target = $region60
      $region59: #{gpt_forward.1} parent=11 // pred_region
        _
      $region60: #{gpt_forward.1} parent=11 // pred_fallthru
        _
      // Predicated region
      $region61: #{gpt_forward.1} parent=11 // pred_check
        %p588 = pneg %p354
      $region62: #{gpt_forward.1} parent=11 // pred_check_branch
        %590 = sbr.rel (%p588) target = $region64
      $region63: #{gpt_forward.1} parent=11 // pred_region
        _
      $region64: #{gpt_forward.1} parent=11 // pred_fallthru
        _
      // Predicated region
      $region65: #{gpt_forward.1} parent=11 // pred_check
        %p591 = pneg %p375
      $region66: #{gpt_forward.1} parent=11 // pred_check_branch
        %593 = sbr.rel (%p591) target = $region68
      $region67: #{gpt_forward.1} parent=11 // pred_region
        _
      $region68: #{gpt_forward.1} parent=11 // pred_fallthru
        _
      // Predicated region
      $region69: #{gpt_forward.1} parent=11 // pred_check
        %p594 = pneg %p396
      $region70: #{gpt_forward.1} parent=11 // pred_check_branch
        %596 = sbr.rel (%p594) target = $region72
      $region71: #{gpt_forward.1} parent=11 // pred_region
        _
      $region72: #{gpt_forward.1} parent=11 // pred_fallthru
        _
      // Predicated region
      $region73: #{gpt_forward.1} parent=11 // pred_check
        %p597 = pneg %p417
      $region74: #{gpt_forward.1} parent=11 // pred_check_branch
        %599 = sbr.rel (%p597) target = $region76
      $region75: #{gpt_forward.1} parent=11 // pred_region
        _
      $region76: #{gpt_forward.1} parent=11 // pred_fallthru
        _
      // Predicated region
      $region77: #{gpt_forward.1} parent=11 // pred_check
        %p600 = pneg %p438
      $region78: #{gpt_forward.1} parent=11 // pred_check_branch
        %602 = sbr.rel (%p600) target = $region80
      $region79: #{gpt_forward.1} parent=11 // pred_region
        _
      $region80: #{gpt_forward.1} parent=11 // pred_fallthru
        _
      // Predicated region
      $region81: #{gpt_forward.1} parent=11 // pred_check
        %p603 = pneg %p459
      $region82: #{gpt_forward.1} parent=11 // pred_check_branch
        %605 = sbr.rel (%p603) target = $region84
      $region83: #{gpt_forward.1} parent=11 // pred_region
        _
      $region84: #{gpt_forward.1} parent=11 // pred_fallthru
        _
    $region12: #{gpt_forward.1} parent=5 // pred_fallthru
      _
    %p606 = scmp.lt.s32.totalorder %s29, 2
    // Predicated region
    $region85: #{gpt_forward.1} parent=5 // pred_check
      %p607 = pneg %p606
    $region86: #{gpt_forward.1} parent=5 // pred_check_branch
      %609 = sbr.rel (%p607) target = $region88
    $region87: #{gpt_forward.1} parent=5 // pred_region
      // Predicated region
      $region89: #{gpt_forward.1} parent=87 // pred_check
        %p610 = pneg %p49
      $region90: #{gpt_forward.1} parent=87 // pred_check_branch
        %612 = sbr.rel (%p610) target = $region92
      $region91: #{gpt_forward.1} parent=87 // pred_region
        %p613 = scmp.lt.s32.totalorder %s29, 1
        %s614 = scalar_select %p613, %s29, 1
        %s615 = smul.addr %s614, 3
        %s616 = smul.addr %s615, 8
        %s617 = scalar_lea.vmem %s0, %s616
      $region92: #{gpt_forward.1} parent=87 // pred_fallthru
        _
      // Predicated region
      $region93: #{gpt_forward.1} parent=87 // pred_check
        %p618 = pneg %p75
      $region94: #{gpt_forward.1} parent=87 // pred_check_branch
        %620 = sbr.rel (%p618) target = $region96
      $region95: #{gpt_forward.1} parent=87 // pred_region
        %p621 = scmp.lt.s32.totalorder %s29, 1
        %s622 = scalar_select %p621, %s29, 1
        %s623 = smul.addr %s622, 8
        %s624 = scalar_lea.vmem %s1, %s623
      $region96: #{gpt_forward.1} parent=87 // pred_fallthru
        _
    $region88: #{gpt_forward.1} parent=5 // pred_fallthru
      _
    %p625 = scmp.le.s32.totalorder 1, %s29
    %p626 = scmp.lt.s32.totalorder %s29, 3
    %p627 = pnand %p625, %p626
    %p628 = pneg %p627
    // Predicated region
    $region97: #{gpt_forward.1} parent=5 // pred_check
      _
    $region98: #{gpt_forward.1} parent=5 // pred_check_branch
      %630 = sbr.rel (%p627) target = $region100
    $region99: #{gpt_forward.1} parent=5 // pred_region
      %s631 = ssub.s32 %s29, 1
      %p632 = scmp.lt.s32.totalorder %s34, 1
      %s633 = scalar_select %p632, %s34, 1
      %s634 = smul.addr %s633, 3
      %s635 = smul.addr %s634, 8
      %s636 = scalar_lea.vmem %s0, %s635
      %p637 = pneg %p55
      %p638 = pneg %p52
      %p639 = scmp.lt.s32.totalorder %s34, 1
      %s640 = scalar_select %p639, %s34, 1
      %s641 = smul.addr %s640, 8
      %s642 = scalar_lea.vmem %s1, %s641
      %p643 = pneg %p81
      %p644 = pneg %p78
      %p645 = pneg %p102
      %p646 = pneg %p99
      %p647 = pneg %p123
      %p648 = pneg %p120
      %p649 = pneg %p144
      %p650 = pneg %p141
      %p651 = pneg %p165
      %p652 = pneg %p162
      %p653 = pneg %p186
      %p654 = pneg %p183
      %p655 = pneg %p207
      %p656 = pneg %p204
      %p657 = pneg %p228
      %p658 = pneg %p225
      %p659 = pneg %p249
      %p660 = pneg %p246
      %p661 = pneg %p270
      %p662 = pneg %p267
      %p663 = pneg %p291
      %p664 = pneg %p288
      %p665 = pneg %p312
      %p666 = pneg %p309
      %p667 = pneg %p333
      %p668 = pneg %p330
      %p669 = pneg %p354
      %p670 = pneg %p351
      %p671 = pneg %p375
      %p672 = pneg %p372
      %p673 = pneg %p396
      %p674 = pneg %p393
      %p675 = pneg %p417
      %p676 = pneg %p414
      %p677 = pneg %p438
      %p678 = pneg %p435
      %p679 = pneg %p459
      %p680 = pneg %p456
      %p681 = pneg %p485
      %p682 = pneg %p482
      %p683 = scmp.lt.s32.totalorder %s34, 1
      %s684 = scalar_select %p683, %s34, 1
      %s685 = smul.addr %s684, 8
      %s686 = scalar_lea.vmem %s20, %s685
      %p687 = pneg %p511
      %p688 = pneg %p508
      %p689 = scmp.lt.s32.totalorder %s34, 1
      %s690 = scalar_select %p689, %s34, 1
      %s691 = scalar_lea.vmem %s21, %s690
      %p692 = pneg %p537
      %p693 = pneg %p534
      %p694 = scmp.lt.s32.totalorder %s34, 1
      %s695 = scalar_select %p694, %s34, 1
      %s696 = scalar_lea.vmem %s22, %s695
      %p697 = scmp.lt.s32.totalorder %s34, 1
      %s698 = scalar_select %p697, %s34, 1
      %s699 = smul.addr %s698, 3
      %s700 = smul.addr %s699, 8
      %s701 = scalar_lea.vmem %s0, %s700
      %p702 = scmp.lt.s32.totalorder %s34, 1
      %s703 = scalar_select %p702, %s34, 1
      %s704 = smul.addr %s703, 8
      %s705 = scalar_lea.vmem %s1, %s704
      %p706 = scmp.lt.s32.totalorder %s34, 1
      %s707 = scalar_select %p706, %s34, 1
      %s708 = smul.addr %s707, 8
      %s709 = scalar_lea.vmem %s20, %s708
      %p710 = scmp.lt.s32.totalorder %s34, 1
      %s711 = scalar_select %p710, %s34, 1
      %s712 = scalar_lea.vmem %s21, %s711
      %p713 = scmp.lt.s32.totalorder %s34, 1
      %s714 = scalar_select %p713, %s34, 1
      %s715 = scalar_lea.vmem %s22, %s714
      %v717 = vld [vmem:[%s701] sm:$0xff]
      %v718 = vld [vmem:[%s701 + $0x8] sm:$0xff]
      %v719 = vld [vmem:[%s701 + $0x10] sm:$0xff]
      %v720 = vld [vmem:[%s2] sm:$0xff]
      %v721 = vld [vmem:[%s2 + $0x8] sm:$0x3]
      %v722 = vlaneseq
      %v723 = vshrl.u32 %v722, 7
      %v724 = vadd.s32 %v723, 8
      %v725 = vadd.s32 %v723, 16
      %vm726 = vcmp.lt.s32.totalorder %v723, 0
      %v727 = vsub.s32 0, %v723
      %v728 = vsel %vm726, %v727, %v723
      %v729 = vmul.u32.u64.compose %v728, 2863311531
      %v730 = vextract.low.u32 %v729
      %v731 = vextract.high.u32 %v729
      %v732 = vshrl.u32 %v731, 1
      %v733 = vmul.u32 %v732, 3
      %v734 = vsub.s32 %v728, %v733
      %v735 = vsub.s32 0, %v734
      %v736 = vsel %vm726, %v735, %v734
      %vm737 = vcmp.lt.s32.totalorder %v724, 0
      %v738 = vsub.s32 0, %v724
      %v739 = vsel %vm737, %v738, %v724
      %v740 = vmul.u32.u64.compose %v739, 2863311531
      %v741 = vextract.low.u32 %v740
      %v742 = vextract.high.u32 %v740
      %v743 = vshrl.u32 %v742, 1
      %v744 = vmul.u32 %v743, 3
      %v745 = vsub.s32 %v739, %v744
      %v746 = vsub.s32 0, %v745
      %v747 = vsel %vm737, %v746, %v745
      %vm748 = vcmp.lt.s32.totalorder %v725, 0
      %v749 = vsub.s32 0, %v725
      %v750 = vsel %vm748, %v749, %v725
      %v751 = vmul.u32.u64.compose %v750, 2863311531
      %v752 = vextract.low.u32 %v751
      %v753 = vextract.high.u32 %v751
      %v754 = vshrl.u32 %v753, 1
      %v755 = vmul.u32 %v754, 3
      %v756 = vsub.s32 %v750, %v755
      %v757 = vsub.s32 0, %v756
      %v758 = vsel %vm748, %v757, %v756
      %vm759 = vcmp.ne.s32.totalorder %v736, 0
      %vm760 = vcmp.ne.s32.totalorder %v747, 0
      %vm761 = vcmp.ne.s32.totalorder %v758, 0
      %vm762 = vcmp.lt.s32.totalorder %v736, 0
      %vm763 = vcmp.lt.s32.totalorder %v747, 0
      %vm764 = vcmp.lt.s32.totalorder %v758, 0
      %vm765 = vmand %vm762, %vm759
      %vm766 = vmand %vm763, %vm760
      %vm767 = vmand %vm764, %vm761
      %v768 = vadd.s32 %v736, 3
      %v769 = vadd.s32 %v747, 3
      %v770 = vadd.s32 %v758, 3
      %v771 = vsel %vm765, %v768, %v736
      %v772 = vsel %vm766, %v769, %v747
      %v773 = vsel %vm767, %v770, %v758
      %vm774 = vcmp.eq.s32.totalorder %v771, 0
      %vm775 = vcmp.eq.s32.totalorder %v772, 0
      %vm776 = vcmp.eq.s32.totalorder %v773, 0
      %v777 = vld [vmem:[%s3] sm:$0x1]
      %v778 = vsel %vm774, 1, 0
      %v779 = vsel %vm775, 1, 0
      %v780 = vsel %vm776, 1, 0
      %vm781 = vcmp.eq.s32.totalorder %v778, 1
      %vm782 = vcmp.eq.s32.totalorder %v779, 1
      %vm783 = vcmp.eq.s32.totalorder %v780, 1
      %v785 = vlaneseq
      %v786 = vshrl.u32 %v785, 7
      %v787 = vsub.s32 0, %v786
      %v788 = vrot.slane %v777, %v787
      %v790 = vsel %vm781, %v788, 0.0
      %v791 = vsel %vm782, %v788, 0.0
      %v792 = vsel %vm783, %v788, 0.0
      %vm793 = vcmask 80896
      %v795 = vsel %vm793, %v717, 0
      %v798 = vsel %vm793, %v718, 0
      %v801 = vsel %vm793, %v719, 0
      %vm803 = vcmask 1041408
      %v805 = vsel %vm803, %v721, 0
      %807 = vmatprep.subr.mxu0 0.0
      %808 = vmatpush1.msra.mxu0 %v720
      %809 = vmatprep.subr.mxu0 0.0
      %810 = vmatpush1.msra.mxu0 %v805
      %811 = vmatprep.subr.mxu0 0.0
      %812 = vmatpush1.msra.mxu0 0.0
      %813 = vmatprep.subr.mxu0 0.0
      %814 = vmatpush1.msra.mxu0 0.0
      %815 = vmatprep.subr.mxu0 0.0
      %816 = vmatpush1.msra.mxu0 0.0
      %817 = vmatprep.subr.mxu0 0.0
      %818 = vmatpush1.msra.mxu0 0.0
      %819 = vmatprep.subr.mxu0 0.0
      %820 = vmatpush1.msra.mxu0 0.0
      %821 = vmatprep.subr.mxu0 0.0
      %822 = vmatpush1.msra.mxu0 0.0
      %823 = vmatprep.subr.mxu0 0.0
      %824 = vmatpush1.msra.mxu0 0.0
      %825 = vmatprep.subr.mxu0 0.0
      %826 = vmatpush1.msra.mxu0 0.0
      %827 = vmatprep.subr.mxu0 0.0
      %828 = vmatpush1.msra.mxu0 0.0
      %829 = vmatprep.subr.mxu0 0.0
      %830 = vmatpush1.msra.mxu0 0.0
      %831 = vmatprep.subr.mxu0 0.0
      %832 = vmatpush1.msra.mxu0 0.0
      %833 = vmatprep.subr.mxu0 0.0
      %834 = vmatpush1.msra.mxu0 0.0
      %835 = vmatprep.subr.mxu0 0.0
      %836 = vmatpush1.msra.mxu0 0.0
      %837 = vmatprep.subr.mxu0 0.0
      %838 = vmatpush1.msra.mxu0 0.0
      %839 = vmatprep.subr.mxu0 0.0
      %840 = vmatpush1.msra.mxu0 0.0
      %841 = vmatprep.subr.mxu0 0.0
      %842 = vmatpush1.msra.mxu0 0.0
      %843 = vmatprep.subr.mxu0 0.0
      %844 = vmatpush1.msra.mxu0 0.0
      %845 = vmatprep.subr.mxu0 0.0
      %846 = vmatpush1.msra.mxu0 0.0
      %847 = vmatprep.subr.mxu0 0.0
      %848 = vmatpush1.msra.mxu0 0.0
      %849 = vmatprep.subr.mxu0 0.0
      %850 = vmatpush1.msra.mxu0 0.0
      %851 = vmatprep.subr.mxu0 0.0
      %852 = vmatpush1.msra.mxu0 0.0
      %853 = vmatprep.subr.mxu0 0.0
      %854 = vmatpush1.msra.mxu0 0.0
      %855 = vmatprep.subr.mxu0 0.0
      %856 = vmatpush1.msra.mxu0 0.0
      %857 = vmatprep.subr.mxu0 0.0
      %858 = vmatpush1.msra.mxu0 0.0
      %859 = vmatprep.subr.mxu0 0.0
      %860 = vmatpush1.msra.mxu0 0.0
      %861 = vmatprep.subr.mxu0 0.0
      %862 = vmatpush1.msra.mxu0 0.0
      %863 = vmatprep.subr.mxu0 0.0
      %864 = vmatpush1.msra.mxu0 0.0
      %865 = vmatprep.subr.mxu0 0.0
      %866 = vmatpush1.msra.mxu0 0.0
      %867 = vmatprep.subr.mxu0 0.0
      %868 = vmatpush1.msra.mxu0 0.0
      %869 = vmatprep.subr.mxu0 0.0
      %870 = vmatpush1.msra.mxu0 0.0
      %871 = vmatprep.mubr.f32.mxu0 0.0
      %872 = vmatmul.mubr.f32.gmra.mrb[0].mxu0 %v795
      %v873 = vpop.f32.mrb[0].mxu0
      %v874 = vadd.f32 %v790, %v873
      %v875 = vpop.f32.mrb[0].mxu0
      %876 = vmatprep.mubr.f32.mxu0 0.0
      %877 = vmatmul.mubr.f32.gmra.mrb[0].mxu0 %v798
      %v878 = vpop.f32.mrb[0].mxu0
      %v879 = vadd.f32 %v791, %v878
      %v880 = vpop.f32.mrb[0].mxu0
      %881 = vmatprep.mubr.f32.mxu0 0.0
      %882 = vmatmul.mubr.f32.gmra.mrb[0].mxu0 %v801
      %v883 = vpop.f32.mrb[0].mxu0
      %v884 = vadd.f32 %v792, %v883
      %v885 = vpop.f32.mrb[0].mxu0
      %886 = vdwg.mxu0
      %vm887 = vcmp.eq.s32.totalorder %v771, 1
      %vm888 = vcmp.eq.s32.totalorder %v772, 1
      %vm889 = vcmp.eq.s32.totalorder %v773, 1
      %v890 = vld [vmem:[%s4] sm:$0x1]
      %v891 = vsel %vm887, 1, 0
      %v892 = vsel %vm888, 1, 0
      %v893 = vsel %vm889, 1, 0
      %vm894 = vcmp.eq.s32.totalorder %v891, 1
      %vm895 = vcmp.eq.s32.totalorder %v892, 1
      %vm896 = vcmp.eq.s32.totalorder %v893, 1
      %v898 = vlaneseq
      %v899 = vshrl.u32 %v898, 7
      %v900 = vsub.s32 0, %v899
      %v901 = vrot.slane %v890, %v900
      %v903 = vsel %vm894, %v901, 0.0
      %v904 = vsel %vm895, %v901, 0.0
      %v905 = vsel %vm896, %v901, 0.0
      %v906 = vadd.f32 %v874, %v903
      %v907 = vadd.f32 %v879, %v904
      %v908 = vadd.f32 %v884, %v905
      %vm909 = vcmp.eq.s32.totalorder %v771, 2
      %vm910 = vcmp.eq.s32.totalorder %v772, 2
      %vm911 = vcmp.eq.s32.totalorder %v773, 2
      %v912 = vtanh.pop %v906
      %v913 = vtanh.pop %v907
      %v914 = vtanh.pop %v908
      %v915 = vsel %vm909, 1, 0
      %v916 = vsel %vm910, 1, 0
      %v917 = vsel %vm911, 1, 0
      %vm918 = vcmp.eq.s32.totalorder %v915, 1
      %vm919 = vcmp.eq.s32.totalorder %v916, 1
      %vm920 = vcmp.eq.s32.totalorder %v917, 1
      %v921 = vsel %vm918, %v912, %v906
      %v922 = vsel %vm919, %v913, %v907
      %v923 = vsel %vm920, %v914, %v908
      %v924 = vlaneseq
      %v925 = vand.u32 %v924, 127
      %vm926 = vcmp.ge.s32.totalorder %v723, %v925
      %vm927 = vcmp.ge.s32.totalorder %v724, %v925
      %vm928 = vcmp.ge.s32.totalorder %v725, %v925
      %v929 = vld [vmem:[%s5] sm:$0x1]
      %v930 = vld [vmem:[%s6] sm:$0x1]
      %vm931 = vcmask 261120
      %v932 = vsel %vm931, %v921, 0.0
      %933 = vadd.xlane.f32.xlu0 %v932
      %v934 = vpop.xlane.xlu0 %933
      %v935 = vsel %vm931, %v922, 0.0
      %936 = vadd.xlane.f32.xlu0 %v935
      %v937 = vpop.xlane.xlu0 %936
      %v938 = vsel %vm931, %v923, 0.0
      %939 = vadd.xlane.f32.xlu0 %v938
      %v940 = vpop.xlane.xlu0 %939
      %v941 = vrcp.pop 32.0
      %v942 = vmul.f32 %v934, %v941
      %v943 = vmul.f32 %v937, %v941
      %v944 = vmul.f32 %v940, %v941
      %v945 = vsub.f32 %v921, %v942
      %v946 = vsub.f32 %v922, %v943
      %v947 = vsub.f32 %v923, %v944
      %v948 = vmul.f32 %v945, %v945
      %v949 = vmul.f32 %v946, %v946
      %v950 = vmul.f32 %v947, %v947
      %v951 = vsel %vm931, %v948, 0.0
      %952 = vadd.xlane.f32.xlu0 %v951
      %v953 = vpop.xlane.xlu0 %952
      %v954 = vsel %vm931, %v949, 0.0
      %955 = vadd.xlane.f32.xlu0 %v954
      %v956 = vpop.xlane.xlu0 %955
      %v957 = vsel %vm931, %v950, 0.0
      %958 = vadd.xlane.f32.xlu0 %v957
      %v959 = vpop.xlane.xlu0 %958
      %v960 = vmul.f32 %v953, %v941
      %v961 = vmul.f32 %v956, %v941
      %v962 = vmul.f32 %v959, %v941
      %v963 = vadd.f32 %v960, 1e-05
      %v964 = vadd.f32 %v961, 1e-05
      %v965 = vadd.f32 %v962, 1e-05
      %v966 = vrsqrt.pop %v963
      %v967 = vrsqrt.pop %v964
      %v968 = vrsqrt.pop %v965
      %v969 = vmul.f32 %v945, %v966
      %v970 = vmul.f32 %v946, %v967
      %v971 = vmul.f32 %v947, %v968
      %v973 = vlaneseq
      %v974 = vshrl.u32 %v973, 7
      %v975 = vsub.s32 0, %v974
      %v976 = vrot.slane %v929, %v975
      %v978 = vmul.f32 %v969, %v976
      %v979 = vmul.f32 %v970, %v976
      %v980 = vmul.f32 %v971, %v976
      %v982 = vlaneseq
      %v983 = vshrl.u32 %v982, 7
      %v984 = vsub.s32 0, %v983
      %v985 = vrot.slane %v930, %v984
      %v987 = vadd.f32 %v978, %v985
      %v988 = vadd.f32 %v979, %v985
      %v989 = vadd.f32 %v980, %v985
      %v990 = vpack.c.bf16 %v988, %v987
      %v991 = vpack.c.bf16 %v989, %v989
      %v992 = vld [vmem:[%s7] sm:$0xf]
      %v993 = vld [vmem:[%s7 + $0x4] sm:$0xf]
      %v994 = vld [vmem:[%s7 + $0x8] sm:$0xf]
      %v995 = vld [vmem:[%s7 + $0xc] sm:$0xf]
      %v996 = vld [vmem:[%s8] sm:$0x1]
      %v998 = vlaneseq
      %v999 = vshrl.u32 %v998, 7
      %v1000 = vsub.s32 0, %v999
      %v1001 = vrot.slane %v996, %v1000
      %v1007 = vunpack.c.l.b16 %v992
      %v1008 = vunpack.c.l.b16 %v993
      %v1009 = vunpack.c.l.b16 %v994
      %v1010 = vunpack.c.l.b16 %v995
      %v1011 = vpack.c.b16 %v1008, %v1007
      %v1012 = vpack.c.b16 %v1010, %v1009
      %v1016 = vsel %vm931, %v990, 0
      %v1019 = vsel %vm931, %v991, 0
      %1021 = vmatprep.subr.bf16.mxu0 0
      %1022 = vmatpush1.bf16.msra.mxu0 %v1011
      %1023 = vmatprep.subr.bf16.mxu0 0
      %1024 = vmatpush1.bf16.msra.mxu0 %v1012
      %1025 = vmatprep.subr.bf16.mxu0 0
      %1026 = vmatpush1.bf16.msra.mxu0 0
      %1027 = vmatprep.subr.bf16.mxu0 0
      %1028 = vmatpush1.bf16.msra.mxu0 0
      %1029 = vmatprep.subr.bf16.mxu0 0
      %1030 = vmatpush1.bf16.msra.mxu0 0
      %1031 = vmatprep.subr.bf16.mxu0 0
      %1032 = vmatpush1.bf16.msra.mxu0 0
      %1033 = vmatprep.subr.bf16.mxu0 0
      %1034 = vmatpush1.bf16.msra.mxu0 0
      %1035 = vmatprep.subr.bf16.mxu0 0
      %1036 = vmatpush1.bf16.msra.mxu0 0
      %1037 = vmatprep.subr.bf16.mxu0 0
      %1038 = vmatpush1.bf16.msra.mxu0 0
      %1039 = vmatprep.subr.bf16.mxu0 0
      %1040 = vmatpush1.bf16.msra.mxu0 0
      %1041 = vmatprep.subr.bf16.mxu0 0
      %1042 = vmatpush1.bf16.msra.mxu0 0
      %1043 = vmatprep.subr.bf16.mxu0 0
      %1044 = vmatpush1.bf16.msra.mxu0 0
      %1045 = vmatprep.subr.bf16.mxu0 0
      %1046 = vmatpush1.bf16.msra.mxu0 0
      %1047 = vmatprep.subr.bf16.mxu0 0
      %1048 = vmatpush1.bf16.msra.mxu0 0
      %1049 = vmatprep.subr.bf16.mxu0 0
      %1050 = vmatpush1.bf16.msra.mxu0 0
      %1051 = vmatprep.subr.bf16.mxu0 0
      %1052 = vmatpush1.bf16.msra.mxu0 0
      %1053 = vmatprep.mubr.bf16.mxu0 0
      %1054 = vmatmul.mubr.bf16.gmra.mrb[0].mxu0 %v1016
      %v1055 = vpop.f32.mrb[0].mxu0
      %v1056 = vadd.f32 %v1001, %v1055
      %v1057 = vpop.f32.mrb[0].mxu0
      %v1058 = vpop.f32.mrb[0].mxu0
      %v1059 = vadd.f32 %v1001, %v1058
      %v1060 = vpop.f32.mrb[0].mxu0
      %1061 = vmatprep.mubr.bf16.mxu0 0
      %1062 = vmatmul.mubr.bf16.gmra.mrb[0].mxu0 %v1019
      %v1063 = vpop.f32.mrb[0].mxu0
      %v1064 = vadd.f32 %v1001, %v1063
      %v1065 = vpop.f32.mrb[0].mxu0
      %v1066 = vpop.f32.mrb[0].mxu0
      %v1067 = vpop.f32.mrb[0].mxu0
      %1068 = vdwg.mxu0
      %v1069 = vld [vmem:[%s9] sm:$0xf]
      %v1070 = vld [vmem:[%s9 + $0x4] sm:$0xf]
      %v1071 = vld [vmem:[%s9 + $0x8] sm:$0xf]
      %v1072 = vld [vmem:[%s9 + $0xc] sm:$0xf]
      %1076 = vrot.lane.b32.xlu0 %v1056, 96
      %v1077 = vpop.permute.xlu0 %1076
      %1078 = vrot.lane.b32.xlu0 %v1059, 96
      %v1079 = vpop.permute.xlu0 %1078
      %1080 = vrot.lane.b32.xlu0 %v1064, 96
      %v1081 = vpop.permute.xlu0 %1080
      %vm1082 = vcmask 64512
      %v1083 = vsel %vm1082, %v1056, 0
      %v1085 = vsel %vm1082, %v1059, 0
      %v1087 = vsel %vm1082, %v1064, 0
      %v1089 = vsel %vm1082, %v1077, 0
      %v1091 = vsel %vm1082, %v1079, 0
      %v1093 = vsel %vm1082, %v1081, 0
      %1095 = vmatprep.subr.mxu0 0.0
      %1096 = vmatpush1.xpose.msra.mxu0 %v1089
      %1097 = vmatprep.subr.mxu0 0.0
      %1098 = vmatpush1.xpose.msra.mxu0 %v1091
      %1099 = vmatprep.subr.mxu0 0.0
      %1100 = vmatpush1.xpose.msra.mxu0 %v1093
      %1101 = vmatprep.subr.mxu0 0.0
      %1102 = vmatpush1.xpose.msra.mxu0 0.0
      %1103 = vmatprep.subr.mxu0 0.0
      %1104 = vmatpush1.xpose.msra.mxu0 0.0
      %1105 = vmatprep.subr.mxu0 0.0
      %1106 = vmatpush1.xpose.msra.mxu0 0.0
      %1107 = vmatprep.subr.mxu0 0.0
      %1108 = vmatpush1.xpose.msra.mxu0 0.0
      %1109 = vmatprep.subr.mxu0 0.0
      %1110 = vmatpush1.xpose.msra.mxu0 0.0
      %1111 = vmatprep.subr.mxu0 0.0
      %1112 = vmatpush1.xpose.msra.mxu0 0.0
      %1113 = vmatprep.subr.mxu0 0.0
      %1114 = vmatpush1.xpose.msra.mxu0 0.0
      %1115 = vmatprep.subr.mxu0 0.0
      %1116 = vmatpush1.xpose.msra.mxu0 0.0
      %1117 = vmatprep.subr.mxu0 0.0
      %1118 = vmatpush1.xpose.msra.mxu0 0.0
      %1119 = vmatprep.subr.mxu0 0.0
      %1120 = vmatpush1.xpose.msra.mxu0 0.0
      %1121 = vmatprep.subr.mxu0 0.0
      %1122 = vmatpush1.xpose.msra.mxu0 0.0
      %1123 = vmatprep.subr.mxu0 0.0
      %1124 = vmatpush1.xpose.msra.mxu0 0.0
      %1125 = vmatprep.subr.mxu0 0.0
      %1126 = vmatpush1.xpose.msra.mxu0 0.0
      %1127 = vmatprep.subr.mxu0 0.0
      %1128 = vmatpush1.xpose.msra.mxu0 0.0
      %1129 = vmatprep.subr.mxu0 0.0
      %1130 = vmatpush1.xpose.msra.mxu0 0.0
      %1131 = vmatprep.subr.mxu0 0.0
      %1132 = vmatpush1.xpose.msra.mxu0 0.0
      %1133 = vmatprep.subr.mxu0 0.0
      %1134 = vmatpush1.xpose.msra.mxu0 0.0
      %1135 = vmatprep.subr.mxu0 0.0
      %1136 = vmatpush1.xpose.msra.mxu0 0.0
      %1137 = vmatprep.subr.mxu0 0.0
      %1138 = vmatpush1.xpose.msra.mxu0 0.0
      %1139 = vmatprep.subr.mxu0 0.0
      %1140 = vmatpush1.xpose.msra.mxu0 0.0
      %1141 = vmatprep.subr.mxu0 0.0
      %1142 = vmatpush1.xpose.msra.mxu0 0.0
      %1143 = vmatprep.subr.mxu0 0.0
      %1144 = vmatpush1.xpose.msra.mxu0 0.0
      %1145 = vmatprep.subr.mxu0 0.0
      %1146 = vmatpush1.xpose.msra.mxu0 0.0
      %1147 = vmatprep.subr.mxu0 0.0
      %1148 = vmatpush1.xpose.msra.mxu0 0.0
      %1149 = vmatprep.subr.mxu0 0.0
      %1150 = vmatpush1.xpose.msra.mxu0 0.0
      %1151 = vmatprep.subr.mxu0 0.0
      %1152 = vmatpush1.xpose.msra.mxu0 0.0
      %1153 = vmatprep.subr.mxu0 0.0
      %1154 = vmatpush1.xpose.msra.mxu0 0.0
      %1155 = vmatprep.subr.mxu0 0.0
      %1156 = vmatpush1.xpose.msra.mxu0 0.0
      %1157 = vmatprep.subr.mxu0 0.0
      %1158 = vmatpush1.xpose.msra.mxu0 0.0
      %1159 = vmatprep.mubr.f32.mxu0 0.0
      %1160 = vmatmul.mubr.f32.gmra.mrb[0].mxu0 %v1083
      %v1161 = vpop.f32.mrb[0].mxu0
      %v1162 = vadd.f32 0.0, %v1161
      %v1163 = vpop.f32.mrb[0].mxu0
      %1164 = vmatprep.mubr.f32.mxu0 0.0
      %1165 = vmatmul.mubr.f32.gmra.mrb[0].mxu0 %v1085
      %v1166 = vpop.f32.mrb[0].mxu0
      %v1167 = vadd.f32 0.0, %v1166
      %v1168 = vpop.f32.mrb[0].mxu0
      %1169 = vmatprep.mubr.f32.mxu0 0.0
      %1170 = vmatmul.mubr.f32.gmra.mrb[0].mxu0 %v1087
      %v1171 = vpop.f32.mrb[0].mxu0
      %v1172 = vadd.f32 0.0, %v1171
      %v1173 = vpop.f32.mrb[0].mxu0
      %1174 = vdwg.mxu0
      %v1175 = vmul.f32 %v1162, 0.35355338
      %v1176 = vmul.f32 %v1167, 0.35355338
      %v1177 = vmul.f32 %v1172, 0.35355338
      %v1178 = vsel %vm926, %v1175, -1e+30
      %v1179 = vsel %vm927, %v1176, -1e+30
      %v1180 = vsel %vm928, %v1177, -1e+30
      %vm1181 = vcmask 195584
      %v1182 = vsel %vm1181, %v1178, -inf
      %1183 = vmax.xlane.f32.xlu0 %v1182
      %v1184 = vpop.xlane.xlu0 %1183
      %v1185 = vsel %vm1181, %v1179, -inf
      %1186 = vmax.xlane.f32.xlu0 %v1185
      %v1187 = vpop.xlane.xlu0 %1186
      %v1188 = vsel %vm1181, %v1180, -inf
      %1189 = vmax.xlane.f32.xlu0 %v1188
      %v1190 = vpop.xlane.xlu0 %1189
      %v1191 = vsub.f32 %v1178, %v1184
      %v1192 = vsub.f32 %v1179, %v1187
      %v1193 = vsub.f32 %v1180, %v1190
      %v1194 = vmul.f32 %v1191, 1.442695
      %v1195 = vpow.pop %v1194
      %v1196 = vmul.f32 %v1192, 1.442695
      %v1197 = vpow.pop %v1196
      %v1198 = vmul.f32 %v1193, 1.442695
      %v1199 = vpow.pop %v1198
      %v1200 = vsel %vm1181, %v1195, 0.0
      %1201 = vadd.xlane.f32.xlu0 %v1200
      %v1202 = vpop.xlane.xlu0 %1201
      %v1203 = vsel %vm1181, %v1197, 0.0
      %1204 = vadd.xlane.f32.xlu0 %v1203
      %v1205 = vpop.xlane.xlu0 %1204
      %v1206 = vsel %vm1181, %v1199, 0.0
      %1207 = vadd.xlane.f32.xlu0 %v1206
      %v1208 = vpop.xlane.xlu0 %1207
      %v1209 = vrcp.pop %v1202
      %v1210 = vrcp.pop %v1205
      %v1211 = vrcp.pop %v1208
      %v1212 = vmul.f32 %v1195, %v1209
      %v1213 = vmul.f32 %v1197, %v1210
      %v1214 = vmul.f32 %v1199, %v1211
      %1215 = vrot.lane.b32.xlu0 %v1056, 64
      %v1216 = vpop.permute.xlu0 %1215
      %1217 = vrot.lane.b32.xlu0 %v1059, 64
      %v1218 = vpop.permute.xlu0 %1217
      %1219 = vrot.lane.b32.xlu0 %v1064, 64
      %v1220 = vpop.permute.xlu0 %1219
      %v1225 = vsel %vm1181, %v1212, 0
      %v1228 = vsel %vm1181, %v1213, 0
      %v1231 = vsel %vm1181, %v1214, 0
      %1233 = vmatprep.subr.mxu0 0.0
      %1234 = vmatpush1.msra.mxu0 %v1216
      %1235 = vmatprep.subr.mxu0 0.0
      %1236 = vmatpush1.msra.mxu0 %v1218
      %1237 = vmatprep.subr.mxu0 0.0
      %1238 = vmatpush1.msra.mxu0 %v1220
      %1239 = vmatprep.subr.mxu0 0.0
      %1240 = vmatpush1.msra.mxu0 0.0
      %1241 = vmatprep.subr.mxu0 0.0
      %1242 = vmatpush1.msra.mxu0 0.0
      %1243 = vmatprep.subr.mxu0 0.0
      %1244 = vmatpush1.msra.mxu0 0.0
      %1245 = vmatprep.subr.mxu0 0.0
      %1246 = vmatpush1.msra.mxu0 0.0
      %1247 = vmatprep.subr.mxu0 0.0
      %1248 = vmatpush1.msra.mxu0 0.0
      %1249 = vmatprep.subr.mxu0 0.0
      %1250 = vmatpush1.msra.mxu0 0.0
      %1251 = vmatprep.subr.mxu0 0.0
      %1252 = vmatpush1.msra.mxu0 0.0
      %1253 = vmatprep.subr.mxu0 0.0
      %1254 = vmatpush1.msra.mxu0 0.0
      %1255 = vmatprep.subr.mxu0 0.0
      %1256 = vmatpush1.msra.mxu0 0.0
      %1257 = vmatprep.subr.mxu0 0.0
      %1258 = vmatpush1.msra.mxu0 0.0
      %1259 = vmatprep.subr.mxu0 0.0
      %1260 = vmatpush1.msra.mxu0 0.0
      %1261 = vmatprep.subr.mxu0 0.0
      %1262 = vmatpush1.msra.mxu0 0.0
      %1263 = vmatprep.subr.mxu0 0.0
      %1264 = vmatpush1.msra.mxu0 0.0
      %1265 = vmatprep.subr.mxu0 0.0
      %1266 = vmatpush1.msra.mxu0 0.0
      %1267 = vmatprep.subr.mxu0 0.0
      %1268 = vmatpush1.msra.mxu0 0.0
      %1269 = vmatprep.subr.mxu0 0.0
      %1270 = vmatpush1.msra.mxu0 0.0
      %1271 = vmatprep.subr.mxu0 0.0
      %1272 = vmatpush1.msra.mxu0 0.0
      %1273 = vmatprep.subr.mxu0 0.0
      %1274 = vmatpush1.msra.mxu0 0.0
      %1275 = vmatprep.subr.mxu0 0.0
      %1276 = vmatpush1.msra.mxu0 0.0
      %1277 = vmatprep.subr.mxu0 0.0
      %1278 = vmatpush1.msra.mxu0 0.0
      %1279 = vmatprep.subr.mxu0 0.0
      %1280 = vmatpush1.msra.mxu0 0.0
      %1281 = vmatprep.subr.mxu0 0.0
      %1282 = vmatpush1.msra.mxu0 0.0
      %1283 = vmatprep.subr.mxu0 0.0
      %1284 = vmatpush1.msra.mxu0 0.0
      %1285 = vmatprep.subr.mxu0 0.0
      %1286 = vmatpush1.msra.mxu0 0.0
      %1287 = vmatprep.subr.mxu0 0.0
      %1288 = vmatpush1.msra.mxu0 0.0
      %1289 = vmatprep.subr.mxu0 0.0
      %1290 = vmatpush1.msra.mxu0 0.0
      %1291 = vmatprep.subr.mxu0 0.0
      %1292 = vmatpush1.msra.mxu0 0.0
      %1293 = vmatprep.subr.mxu0 0.0
      %1294 = vmatpush1.msra.mxu0 0.0
      %1295 = vmatprep.subr.mxu0 0.0
      %1296 = vmatpush1.msra.mxu0 0.0
      %1297 = vmatprep.mubr.f32.mxu0 0.0
      %1298 = vmatmul.mubr.f32.gmra.mrb[0].mxu0 %v1225
      %v1299 = vpop.f32.mrb[0].mxu0
      %v1300 = vadd.f32 0.0, %v1299
      %v1301 = vpop.f32.mrb[0].mxu0
      %1302 = vmatprep.mubr.f32.mxu0 0.0
      %1303 = vmatmul.mubr.f32.gmra.mrb[0].mxu0 %v1228
      %v1304 = vpop.f32.mrb[0].mxu0
      %v1305 = vadd.f32 0.0, %v1304
      %v1306 = vpop.f32.mrb[0].mxu0
      %1307 = vmatprep.mubr.f32.mxu0 0.0
      %1308 = vmatmul.mubr.f32.gmra.mrb[0].mxu0 %v1231
      %v1309 = vpop.f32.mrb[0].mxu0
      %v1310 = vadd.f32 0.0, %v1309
      %v1311 = vpop.f32.mrb[0].mxu0
      %1312 = vdwg.mxu0
      %v1313 = vpack.c.bf16 %v1305, %v1300
      %v1314 = vpack.c.bf16 %v1310, %v1310
      %1315 = vrot.lane.b32.xlu0 %v1056, 120
      %v1316 = vpop.permute.xlu0 %1315
      %1317 = vrot.lane.b32.xlu0 %v1059, 120
      %v1318 = vpop.permute.xlu0 %1317
      %1319 = vrot.lane.b32.xlu0 %v1064, 120
      %v1320 = vpop.permute.xlu0 %1319
      %1321 = vrot.lane.b32.xlu0 %v1056, 88
      %v1322 = vpop.permute.xlu0 %1321
      %1323 = vrot.lane.b32.xlu0 %v1059, 88
      %v1324 = vpop.permute.xlu0 %1323
      %1325 = vrot.lane.b32.xlu0 %v1064, 88
      %v1326 = vpop.permute.xlu0 %1325
      %v1327 = vsel %vm1082, %v1316, 0
      %v1329 = vsel %vm1082, %v1318, 0
      %v1331 = vsel %vm1082, %v1320, 0
      %v1333 = vsel %vm1082, %v1322, 0
      %v1335 = vsel %vm1082, %v1324, 0
      %v1337 = vsel %vm1082, %v1326, 0
      %1339 = vmatprep.subr.mxu0 0.0
      %1340 = vmatpush1.xpose.msra.mxu0 %v1333
      %1341 = vmatprep.subr.mxu0 0.0
      %1342 = vmatpush1.xpose.msra.mxu0 %v1335
      %1343 = vmatprep.subr.mxu0 0.0
      %1344 = vmatpush1.xpose.msra.mxu0 %v1337
      %1345 = vmatprep.subr.mxu0 0.0
      %1346 = vmatpush1.xpose.msra.mxu0 0.0
      %1347 = vmatprep.subr.mxu0 0.0
      %1348 = vmatpush1.xpose.msra.mxu0 0.0
      %1349 = vmatprep.subr.mxu0 0.0
      %1350 = vmatpush1.xpose.msra.mxu0 0.0
      %1351 = vmatprep.subr.mxu0 0.0
      %1352 = vmatpush1.xpose.msra.mxu0 0.0
      %1353 = vmatprep.subr.mxu0 0.0
      %1354 = vmatpush1.xpose.msra.mxu0 0.0
      %1355 = vmatprep.subr.mxu0 0.0
      %1356 = vmatpush1.xpose.msra.mxu0 0.0
      %1357 = vmatprep.subr.mxu0 0.0
      %1358 = vmatpush1.xpose.msra.mxu0 0.0
      %1359 = vmatprep.subr.mxu0 0.0
      %1360 = vmatpush1.xpose.msra.mxu0 0.0
      %1361 = vmatprep.subr.mxu0 0.0
      %1362 = vmatpush1.xpose.msra.mxu0 0.0
      %1363 = vmatprep.subr.mxu0 0.0
      %1364 = vmatpush1.xpose.msra.mxu0 0.0
      %1365 = vmatprep.subr.mxu0 0.0
      %1366 = vmatpush1.xpose.msra.mxu0 0.0
      %1367 = vmatprep.subr.mxu0 0.0
      %1368 = vmatpush1.xpose.msra.mxu0 0.0
      %1369 = vmatprep.subr.mxu0 0.0
      %1370 = vmatpush1.xpose.msra.mxu0 0.0
      %1371 = vmatprep.subr.mxu0 0.0
      %1372 = vmatpush1.xpose.msra.mxu0 0.0
      %1373 = vmatprep.subr.mxu0 0.0
      %1374 = vmatpush1.xpose.msra.mxu0 0.0
      %1375 = vmatprep.subr.mxu0 0.0
      %1376 = vmatpush1.xpose.msra.mxu0 0.0
      %1377 = vmatprep.subr.mxu0 0.0
      %1378 = vmatpush1.xpose.msra.mxu0 0.0
      %1379 = vmatprep.subr.mxu0 0.0
      %1380 = vmatpush1.xpose.msra.mxu0 0.0
      %1381 = vmatprep.subr.mxu0 0.0
      %1382 = vmatpush1.xpose.msra.mxu0 0.0
      %1383 = vmatprep.subr.mxu0 0.0
      %1384 = vmatpush1.xpose.msra.mxu0 0.0
      %1385 = vmatprep.subr.mxu0 0.0
      %1386 = vmatpush1.xpose.msra.mxu0 0.0
      %1387 = vmatprep.subr.mxu0 0.0
      %1388 = vmatpush1.xpose.msra.mxu0 0.0
      %1389 = vmatprep.subr.mxu0 0.0
      %1390 = vmatpush1.xpose.msra.mxu0 0.0
      %1391 = vmatprep.subr.mxu0 0.0
      %1392 = vmatpush1.xpose.msra.mxu0 0.0
      %1393 = vmatprep.subr.mxu0 0.0
      %1394 = vmatpush1.xpose.msra.mxu0 0.0
      %1395 = vmatprep.subr.mxu0 0.0
      %1396 = vmatpush1.xpose.msra.mxu0 0.0
      %1397 = vmatprep.subr.mxu0 0.0
      %1398 = vmatpush1.xpose.msra.mxu0 0.0
      %1399 = vmatprep.subr.mxu0 0.0
      %1400 = vmatpush1.xpose.msra.mxu0 0.0
      %1401 = vmatprep.subr.mxu0 0.0
      %1402 = vmatpush1.xpose.msra.mxu0 0.0
      %1403 = vmatprep.mubr.f32.mxu0 0.0
      %1404 = vmatmul.mubr.f32.gmra.mrb[0].mxu0 %v1327
      %v1405 = vpop.f32.mrb[0].mxu0
      %v1406 = vadd.f32 0.0, %v1405
      %v1407 = vpop.f32.mrb[0].mxu0
      %1408 = vmatprep.mubr.f32.mxu0 0.0
      %1409 = vmatmul.mubr.f32.gmra.mrb[0].mxu0 %v1329
      %v1410 = vpop.f32.mrb[0].mxu0
      %v1411 = vadd.f32 0.0, %v1410
      %v1412 = vpop.f32.mrb[0].mxu0
      %1413 = vmatprep.mubr.f32.mxu0 0.0
      %1414 = vmatmul.mubr.f32.gmra.mrb[0].mxu0 %v1331
      %v1415 = vpop.f32.mrb[0].mxu0
      %v1416 = vadd.f32 0.0, %v1415
      %v1417 = vpop.f32.mrb[0].mxu0
      %1418 = vdwg.mxu0
      %v1419 = vmul.f32 %v1406, 0.35355338
      %v1420 = vmul.f32 %v1411, 0.35355338
      %v1421 = vmul.f32 %v1416, 0.35355338
      %v1422 = vsel %vm926, %v1419, -1e+30
      %v1423 = vsel %vm927, %v1420, -1e+30
      %v1424 = vsel %vm928, %v1421, -1e+30
      %v1425 = vsel %vm1181, %v1422, -inf
      %1426 = vmax.xlane.f32.xlu0 %v1425
      %v1427 = vpop.xlane.xlu0 %1426
      %v1428 = vsel %vm1181, %v1423, -inf
      %1429 = vmax.xlane.f32.xlu0 %v1428
      %v1430 = vpop.xlane.xlu0 %1429
      %v1431 = vsel %vm1181, %v1424, -inf
      %1432 = vmax.xlane.f32.xlu0 %v1431
      %v1433 = vpop.xlane.xlu0 %1432
      %v1434 = vsub.f32 %v1422, %v1427
      %v1435 = vsub.f32 %v1423, %v1430
      %v1436 = vsub.f32 %v1424, %v1433
      %v1437 = vmul.f32 %v1434, 1.442695
      %v1438 = vpow.pop %v1437
      %v1439 = vmul.f32 %v1435, 1.442695
      %v1440 = vpow.pop %v1439
      %v1441 = vmul.f32 %v1436, 1.442695
      %v1442 = vpow.pop %v1441
      %v1443 = vsel %vm1181, %v1438, 0.0
      %1444 = vadd.xlane.f32.xlu0 %v1443
      %v1445 = vpop.xlane.xlu0 %1444
      %v1446 = vsel %vm1181, %v1440, 0.0
      %1447 = vadd.xlane.f32.xlu0 %v1446
      %v1448 = vpop.xlane.xlu0 %1447
      %v1449 = vsel %vm1181, %v1442, 0.0
      %1450 = vadd.xlane.f32.xlu0 %v1449
      %v1451 = vpop.xlane.xlu0 %1450
      %v1452 = vrcp.pop %v1445
      %v1453 = vrcp.pop %v1448
      %v1454 = vrcp.pop %v1451
      %v1455 = vmul.f32 %v1438, %v1452
      %v1456 = vmul.f32 %v1440, %v1453
      %v1457 = vmul.f32 %v1442, %v1454
      %1458 = vrot.lane.b32.xlu0 %v1056, 56
      %v1459 = vpop.permute.xlu0 %1458
      %1460 = vrot.lane.b32.xlu0 %v1059, 56
      %v1461 = vpop.permute.xlu0 %1460
      %1462 = vrot.lane.b32.xlu0 %v1064, 56
      %v1463 = vpop.permute.xlu0 %1462
      %v1468 = vsel %vm1181, %v1455, 0
      %v1471 = vsel %vm1181, %v1456, 0
      %v1474 = vsel %vm1181, %v1457, 0
      %1476 = vmatprep.subr.mxu0 0.0
      %1477 = vmatpush1.msra.mxu0 %v1459
      %1478 = vmatprep.subr.mxu0 0.0
      %1479 = vmatpush1.msra.mxu0 %v1461
      %1480 = vmatprep.subr.mxu0 0.0
      %1481 = vmatpush1.msra.mxu0 %v1463
      %1482 = vmatprep.subr.mxu0 0.0
      %1483 = vmatpush1.msra.mxu0 0.0
      %1484 = vmatprep.subr.mxu0 0.0
      %1485 = vmatpush1.msra.mxu0 0.0
      %1486 = vmatprep.subr.mxu0 0.0
      %1487 = vmatpush1.msra.mxu0 0.0
      %1488 = vmatprep.subr.mxu0 0.0
      %1489 = vmatpush1.msra.mxu0 0.0
      %1490 = vmatprep.subr.mxu0 0.0
      %1491 = vmatpush1.msra.mxu0 0.0
      %1492 = vmatprep.subr.mxu0 0.0
      %1493 = vmatpush1.msra.mxu0 0.0
      %1494 = vmatprep.subr.mxu0 0.0
      %1495 = vmatpush1.msra.mxu0 0.0
      %1496 = vmatprep.subr.mxu0 0.0
      %1497 = vmatpush1.msra.mxu0 0.0
      %1498 = vmatprep.subr.mxu0 0.0
      %1499 = vmatpush1.msra.mxu0 0.0
      %1500 = vmatprep.subr.mxu0 0.0
      %1501 = vmatpush1.msra.mxu0 0.0
      %1502 = vmatprep.subr.mxu0 0.0
      %1503 = vmatpush1.msra.mxu0 0.0
      %1504 = vmatprep.subr.mxu0 0.0
      %1505 = vmatpush1.msra.mxu0 0.0
      %1506 = vmatprep.subr.mxu0 0.0
      %1507 = vmatpush1.msra.mxu0 0.0
      %1508 = vmatprep.subr.mxu0 0.0
      %1509 = vmatpush1.msra.mxu0 0.0
      %1510 = vmatprep.subr.mxu0 0.0
      %1511 = vmatpush1.msra.mxu0 0.0
      %1512 = vmatprep.subr.mxu0 0.0
      %1513 = vmatpush1.msra.mxu0 0.0
      %1514 = vmatprep.subr.mxu0 0.0
      %1515 = vmatpush1.msra.mxu0 0.0
      %1516 = vmatprep.subr.mxu0 0.0
      %1517 = vmatpush1.msra.mxu0 0.0
      %1518 = vmatprep.subr.mxu0 0.0
      %1519 = vmatpush1.msra.mxu0 0.0
      %1520 = vmatprep.subr.mxu0 0.0
      %1521 = vmatpush1.msra.mxu0 0.0
      %1522 = vmatprep.subr.mxu0 0.0
      %1523 = vmatpush1.msra.mxu0 0.0
      %1524 = vmatprep.subr.mxu0 0.0
      %1525 = vmatpush1.msra.mxu0 0.0
      %1526 = vmatprep.subr.mxu0 0.0
      %1527 = vmatpush1.msra.mxu0 0.0
      %1528 = vmatprep.subr.mxu0 0.0
      %1529 = vmatpush1.msra.mxu0 0.0
      %1530 = vmatprep.subr.mxu0 0.0
      %1531 = vmatpush1.msra.mxu0 0.0
      %1532 = vmatprep.subr.mxu0 0.0
      %1533 = vmatpush1.msra.mxu0 0.0
      %1534 = vmatprep.subr.mxu0 0.0
      %1535 = vmatpush1.msra.mxu0 0.0
      %1536 = vmatprep.subr.mxu0 0.0
      %1537 = vmatpush1.msra.mxu0 0.0
      %1538 = vmatprep.subr.mxu0 0.0
      %1539 = vmatpush1.msra.mxu0 0.0
      %1540 = vmatprep.mubr.f32.mxu0 0.0
      %1541 = vmatmul.mubr.f32.gmra.mrb[0].mxu0 %v1468
      %v1542 = vpop.f32.mrb[0].mxu0
      %v1543 = vadd.f32 0.0, %v1542
      %v1544 = vpop.f32.mrb[0].mxu0
      %1545 = vmatprep.mubr.f32.mxu0 0.0
      %1546 = vmatmul.mubr.f32.gmra.mrb[0].mxu0 %v1471
      %v1547 = vpop.f32.mrb[0].mxu0
      %v1548 = vadd.f32 0.0, %v1547
      %v1549 = vpop.f32.mrb[0].mxu0
      %1550 = vmatprep.mubr.f32.mxu0 0.0
      %1551 = vmatmul.mubr.f32.gmra.mrb[0].mxu0 %v1474
      %v1552 = vpop.f32.mrb[0].mxu0
      %v1553 = vadd.f32 0.0, %v1552
      %v1554 = vpop.f32.mrb[0].mxu0
      %1555 = vdwg.mxu0
      %v1556 = vpack.c.bf16 %v1548, %v1543
      %v1557 = vpack.c.bf16 %v1553, %v1553
      %v1559 = vsel %vm1082, %v1556, 0
      %v1562 = vsel %vm1082, %v1557, 0
      %vm1564 = vcmask 1043456
      %v1566 = vsel %vm1564, %v1070, 0
      %1568 = vmatprep.subr.bf16.mxu0 0
      %1569 = vmatpush1.bf16.msra.mxu0 %v1566
      %1570 = vmatprep.subr.bf16.mxu0 0
      %1571 = vmatpush1.bf16.msra.mxu0 0
      %1572 = vmatprep.subr.bf16.mxu0 0
      %1573 = vmatpush1.bf16.msra.mxu0 0
      %1574 = vmatprep.subr.bf16.mxu0 0
      %1575 = vmatpush1.bf16.msra.mxu0 0
      %1576 = vmatprep.subr.bf16.mxu0 0
      %1577 = vmatpush1.bf16.msra.mxu0 0
      %1578 = vmatprep.subr.bf16.mxu0 0
      %1579 = vmatpush1.bf16.msra.mxu0 0
      %1580 = vmatprep.subr.bf16.mxu0 0
      %1581 = vmatpush1.bf16.msra.mxu0 0
      %1582 = vmatprep.subr.bf16.mxu0 0
      %1583 = vmatpush1.bf16.msra.mxu0 0
      %1584 = vmatprep.subr.bf16.mxu0 0
      %1585 = vmatpush1.bf16.msra.mxu0 0
      %1586 = vmatprep.subr.bf16.mxu0 0
      %1587 = vmatpush1.bf16.msra.mxu0 0
      %1588 = vmatprep.subr.bf16.mxu0 0
      %1589 = vmatpush1.bf16.msra.mxu0 0
      %1590 = vmatprep.subr.bf16.mxu0 0
      %1591 = vmatpush1.bf16.msra.mxu0 0
      %1592 = vmatprep.subr.bf16.mxu0 0
      %1593 = vmatpush1.bf16.msra.mxu0 0
      %1594 = vmatprep.subr.bf16.mxu0 0
      %1595 = vmatpush1.bf16.msra.mxu0 0
      %1596 = vmatprep.subr.bf16.mxu0 0
      %1597 = vmatpush1.bf16.msra.mxu0 0
      %1598 = vmatprep.subr.bf16.mxu0 0
      %1599 = vmatpush1.bf16.msra.mxu0 0
      %1600 = vmatprep.mubr.bf16.mxu0 0
      %1601 = vmatmul.mubr.bf16.gmra.mrb[0].mxu0 %v1559
      %v1602 = vpop.f32.mrb[0].mxu0
      %v1603 = vadd.f32 0.0, %v1602
      %v1604 = vpop.f32.mrb[0].mxu0
      %v1605 = vpop.f32.mrb[0].mxu0
      %v1606 = vadd.f32 0.0, %v1605
      %v1607 = vpop.f32.mrb[0].mxu0
      %1608 = vmatprep.mubr.bf16.mxu0 0
      %1609 = vmatmul.mubr.bf16.gmra.mrb[0].mxu0 %v1562
      %v1610 = vpop.f32.mrb[0].mxu0
      %v1611 = vadd.f32 0.0, %v1610
      %v1612 = vpop.f32.mrb[0].mxu0
      %v1613 = vpop.f32.mrb[0].mxu0
      %v1614 = vpop.f32.mrb[0].mxu0
      %1615 = vdwg.mxu0
      %v1617 = vsel %vm1082, %v1313, 0
      %v1620 = vsel %vm1082, %v1314, 0
      %v1623 = vsel %vm1564, %v1069, 0
      %1625 = vmatprep.subr.bf16.mxu0 0
      %1626 = vmatpush1.bf16.msra.mxu0 %v1623
      %1627 = vmatprep.subr.bf16.mxu0 0
      %1628 = vmatpush1.bf16.msra.mxu0 0
      %1629 = vmatprep.subr.bf16.mxu0 0
      %1630 = vmatpush1.bf16.msra.mxu0 0
      %1631 = vmatprep.subr.bf16.mxu0 0
      %1632 = vmatpush1.bf16.msra.mxu0 0
      %1633 = vmatprep.subr.bf16.mxu0 0
      %1634 = vmatpush1.bf16.msra.mxu0 0
      %1635 = vmatprep.subr.bf16.mxu0 0
      %1636 = vmatpush1.bf16.msra.mxu0 0
      %1637 = vmatprep.subr.bf16.mxu0 0
      %1638 = vmatpush1.bf16.msra.mxu0 0
      %1639 = vmatprep.subr.bf16.mxu0 0
      %1640 = vmatpush1.bf16.msra.mxu0 0
      %1641 = vmatprep.subr.bf16.mxu0 0
      %1642 = vmatpush1.bf16.msra.mxu0 0
      %1643 = vmatprep.subr.bf16.mxu0 0
      %1644 = vmatpush1.bf16.msra.mxu0 0
      %1645 = vmatprep.subr.bf16.mxu0 0
      %1646 = vmatpush1.bf16.msra.mxu0 0
      %1647 = vmatprep.subr.bf16.mxu0 0
      %1648 = vmatpush1.bf16.msra.mxu0 0
      %1649 = vmatprep.subr.bf16.mxu0 0
      %1650 = vmatpush1.bf16.msra.mxu0 0
      %1651 = vmatprep.subr.bf16.mxu0 0
      %1652 = vmatpush1.bf16.msra.mxu0 0
      %1653 = vmatprep.subr.bf16.mxu0 0
      %1654 = vmatpush1.bf16.msra.mxu0 0
      %1655 = vmatprep.subr.bf16.mxu0 0
      %1656 = vmatpush1.bf16.msra.mxu0 0
      %1657 = vmatprep.mubr.bf16.mxu0 0
      %1658 = vmatmul.mubr.bf16.gmra.mrb[0].mxu0 %v1617
      %v1659 = vpop.f32.mrb[0].mxu0
      %v1660 = vadd.f32 %v1603, %v1659
      %v1661 = vpop.f32.mrb[0].mxu0
      %v1662 = vpop.f32.mrb[0].mxu0
      %v1663 = vadd.f32 %v1606, %v1662
      %v1664 = vpop.f32.mrb[0].mxu0
      %1665 = vmatprep.mubr.bf16.mxu0 0
      %1666 = vmatmul.mubr.bf16.gmra.mrb[0].mxu0 %v1620
      %v1667 = vpop.f32.mrb[0].mxu0
      %v1668 = vadd.f32 %v1611, %v1667
      %v1669 = vpop.f32.mrb[0].mxu0
      %v1670 = vpop.f32.mrb[0].mxu0
      %v1671 = vpop.f32.mrb[0].mxu0
      %1672 = vdwg.mxu0
      %1673 = vrot.lane.b32.xlu0 %v1056, 112
      %v1674 = vpop.permute.xlu0 %1673
      %1675 = vrot.lane.b32.xlu0 %v1059, 112
      %v1676 = vpop.permute.xlu0 %1675
      %1677 = vrot.lane.b32.xlu0 %v1064, 112
      %v1678 = vpop.permute.xlu0 %1677
      %1679 = vrot.lane.b32.xlu0 %v1056, 80
      %v1680 = vpop.permute.xlu0 %1679
      %1681 = vrot.lane.b32.xlu0 %v1059, 80
      %v1682 = vpop.permute.xlu0 %1681
      %1683 = vrot.lane.b32.xlu0 %v1064, 80
      %v1684 = vpop.permute.xlu0 %1683
      %v1685 = vsel %vm1082, %v1674, 0
      %v1687 = vsel %vm1082, %v1676, 0
      %v1689 = vsel %vm1082, %v1678, 0
      %v1691 = vsel %vm1082, %v1680, 0
      %v1693 = vsel %vm1082, %v1682, 0
      %v1695 = vsel %vm1082, %v1684, 0
      %1697 = vmatprep.subr.mxu0 0.0
      %1698 = vmatpush1.xpose.msra.mxu0 %v1691
      %1699 = vmatprep.subr.mxu0 0.0
      %1700 = vmatpush1.xpose.msra.mxu0 %v1693
      %1701 = vmatprep.subr.mxu0 0.0
      %1702 = vmatpush1.xpose.msra.mxu0 %v1695
      %1703 = vmatprep.subr.mxu0 0.0
      %1704 = vmatpush1.xpose.msra.mxu0 0.0
      %1705 = vmatprep.subr.mxu0 0.0
      %1706 = vmatpush1.xpose.msra.mxu0 0.0
      %1707 = vmatprep.subr.mxu0 0.0
      %1708 = vmatpush1.xpose.msra.mxu0 0.0
      %1709 = vmatprep.subr.mxu0 0.0
      %1710 = vmatpush1.xpose.msra.mxu0 0.0
      %1711 = vmatprep.subr.mxu0 0.0
      %1712 = vmatpush1.xpose.msra.mxu0 0.0
      %1713 = vmatprep.subr.mxu0 0.0
      %1714 = vmatpush1.xpose.msra.mxu0 0.0
      %1715 = vmatprep.subr.mxu0 0.0
      %1716 = vmatpush1.xpose.msra.mxu0 0.0
      %1717 = vmatprep.subr.mxu0 0.0
      %1718 = vmatpush1.xpose.msra.mxu0 0.0
      %1719 = vmatprep.subr.mxu0 0.0
      %1720 = vmatpush1.xpose.msra.mxu0 0.0
      %1721 = vmatprep.subr.mxu0 0.0
      %1722 = vmatpush1.xpose.msra.mxu0 0.0
      %1723 = vmatprep.subr.mxu0 0.0
      %1724 = vmatpush1.xpose.msra.mxu0 0.0
      %1725 = vmatprep.subr.mxu0 0.0
      %1726 = vmatpush1.xpose.msra.mxu0 0.0
      %1727 = vmatprep.subr.mxu0 0.0
      %1728 = vmatpush1.xpose.msra.mxu0 0.0
      %1729 = vmatprep.subr.mxu0 0.0
      %1730 = vmatpush1.xpose.msra.mxu0 0.0
      %1731 = vmatprep.subr.mxu0 0.0
      %1732 = vmatpush1.xpose.msra.mxu0 0.0
      %1733 = vmatprep.subr.mxu0 0.0
      %1734 = vmatpush1.xpose.msra.mxu0 0.0
      %1735 = vmatprep.subr.mxu0 0.0
      %1736 = vmatpush1.xpose.msra.mxu0 0.0
      %1737 = vmatprep.subr.mxu0 0.0
      %1738 = vmatpush1.xpose.msra.mxu0 0.0
      %1739 = vmatprep.subr.mxu0 0.0
      %1740 = vmatpush1.xpose.msra.mxu0 0.0
      %1741 = vmatprep.subr.mxu0 0.0
      %1742 = vmatpush1.xpose.msra.mxu0 0.0
      %1743 = vmatprep.subr.mxu0 0.0
      %1744 = vmatpush1.xpose.msra.mxu0 0.0
      %1745 = vmatprep.subr.mxu0 0.0
      %1746 = vmatpush1.xpose.msra.mxu0 0.0
      %1747 = vmatprep.subr.mxu0 0.0
      %1748 = vmatpush1.xpose.msra.mxu0 0.0
      %1749 = vmatprep.subr.mxu0 0.0
      %1750 = vmatpush1.xpose.msra.mxu0 0.0
      %1751 = vmatprep.subr.mxu0 0.0
      %1752 = vmatpush1.xpose.msra.mxu0 0.0
      %1753 = vmatprep.subr.mxu0 0.0
      %1754 = vmatpush1.xpose.msra.mxu0 0.0
      %1755 = vmatprep.subr.mxu0 0.0
      %1756 = vmatpush1.xpose.msra.mxu0 0.0
      %1757 = vmatprep.subr.mxu0 0.0
      %1758 = vmatpush1.xpose.msra.mxu0 0.0
      %1759 = vmatprep.subr.mxu0 0.0
      %1760 = vmatpush1.xpose.msra.mxu0 0.0
      %1761 = vmatprep.mubr.f32.mxu0 0.0
      %1762 = vmatmul.mubr.f32.gmra.mrb[0].mxu0 %v1685
      %v1763 = vpop.f32.mrb[0].mxu0
      %v1764 = vadd.f32 0.0, %v1763
      %v1765 = vpop.f32.mrb[0].mxu0
      %1766 = vmatprep.mubr.f32.mxu0 0.0
      %1767 = vmatmul.mubr.f32.gmra.mrb[0].mxu0 %v1687
      %v1768 = vpop.f32.mrb[0].mxu0
      %v1769 = vadd.f32 0.0, %v1768
      %v1770 = vpop.f32.mrb[0].mxu0
      %1771 = vmatprep.mubr.f32.mxu0 0.0
      %1772 = vmatmul.mubr.f32.gmra.mrb[0].mxu0 %v1689
      %v1773 = vpop.f32.mrb[0].mxu0
      %v1774 = vadd.f32 0.0, %v1773
      %v1775 = vpop.f32.mrb[0].mxu0
      %1776 = vdwg.mxu0
      %v1777 = vmul.f32 %v1764, 0.35355338
      %v1778 = vmul.f32 %v1769, 0.35355338
      %v1779 = vmul.f32 %v1774, 0.35355338
      %v1780 = vsel %vm926, %v1777, -1e+30
      %v1781 = vsel %vm927, %v1778, -1e+30
      %v1782 = vsel %vm928, %v1779, -1e+30
      %v1783 = vsel %vm1181, %v1780, -inf
      %1784 = vmax.xlane.f32.xlu0 %v1783
      %v1785 = vpop.xlane.xlu0 %1784
      %v1786 = vsel %vm1181, %v1781, -inf
      %1787 = vmax.xlane.f32.xlu0 %v1786
      %v1788 = vpop.xlane.xlu0 %1787
      %v1789 = vsel %vm1181, %v1782, -inf
      %1790 = vmax.xlane.f32.xlu0 %v1789
      %v1791 = vpop.xlane.xlu0 %1790
      %v1792 = vsub.f32 %v1780, %v1785
      %v1793 = vsub.f32 %v1781, %v1788
      %v1794 = vsub.f32 %v1782, %v1791
      %v1795 = vmul.f32 %v1792, 1.442695
      %v1796 = vpow.pop %v1795
      %v1797 = vmul.f32 %v1793, 1.442695
      %v1798 = vpow.pop %v1797
      %v1799 = vmul.f32 %v1794, 1.442695
      %v1800 = vpow.pop %v1799
      %v1801 = vsel %vm1181, %v1796, 0.0
      %1802 = vadd.xlane.f32.xlu0 %v1801
      %v1803 = vpop.xlane.xlu0 %1802
      %v1804 = vsel %vm1181, %v1798, 0.0
      %1805 = vadd.xlane.f32.xlu0 %v1804
      %v1806 = vpop.xlane.xlu0 %1805
      %v1807 = vsel %vm1181, %v1800, 0.0
      %1808 = vadd.xlane.f32.xlu0 %v1807
      %v1809 = vpop.xlane.xlu0 %1808
      %v1810 = vrcp.pop %v1803
      %v1811 = vrcp.pop %v1806
      %v1812 = vrcp.pop %v1809
      %v1813 = vmul.f32 %v1796, %v1810
      %v1814 = vmul.f32 %v1798, %v1811
      %v1815 = vmul.f32 %v1800, %v1812
      %1816 = vrot.lane.b32.xlu0 %v1056, 48
      %v1817 = vpop.permute.xlu0 %1816
      %1818 = vrot.lane.b32.xlu0 %v1059, 48
      %v1819 = vpop.permute.xlu0 %1818
      %1820 = vrot.lane.b32.xlu0 %v1064, 48
      %v1821 = vpop.permute.xlu0 %1820
      %v1826 = vsel %vm1181, %v1813, 0
      %v1829 = vsel %vm1181, %v1814, 0
      %v1832 = vsel %vm1181, %v1815, 0
      %1834 = vmatprep.subr.mxu0 0.0
      %1835 = vmatpush1.msra.mxu0 %v1817
      %1836 = vmatprep.subr.mxu0 0.0
      %1837 = vmatpush1.msra.mxu0 %v1819
      %1838 = vmatprep.subr.mxu0 0.0
      %1839 = vmatpush1.msra.mxu0 %v1821
      %1840 = vmatprep.subr.mxu0 0.0
      %1841 = vmatpush1.msra.mxu0 0.0
      %1842 = vmatprep.subr.mxu0 0.0
      %1843 = vmatpush1.msra.mxu0 0.0
      %1844 = vmatprep.subr.mxu0 0.0
      %1845 = vmatpush1.msra.mxu0 0.0
      %1846 = vmatprep.subr.mxu0 0.0
      %1847 = vmatpush1.msra.mxu0 0.0
      %1848 = vmatprep.subr.mxu0 0.0
      %1849 = vmatpush1.msra.mxu0 0.0
      %1850 = vmatprep.subr.mxu0 0.0
      %1851 = vmatpush1.msra.mxu0 0.0
      %1852 = vmatprep.subr.mxu0 0.0
      %1853 = vmatpush1.msra.mxu0 0.0
      %1854 = vmatprep.subr.mxu0 0.0
      %1855 = vmatpush1.msra.mxu0 0.0
      %1856 = vmatprep.subr.mxu0 0.0
      %1857 = vmatpush1.msra.mxu0 0.0
      %1858 = vmatprep.subr.mxu0 0.0
      %1859 = vmatpush1.msra.mxu0 0.0
      %1860 = vmatprep.subr.mxu0 0.0
      %1861 = vmatpush1.msra.mxu0 0.0
      %1862 = vmatprep.subr.mxu0 0.0
      %1863 = vmatpush1.msra.mxu0 0.0
      %1864 = vmatprep.subr.mxu0 0.0
      %1865 = vmatpush1.msra.mxu0 0.0
      %1866 = vmatprep.subr.mxu0 0.0
      %1867 = vmatpush1.msra.mxu0 0.0
      %1868 = vmatprep.subr.mxu0 0.0
      %1869 = vmatpush1.msra.mxu0 0.0
      %1870 = vmatprep.subr.mxu0 0.0
      %1871 = vmatpush1.msra.mxu0 0.0
      %1872 = vmatprep.subr.mxu0 0.0
      %1873 = vmatpush1.msra.mxu0 0.0
      %1874 = vmatprep.subr.mxu0 0.0
      %1875 = vmatpush1.msra.mxu0 0.0
      %1876 = vmatprep.subr.mxu0 0.0
      %1877 = vmatpush1.msra.mxu0 0.0
      %1878 = vmatprep.subr.mxu0 0.0
      %1879 = vmatpush1.msra.mxu0 0.0
      %1880 = vmatprep.subr.mxu0 0.0
      %1881 = vmatpush1.msra.mxu0 0.0
      %1882 = vmatprep.subr.mxu0 0.0
      %1883 = vmatpush1.msra.mxu0 0.0
      %1884 = vmatprep.subr.mxu0 0.0
      %1885 = vmatpush1.msra.mxu0 0.0
      %1886 = vmatprep.subr.mxu0 0.0
      %1887 = vmatpush1.msra.mxu0 0.0
      %1888 = vmatprep.subr.mxu0 0.0
      %1889 = vmatpush1.msra.mxu0 0.0
      %1890 = vmatprep.subr.mxu0 0.0
      %1891 = vmatpush1.msra.mxu0 0.0
      %1892 = vmatprep.subr.mxu0 0.0
      %1893 = vmatpush1.msra.mxu0 0.0
      %1894 = vmatprep.subr.mxu0 0.0
      %1895 = vmatpush1.msra.mxu0 0.0
      %1896 = vmatprep.subr.mxu0 0.0
      %1897 = vmatpush1.msra.mxu0 0.0
      %1898 = vmatprep.mubr.f32.mxu0 0.0
      %1899 = vmatmul.mubr.f32.gmra.mrb[0].mxu0 %v1826
      %v1900 = vpop.f32.mrb[0].mxu0
      %v1901 = vadd.f32 0.0, %v1900
      %v1902 = vpop.f32.mrb[0].mxu0
      %1903 = vmatprep.mubr.f32.mxu0 0.0
      %1904 = vmatmul.mubr.f32.gmra.mrb[0].mxu0 %v1829
      %v1905 = vpop.f32.mrb[0].mxu0
      %v1906 = vadd.f32 0.0, %v1905
      %v1907 = vpop.f32.mrb[0].mxu0
      %1908 = vmatprep.mubr.f32.mxu0 0.0
      %1909 = vmatmul.mubr.f32.gmra.mrb[0].mxu0 %v1832
      %v1910 = vpop.f32.mrb[0].mxu0
      %v1911 = vadd.f32 0.0, %v1910
      %v1912 = vpop.f32.mrb[0].mxu0
      %1913 = vdwg.mxu0
      %v1914 = vpack.c.bf16 %v1906, %v1901
      %v1915 = vpack.c.bf16 %v1911, %v1911
      %v1917 = vsel %vm1082, %v1914, 0
      %v1920 = vsel %vm1082, %v1915, 0
      %v1923 = vsel %vm1564, %v1071, 0
      %1925 = vmatprep.subr.bf16.mxu0 0
      %1926 = vmatpush1.bf16.msra.mxu0 %v1923
      %1927 = vmatprep.subr.bf16.mxu0 0
      %1928 = vmatpush1.bf16.msra.mxu0 0
      %1929 = vmatprep.subr.bf16.mxu0 0
      %1930 = vmatpush1.bf16.msra.mxu0 0
      %1931 = vmatprep.subr.bf16.mxu0 0
      %1932 = vmatpush1.bf16.msra.mxu0 0
      %1933 = vmatprep.subr.bf16.mxu0 0
      %1934 = vmatpush1.bf16.msra.mxu0 0
      %1935 = vmatprep.subr.bf16.mxu0 0
      %1936 = vmatpush1.bf16.msra.mxu0 0
      %1937 = vmatprep.subr.bf16.mxu0 0
      %1938 = vmatpush1.bf16.msra.mxu0 0
      %1939 = vmatprep.subr.bf16.mxu0 0
      %1940 = vmatpush1.bf16.msra.mxu0 0
      %1941 = vmatprep.subr.bf16.mxu0 0
      %1942 = vmatpush1.bf16.msra.mxu0 0
      %1943 = vmatprep.subr.bf16.mxu0 0
      %1944 = vmatpush1.bf16.msra.mxu0 0
      %1945 = vmatprep.subr.bf16.mxu0 0
      %1946 = vmatpush1.bf16.msra.mxu0 0
      %1947 = vmatprep.subr.bf16.mxu0 0
      %1948 = vmatpush1.bf16.msra.mxu0 0
      %1949 = vmatprep.subr.bf16.mxu0 0
      %1950 = vmatpush1.bf16.msra.mxu0 0
      %1951 = vmatprep.subr.bf16.mxu0 0
      %1952 = vmatpush1.bf16.msra.mxu0 0
      %1953 = vmatprep.subr.bf16.mxu0 0
      %1954 = vmatpush1.bf16.msra.mxu0 0
      %1955 = vmatprep.subr.bf16.mxu0 0
      %1956 = vmatpush1.bf16.msra.mxu0 0
      %1957 = vmatprep.mubr.bf16.mxu0 0
      %1958 = vmatmul.mubr.bf16.gmra.mrb[0].mxu0 %v1917
      %v1959 = vpop.f32.mrb[0].mxu0
      %v1960 = vadd.f32 0.0, %v1959
      %v1961 = vpop.f32.mrb[0].mxu0
      %v1962 = vpop.f32.mrb[0].mxu0
      %v1963 = vadd.f32 0.0, %v1962
      %v1964 = vpop.f32.mrb[0].mxu0
      %1965 = vmatprep.mubr.bf16.mxu0 0
      %1966 = vmatmul.mubr.bf16.gmra.mrb[0].mxu0 %v1920
      %v1967 = vpop.f32.mrb[0].mxu0
      %v1968 = vadd.f32 0.0, %v1967
      %v1969 = vpop.f32.mrb[0].mxu0
      %v1970 = vpop.f32.mrb[0].mxu0
      %v1971 = vpop.f32.mrb[0].mxu0
      %1972 = vdwg.mxu0
      %v1973 = vadd.f32 %v1660, %v1960
      %v1974 = vadd.f32 %v1663, %v1963
      %v1975 = vadd.f32 %v1668, %v1968
      %1976 = vrot.lane.b32.xlu0 %v1056, 104
      %v1977 = vpop.permute.xlu0 %1976
      %1978 = vrot.lane.b32.xlu0 %v1059, 104
      %v1979 = vpop.permute.xlu0 %1978
      %1980 = vrot.lane.b32.xlu0 %v1064, 104
      %v1981 = vpop.permute.xlu0 %1980
      %1982 = vrot.lane.b32.xlu0 %v1056, 72
      %v1983 = vpop.permute.xlu0 %1982
      %1984 = vrot.lane.b32.xlu0 %v1059, 72
      %v1985 = vpop.permute.xlu0 %1984
      %1986 = vrot.lane.b32.xlu0 %v1064, 72
      %v1987 = vpop.permute.xlu0 %1986
      %v1988 = vsel %vm1082, %v1977, 0
      %v1990 = vsel %vm1082, %v1979, 0
      %v1992 = vsel %vm1082, %v1981, 0
      %v1994 = vsel %vm1082, %v1983, 0
      %v1996 = vsel %vm1082, %v1985, 0
      %v1998 = vsel %vm1082, %v1987, 0
      %2000 = vmatprep.subr.mxu0 0.0
      %2001 = vmatpush1.xpose.msra.mxu0 %v1994
      %2002 = vmatprep.subr.mxu0 0.0
      %2003 = vmatpush1.xpose.msra.mxu0 %v1996
      %2004 = vmatprep.subr.mxu0 0.0
      %2005 = vmatpush1.xpose.msra.mxu0 %v1998
      %2006 = vmatprep.subr.mxu0 0.0
      %2007 = vmatpush1.xpose.msra.mxu0 0.0
      %2008 = vmatprep.subr.mxu0 0.0
      %2009 = vmatpush1.xpose.msra.mxu0 0.0
      %2010 = vmatprep.subr.mxu0 0.0
      %2011 = vmatpush1.xpose.msra.mxu0 0.0
      %2012 = vmatprep.subr.mxu0 0.0
      %2013 = vmatpush1.xpose.msra.mxu0 0.0
      %2014 = vmatprep.subr.mxu0 0.0
      %2015 = vmatpush1.xpose.msra.mxu0 0.0
      %2016 = vmatprep.subr.mxu0 0.0
      %2017 = vmatpush1.xpose.msra.mxu0 0.0
      %2018 = vmatprep.subr.mxu0 0.0
      %2019 = vmatpush1.xpose.msra.mxu0 0.0
      %2020 = vmatprep.subr.mxu0 0.0
      %2021 = vmatpush1.xpose.msra.mxu0 0.0
      %2022 = vmatprep.subr.mxu0 0.0
      %2023 = vmatpush1.xpose.msra.mxu0 0.0
      %2024 = vmatprep.subr.mxu0 0.0
      %2025 = vmatpush1.xpose.msra.mxu0 0.0
      %2026 = vmatprep.subr.mxu0 0.0
      %2027 = vmatpush1.xpose.msra.mxu0 0.0
      %2028 = vmatprep.subr.mxu0 0.0
      %2029 = vmatpush1.xpose.msra.mxu0 0.0
      %2030 = vmatprep.subr.mxu0 0.0
      %2031 = vmatpush1.xpose.msra.mxu0 0.0
      %2032 = vmatprep.subr.mxu0 0.0
      %2033 = vmatpush1.xpose.msra.mxu0 0.0
      %2034 = vmatprep.subr.mxu0 0.0
      %2035 = vmatpush1.xpose.msra.mxu0 0.0
      %2036 = vmatprep.subr.mxu0 0.0
      %2037 = vmatpush1.xpose.msra.mxu0 0.0
      %2038 = vmatprep.subr.mxu0 0.0
      %2039 = vmatpush1.xpose.msra.mxu0 0.0
      %2040 = vmatprep.subr.mxu0 0.0
      %2041 = vmatpush1.xpose.msra.mxu0 0.0
      %2042 = vmatprep.subr.mxu0 0.0
      %2043 = vmatpush1.xpose.msra.mxu0 0.0
      %2044 = vmatprep.subr.mxu0 0.0
      %2045 = vmatpush1.xpose.msra.mxu0 0.0
      %2046 = vmatprep.subr.mxu0 0.0
      %2047 = vmatpush1.xpose.msra.mxu0 0.0
      %2048 = vmatprep.subr.mxu0 0.0
      %2049 = vmatpush1.xpose.msra.mxu0 0.0
      %2050 = vmatprep.subr.mxu0 0.0
      %2051 = vmatpush1.xpose.msra.mxu0 0.0
      %2052 = vmatprep.subr.mxu0 0.0
      %2053 = vmatpush1.xpose.msra.mxu0 0.0
      %2054 = vmatprep.subr.mxu0 0.0
      %2055 = vmatpush1.xpose.msra.mxu0 0.0
      %2056 = vmatprep.subr.mxu0 0.0
      %2057 = vmatpush1.xpose.msra.mxu0 0.0
      %2058 = vmatprep.subr.mxu0 0.0
      %2059 = vmatpush1.xpose.msra.mxu0 0.0
      %2060 = vmatprep.subr.mxu0 0.0
      %2061 = vmatpush1.xpose.msra.mxu0 0.0
      %2062 = vmatprep.subr.mxu0 0.0
      %2063 = vmatpush1.xpose.msra.mxu0 0.0
      %2064 = vmatprep.mubr.f32.mxu0 0.0
      %2065 = vmatmul.mubr.f32.gmra.mrb[0].mxu0 %v1988
      %v2066 = vpop.f32.mrb[0].mxu0
      %v2067 = vadd.f32 0.0, %v2066
      %v2068 = vpop.f32.mrb[0].mxu0
      %2069 = vmatprep.mubr.f32.mxu0 0.0
      %2070 = vmatmul.mubr.f32.gmra.mrb[0].mxu0 %v1990
      %v2071 = vpop.f32.mrb[0].mxu0
      %v2072 = vadd.f32 0.0, %v2071
      %v2073 = vpop.f32.mrb[0].mxu0
      %2074 = vmatprep.mubr.f32.mxu0 0.0
      %2075 = vmatmul.mubr.f32.gmra.mrb[0].mxu0 %v1992
      %v2076 = vpop.f32.mrb[0].mxu0
      %v2077 = vadd.f32 0.0, %v2076
      %v2078 = vpop.f32.mrb[0].mxu0
      %2079 = vdwg.mxu0
      %v2080 = vmul.f32 %v2067, 0.35355338
      %v2081 = vmul.f32 %v2072, 0.35355338
      %v2082 = vmul.f32 %v2077, 0.35355338
      %v2083 = vsel %vm926, %v2080, -1e+30
      %v2084 = vsel %vm927, %v2081, -1e+30
      %v2085 = vsel %vm928, %v2082, -1e+30
      %v2086 = vsel %vm1181, %v2083, -inf
      %2087 = vmax.xlane.f32.xlu0 %v2086
      %v2088 = vpop.xlane.xlu0 %2087
      %v2089 = vsel %vm1181, %v2084, -inf
      %2090 = vmax.xlane.f32.xlu0 %v2089
      %v2091 = vpop.xlane.xlu0 %2090
      %v2092 = vsel %vm1181, %v2085, -inf
      %2093 = vmax.xlane.f32.xlu0 %v2092
      %v2094 = vpop.xlane.xlu0 %2093
      %v2095 = vsub.f32 %v2083, %v2088
      %v2096 = vsub.f32 %v2084, %v2091
      %v2097 = vsub.f32 %v2085, %v2094
      %v2098 = vmul.f32 %v2095, 1.442695
      %v2099 = vpow.pop %v2098
      %v2100 = vmul.f32 %v2096, 1.442695
      %v2101 = vpow.pop %v2100
      %v2102 = vmul.f32 %v2097, 1.442695
      %v2103 = vpow.pop %v2102
      %v2104 = vsel %vm1181, %v2099, 0.0
      %2105 = vadd.xlane.f32.xlu0 %v2104
      %v2106 = vpop.xlane.xlu0 %2105
      %v2107 = vsel %vm1181, %v2101, 0.0
      %2108 = vadd.xlane.f32.xlu0 %v2107
      %v2109 = vpop.xlane.xlu0 %2108
      %v2110 = vsel %vm1181, %v2103, 0.0
      %2111 = vadd.xlane.f32.xlu0 %v2110
      %v2112 = vpop.xlane.xlu0 %2111
      %v2113 = vrcp.pop %v2106
      %v2114 = vrcp.pop %v2109
      %v2115 = vrcp.pop %v2112
      %v2116 = vmul.f32 %v2099, %v2113
      %v2117 = vmul.f32 %v2101, %v2114
      %v2118 = vmul.f32 %v2103, %v2115
      %2119 = vrot.lane.b32.xlu0 %v1056, 40
      %v2120 = vpop.permute.xlu0 %2119
      %2121 = vrot.lane.b32.xlu0 %v1059, 40
      %v2122 = vpop.permute.xlu0 %2121
      %2123 = vrot.lane.b32.xlu0 %v1064, 40
      %v2124 = vpop.permute.xlu0 %2123
      %v2129 = vsel %vm1181, %v2116, 0
      %v2132 = vsel %vm1181, %v2117, 0
      %v2135 = vsel %vm1181, %v2118, 0
      %2137 = vmatprep.subr.mxu0 0.0
      %2138 = vmatpush1.msra.mxu0 %v2120
      %2139 = vmatprep.subr.mxu0 0.0
      %2140 = vmatpush1.msra.mxu0 %v2122
      %2141 = vmatprep.subr.mxu0 0.0
      %2142 = vmatpush1.msra.mxu0 %v2124
      %2143 = vmatprep.subr.mxu0 0.0
      %2144 = vmatpush1.msra.mxu0 0.0
      %2145 = vmatprep.subr.mxu0 0.0
      %2146 = vmatpush1.msra.mxu0 0.0
      %2147 = vmatprep.subr.mxu0 0.0
      %2148 = vmatpush1.msra.mxu0 0.0
      %2149 = vmatprep.subr.mxu0 0.0
      %2150 = vmatpush1.msra.mxu0 0.0
      %2151 = vmatprep.subr.mxu0 0.0
      %2152 = vmatpush1.msra.mxu0 0.0
      %2153 = vmatprep.subr.mxu0 0.0
      %2154 = vmatpush1.msra.mxu0 0.0
      %2155 = vmatprep.subr.mxu0 0.0
      %2156 = vmatpush1.msra.mxu0 0.0
      %2157 = vmatprep.subr.mxu0 0.0
      %2158 = vmatpush1.msra.mxu0 0.0
      %2159 = vmatprep.subr.mxu0 0.0
      %2160 = vmatpush1.msra.mxu0 0.0
      %2161 = vmatprep.subr.mxu0 0.0
      %2162 = vmatpush1.msra.mxu0 0.0
      %2163 = vmatprep.subr.mxu0 0.0
      %2164 = vmatpush1.msra.mxu0 0.0
      %2165 = vmatprep.subr.mxu0 0.0
      %2166 = vmatpush1.msra.mxu0 0.0
      %2167 = vmatprep.subr.mxu0 0.0
      %2168 = vmatpush1.msra.mxu0 0.0
      %2169 = vmatprep.subr.mxu0 0.0
      %2170 = vmatpush1.msra.mxu0 0.0
      %2171 = vmatprep.subr.mxu0 0.0
      %2172 = vmatpush1.msra.mxu0 0.0
      %2173 = vmatprep.subr.mxu0 0.0
      %2174 = vmatpush1.msra.mxu0 0.0
      %2175 = vmatprep.subr.mxu0 0.0
      %2176 = vmatpush1.msra.mxu0 0.0
      %2177 = vmatprep.subr.mxu0 0.0
      %2178 = vmatpush1.msra.mxu0 0.0
      %2179 = vmatprep.subr.mxu0 0.0
      %2180 = vmatpush1.msra.mxu0 0.0
      %2181 = vmatprep.subr.mxu0 0.0
      %2182 = vmatpush1.msra.mxu0 0.0
      %2183 = vmatprep.subr.mxu0 0.0
      %2184 = vmatpush1.msra.mxu0 0.0
      %2185 = vmatprep.subr.mxu0 0.0
      %2186 = vmatpush1.msra.mxu0 0.0
      %2187 = vmatprep.subr.mxu0 0.0
      %2188 = vmatpush1.msra.mxu0 0.0
      %2189 = vmatprep.subr.mxu0 0.0
      %2190 = vmatpush1.msra.mxu0 0.0
      %2191 = vmatprep.subr.mxu0 0.0
      %2192 = vmatpush1.msra.mxu0 0.0
      %2193 = vmatprep.subr.mxu0 0.0
      %2194 = vmatpush1.msra.mxu0 0.0
      %2195 = vmatprep.subr.mxu0 0.0
      %2196 = vmatpush1.msra.mxu0 0.0
      %2197 = vmatprep.subr.mxu0 0.0
      %2198 = vmatpush1.msra.mxu0 0.0
      %2199 = vmatprep.subr.mxu0 0.0
      %2200 = vmatpush1.msra.mxu0 0.0
      %2201 = vmatprep.mubr.f32.mxu0 0.0
      %2202 = vmatmul.mubr.f32.gmra.mrb[0].mxu0 %v2129
      %v2203 = vpop.f32.mrb[0].mxu0
      %v2204 = vadd.f32 0.0, %v2203
      %v2205 = vpop.f32.mrb[0].mxu0
      %2206 = vmatprep.mubr.f32.mxu0 0.0
      %2207 = vmatmul.mubr.f32.gmra.mrb[0].mxu0 %v2132
      %v2208 = vpop.f32.mrb[0].mxu0
      %v2209 = vadd.f32 0.0, %v2208
      %v2210 = vpop.f32.mrb[0].mxu0
      %2211 = vmatprep.mubr.f32.mxu0 0.0
      %2212 = vmatmul.mubr.f32.gmra.mrb[0].mxu0 %v2135
      %v2213 = vpop.f32.mrb[0].mxu0
      %v2214 = vadd.f32 0.0, %v2213
      %v2215 = vpop.f32.mrb[0].mxu0
      %2216 = vdwg.mxu0
      %v2217 = vpack.c.bf16 %v2209, %v2204
      %v2218 = vpack.c.bf16 %v2214, %v2214
      %v2220 = vsel %vm1082, %v2217, 0
      %v2223 = vsel %vm1082, %v2218, 0
      %v2226 = vsel %vm1564, %v1072, 0
      %2228 = vmatprep.subr.bf16.mxu0 0
      %2229 = vmatpush1.bf16.msra.mxu0 %v2226
      %2230 = vmatprep.subr.bf16.mxu0 0
      %2231 = vmatpush1.bf16.msra.mxu0 0
      %2232 = vmatprep.subr.bf16.mxu0 0
      %2233 = vmatpush1.bf16.msra.mxu0 0
      %2234 = vmatprep.subr.bf16.mxu0 0
      %2235 = vmatpush1.bf16.msra.mxu0 0
      %2236 = vmatprep.subr.bf16.mxu0 0
      %2237 = vmatpush1.bf16.msra.mxu0 0
      %2238 = vmatprep.subr.bf16.mxu0 0
      %2239 = vmatpush1.bf16.msra.mxu0 0
      %2240 = vmatprep.subr.bf16.mxu0 0
      %2241 = vmatpush1.bf16.msra.mxu0 0
      %2242 = vmatprep.subr.bf16.mxu0 0
      %2243 = vmatpush1.bf16.msra.mxu0 0
      %2244 = vmatprep.subr.bf16.mxu0 0
      %2245 = vmatpush1.bf16.msra.mxu0 0
      %2246 = vmatprep.subr.bf16.mxu0 0
      %2247 = vmatpush1.bf16.msra.mxu0 0
      %2248 = vmatprep.subr.bf16.mxu0 0
      %2249 = vmatpush1.bf16.msra.mxu0 0
      %2250 = vmatprep.subr.bf16.mxu0 0
      %2251 = vmatpush1.bf16.msra.mxu0 0
      %2252 = vmatprep.subr.bf16.mxu0 0
      %2253 = vmatpush1.bf16.msra.mxu0 0
      %2254 = vmatprep.subr.bf16.mxu0 0
      %2255 = vmatpush1.bf16.msra.mxu0 0
      %2256 = vmatprep.subr.bf16.mxu0 0
      %2257 = vmatpush1.bf16.msra.mxu0 0
      %2258 = vmatprep.subr.bf16.mxu0 0
      %2259 = vmatpush1.bf16.msra.mxu0 0
      %2260 = vmatprep.mubr.bf16.mxu0 0
      %2261 = vmatmul.mubr.bf16.gmra.mrb[0].mxu0 %v2220
      %v2262 = vpop.f32.mrb[0].mxu0
      %v2263 = vadd.f32 0.0, %v2262
      %v2264 = vpop.f32.mrb[0].mxu0
      %v2265 = vpop.f32.mrb[0].mxu0
      %v2266 = vadd.f32 0.0, %v2265
      %v2267 = vpop.f32.mrb[0].mxu0
      %2268 = vmatprep.mubr.bf16.mxu0 0
      %2269 = vmatmul.mubr.bf16.gmra.mrb[0].mxu0 %v2223
      %v2270 = vpop.f32.mrb[0].mxu0
      %v2271 = vadd.f32 0.0, %v2270
      %v2272 = vpop.f32.mrb[0].mxu0
      %v2273 = vpop.f32.mrb[0].mxu0
      %v2274 = vpop.f32.mrb[0].mxu0
      %2275 = vdwg.mxu0
      %v2276 = vadd.f32 %v1973, %v2263
      %v2277 = vadd.f32 %v1974, %v2266
      %v2278 = vadd.f32 %v1975, %v2271
      %v2279 = vadd.f32 %v921, %v2276
      %v2280 = vadd.f32 %v922, %v2277
      %v2281 = vadd.f32 %v923, %v2278
      %v2282 = vld [vmem:[%s10] sm:$0x1]
      %v2284 = vlaneseq
      %v2285 = vshrl.u32 %v2284, 7
      %v2286 = vsub.s32 0, %v2285
      %v2287 = vrot.slane %v2282, %v2286
      %v2289 = vadd.f32 %v2279, %v2287
      %v2290 = vadd.f32 %v2280, %v2287
      %v2291 = vadd.f32 %v2281, %v2287
      %v2292 = vld [vmem:[%s11] sm:$0x1]
      %v2293 = vld [vmem:[%s12] sm:$0x1]
      %v2294 = vsel %vm931, %v2289, 0.0
      %2295 = vadd.xlane.f32.xlu0 %v2294
      %v2296 = vpop.xlane.xlu0 %2295
      %v2297 = vsel %vm931, %v2290, 0.0
      %2298 = vadd.xlane.f32.xlu0 %v2297
      %v2299 = vpop.xlane.xlu0 %2298
      %v2300 = vsel %vm931, %v2291, 0.0
      %2301 = vadd.xlane.f32.xlu0 %v2300
      %v2302 = vpop.xlane.xlu0 %2301
      %v2303 = vmul.f32 %v2296, %v941
      %v2304 = vmul.f32 %v2299, %v941
      %v2305 = vmul.f32 %v2302, %v941
      %v2306 = vsub.f32 %v2289, %v2303
      %v2307 = vsub.f32 %v2290, %v2304
      %v2308 = vsub.f32 %v2291, %v2305
      %v2309 = vmul.f32 %v2306, %v2306
      %v2310 = vmul.f32 %v2307, %v2307
      %v2311 = vmul.f32 %v2308, %v2308
      %v2312 = vsel %vm931, %v2309, 0.0
      %2313 = vadd.xlane.f32.xlu0 %v2312
      %v2314 = vpop.xlane.xlu0 %2313
      %v2315 = vsel %vm931, %v2310, 0.0
      %2316 = vadd.xlane.f32.xlu0 %v2315
      %v2317 = vpop.xlane.xlu0 %2316
      %v2318 = vsel %vm931, %v2311, 0.0
      %2319 = vadd.xlane.f32.xlu0 %v2318
      %v2320 = vpop.xlane.xlu0 %2319
      %v2321 = vmul.f32 %v2314, %v941
      %v2322 = vmul.f32 %v2317, %v941
      %v2323 = vmul.f32 %v2320, %v941
      %v2324 = vadd.f32 %v2321, 1e-05
      %v2325 = vadd.f32 %v2322, 1e-05
      %v2326 = vadd.f32 %v2323, 1e-05
      %v2327 = vrsqrt.pop %v2324
      %v2328 = vrsqrt.pop %v2325
      %v2329 = vrsqrt.pop %v2326
      %v2330 = vmul.f32 %v2306, %v2327
      %v2331 = vmul.f32 %v2307, %v2328
      %v2332 = vmul.f32 %v2308, %v2329
      %v2334 = vlaneseq
      %v2335 = vshrl.u32 %v2334, 7
      %v2336 = vsub.s32 0, %v2335
      %v2337 = vrot.slane %v2292, %v2336
      %v2339 = vmul.f32 %v2330, %v2337
      %v2340 = vmul.f32 %v2331, %v2337
      %v2341 = vmul.f32 %v2332, %v2337
      %v2343 = vlaneseq
      %v2344 = vshrl.u32 %v2343, 7
      %v2345 = vsub.s32 0, %v2344
      %v2346 = vrot.slane %v2293, %v2345
      %v2348 = vadd.f32 %v2339, %v2346
      %v2349 = vadd.f32 %v2340, %v2346
      %v2350 = vadd.f32 %v2341, %v2346
      %v2351 = vpack.c.bf16 %v2349, %v2348
      %v2352 = vpack.c.bf16 %v2350, %v2350
      %v2353 = vld [vmem:[%s13] sm:$0xf]
      %v2354 = vld [vmem:[%s13 + $0x4] sm:$0xf]
      %v2355 = vld [vmem:[%s13 + $0x8] sm:$0xf]
      %v2356 = vld [vmem:[%s13 + $0xc] sm:$0xf]
      %v2357 = vld [vmem:[%s14] sm:$0x1]
      %v2359 = vlaneseq
      %v2360 = vshrl.u32 %v2359, 7
      %v2361 = vsub.s32 0, %v2360
      %v2362 = vrot.slane %v2357, %v2361
      %v2368 = vunpack.c.l.b16 %v2353
      %v2369 = vunpack.c.l.b16 %v2354
      %v2370 = vunpack.c.l.b16 %v2355
      %v2371 = vunpack.c.l.b16 %v2356
      %v2372 = vpack.c.b16 %v2369, %v2368
      %v2373 = vpack.c.b16 %v2371, %v2370
      %v2377 = vsel %vm931, %v2351, 0
      %v2380 = vsel %vm931, %v2352, 0
      %2382 = vmatprep.subr.bf16.mxu0 0
      %2383 = vmatpush1.bf16.msra.mxu0 %v2372
      %2384 = vmatprep.subr.bf16.mxu0 0
      %2385 = vmatpush1.bf16.msra.mxu0 %v2373
      %2386 = vmatprep.subr.bf16.mxu0 0
      %2387 = vmatpush1.bf16.msra.mxu0 0
      %2388 = vmatprep.subr.bf16.mxu0 0
      %2389 = vmatpush1.bf16.msra.mxu0 0
      %2390 = vmatprep.subr.bf16.mxu0 0
      %2391 = vmatpush1.bf16.msra.mxu0 0
      %2392 = vmatprep.subr.bf16.mxu0 0
      %2393 = vmatpush1.bf16.msra.mxu0 0
      %2394 = vmatprep.subr.bf16.mxu0 0
      %2395 = vmatpush1.bf16.msra.mxu0 0
      %2396 = vmatprep.subr.bf16.mxu0 0
      %2397 = vmatpush1.bf16.msra.mxu0 0
      %2398 = vmatprep.subr.bf16.mxu0 0
      %2399 = vmatpush1.bf16.msra.mxu0 0
      %2400 = vmatprep.subr.bf16.mxu0 0
      %2401 = vmatpush1.bf16.msra.mxu0 0
      %2402 = vmatprep.subr.bf16.mxu0 0
      %2403 = vmatpush1.bf16.msra.mxu0 0
      %2404 = vmatprep.subr.bf16.mxu0 0
      %2405 = vmatpush1.bf16.msra.mxu0 0
      %2406 = vmatprep.subr.bf16.mxu0 0
      %2407 = vmatpush1.bf16.msra.mxu0 0
      %2408 = vmatprep.subr.bf16.mxu0 0
      %2409 = vmatpush1.bf16.msra.mxu0 0
      %2410 = vmatprep.subr.bf16.mxu0 0
      %2411 = vmatpush1.bf16.msra.mxu0 0
      %2412 = vmatprep.subr.bf16.mxu0 0
      %2413 = vmatpush1.bf16.msra.mxu0 0
      %2414 = vmatprep.mubr.bf16.mxu0 0
      %2415 = vmatmul.mubr.bf16.gmra.mrb[0].mxu0 %v2377
      %v2416 = vpop.f32.mrb[0].mxu0
      %v2417 = vadd.f32 %v2362, %v2416
      %v2418 = vpop.f32.mrb[0].mxu0
      %v2419 = vpop.f32.mrb[0].mxu0
      %v2420 = vadd.f32 %v2362, %v2419
      %v2421 = vpop.f32.mrb[0].mxu0
      %2422 = vmatprep.mubr.bf16.mxu0 0
      %2423 = vmatmul.mubr.bf16.gmra.mrb[0].mxu0 %v2380
      %v2424 = vpop.f32.mrb[0].mxu0
      %v2425 = vadd.f32 %v2362, %v2424
      %v2426 = vpop.f32.mrb[0].mxu0
      %v2427 = vpop.f32.mrb[0].mxu0
      %v2428 = vpop.f32.mrb[0].mxu0
      %2429 = vdwg.mxu0
      %v2430 = vmul.f32 %v2417, %v2417
      %v2431 = vmul.f32 %v2420, %v2420
      %v2432 = vmul.f32 %v2425, %v2425
      %v2433 = vmul.f32 %v2417, %v2430
      %v2434 = vmul.f32 %v2420, %v2431
      %v2435 = vmul.f32 %v2425, %v2432
      %v2436 = vmul.f32 %v2433, 0.044715
      %v2437 = vmul.f32 %v2434, 0.044715
      %v2438 = vmul.f32 %v2435, 0.044715
      %v2439 = vadd.f32 %v2417, %v2436
      %v2440 = vadd.f32 %v2420, %v2437
      %v2441 = vadd.f32 %v2425, %v2438
      %v2442 = vmul.f32 %v2439, 0.7978846
      %v2443 = vmul.f32 %v2440, 0.7978846
      %v2444 = vmul.f32 %v2441, 0.7978846
      %v2445 = vtanh.pop %v2442
      %v2446 = vtanh.pop %v2443
      %v2447 = vtanh.pop %v2444
      %v2448 = vadd.f32 %v2445, 1.0
      %v2449 = vadd.f32 %v2446, 1.0
      %v2450 = vadd.f32 %v2447, 1.0
      %v2451 = vmul.f32 %v2448, 0.5
      %v2452 = vmul.f32 %v2449, 0.5
      %v2453 = vmul.f32 %v2450, 0.5
      %v2454 = vmul.f32 %v2417, %v2451
      %v2455 = vmul.f32 %v2420, %v2452
      %v2456 = vmul.f32 %v2425, %v2453
      %v2457 = vpack.c.bf16 %v2455, %v2454
      %v2458 = vpack.c.bf16 %v2456, %v2456
      %v2459 = vld [vmem:[%s15] sm:$0xf]
      %v2460 = vld [vmem:[%s15 + $0x4] sm:$0xf]
      %v2461 = vld [vmem:[%s15 + $0x8] sm:$0xf]
      %v2462 = vld [vmem:[%s15 + $0xc] sm:$0xf]
      %v2463 = vld [vmem:[%s15 + $0x10] sm:$0xf]
      %v2464 = vld [vmem:[%s15 + $0x14] sm:$0xf]
      %v2465 = vld [vmem:[%s15 + $0x18] sm:$0xf]
      %v2466 = vld [vmem:[%s15 + $0x1c] sm:$0xf]
      %v2467 = vld [vmem:[%s15 + $0x20] sm:$0xf]
      %v2468 = vld [vmem:[%s15 + $0x24] sm:$0xf]
      %v2469 = vld [vmem:[%s15 + $0x28] sm:$0xf]
      %v2470 = vld [vmem:[%s15 + $0x2c] sm:$0xf]
      %v2471 = vld [vmem:[%s15 + $0x30] sm:$0xf]
      %v2472 = vld [vmem:[%s15 + $0x34] sm:$0xf]
      %v2473 = vld [vmem:[%s15 + $0x38] sm:$0xf]
      %v2474 = vld [vmem:[%s15 + $0x3c] sm:$0xf]
      %v2475 = vld [vmem:[%s16] sm:$0x1]
      %v2477 = vlaneseq
      %v2478 = vshrl.u32 %v2477, 7
      %v2479 = vsub.s32 0, %v2478
      %v2480 = vrot.slane %v2475, %v2479
      %v2498 = vunpack.c.l.b16 %v2459
      %v2499 = vunpack.c.l.b16 %v2460
      %v2500 = vunpack.c.l.b16 %v2461
      %v2501 = vunpack.c.l.b16 %v2462
      %v2502 = vunpack.c.l.b16 %v2463
      %v2503 = vunpack.c.l.b16 %v2464
      %v2504 = vunpack.c.l.b16 %v2465
      %v2505 = vunpack.c.l.b16 %v2466
      %v2506 = vunpack.c.l.b16 %v2467
      %v2507 = vunpack.c.l.b16 %v2468
      %v2508 = vunpack.c.l.b16 %v2469
      %v2509 = vunpack.c.l.b16 %v2470
      %v2510 = vunpack.c.l.b16 %v2471
      %v2511 = vunpack.c.l.b16 %v2472
      %v2512 = vunpack.c.l.b16 %v2473
      %v2513 = vunpack.c.l.b16 %v2474
      %v2514 = vpack.c.b16 %v2499, %v2498
      %v2515 = vpack.c.b16 %v2501, %v2500
      %v2516 = vpack.c.b16 %v2503, %v2502
      %v2517 = vpack.c.b16 %v2505, %v2504
      %v2518 = vpack.c.b16 %v2507, %v2506
      %v2519 = vpack.c.b16 %v2509, %v2508
      %v2520 = vpack.c.b16 %v2511, %v2510
      %v2521 = vpack.c.b16 %v2513, %v2512
      %2530 = vmatprep.subr.bf16.mxu0 0
      %2531 = vmatpush1.bf16.msra.mxu0 %v2514
      %2532 = vmatprep.subr.bf16.mxu0 0
      %2533 = vmatpush1.bf16.msra.mxu0 %v2515
      %2534 = vmatprep.subr.bf16.mxu0 0
      %2535 = vmatpush1.bf16.msra.mxu0 %v2516
      %2536 = vmatprep.subr.bf16.mxu0 0
      %2537 = vmatpush1.bf16.msra.mxu0 %v2517
      %2538 = vmatprep.subr.bf16.mxu0 0
      %2539 = vmatpush1.bf16.msra.mxu0 %v2518
      %2540 = vmatprep.subr.bf16.mxu0 0
      %2541 = vmatpush1.bf16.msra.mxu0 %v2519
      %2542 = vmatprep.subr.bf16.mxu0 0
      %2543 = vmatpush1.bf16.msra.mxu0 %v2520
      %2544 = vmatprep.subr.bf16.mxu0 0
      %2545 = vmatpush1.bf16.msra.mxu0 %v2521
      %2546 = vmatprep.subr.bf16.mxu0 0
      %2547 = vmatpush1.bf16.msra.mxu0 0
      %2548 = vmatprep.subr.bf16.mxu0 0
      %2549 = vmatpush1.bf16.msra.mxu0 0
      %2550 = vmatprep.subr.bf16.mxu0 0
      %2551 = vmatpush1.bf16.msra.mxu0 0
      %2552 = vmatprep.subr.bf16.mxu0 0
      %2553 = vmatpush1.bf16.msra.mxu0 0
      %2554 = vmatprep.subr.bf16.mxu0 0
      %2555 = vmatpush1.bf16.msra.mxu0 0
      %2556 = vmatprep.subr.bf16.mxu0 0
      %2557 = vmatpush1.bf16.msra.mxu0 0
      %2558 = vmatprep.subr.bf16.mxu0 0
      %2559 = vmatpush1.bf16.msra.mxu0 0
      %2560 = vmatprep.subr.bf16.mxu0 0
      %2561 = vmatpush1.bf16.msra.mxu0 0
      %2562 = vmatprep.mubr.bf16.mxu0 0
      %2563 = vmatmul.mubr.bf16.gmra.mrb[0].mxu0 %v2457
      %v2564 = vpop.f32.mrb[0].mxu0
      %v2565 = vadd.f32 %v2480, %v2564
      %v2566 = vpop.f32.mrb[0].mxu0
      %v2567 = vpop.f32.mrb[0].mxu0
      %v2568 = vadd.f32 %v2480, %v2567
      %v2569 = vpop.f32.mrb[0].mxu0
      %2570 = vmatprep.mubr.bf16.mxu0 0
      %2571 = vmatmul.mubr.bf16.gmra.mrb[0].mxu0 %v2458
      %v2572 = vpop.f32.mrb[0].mxu0
      %v2573 = vadd.f32 %v2480, %v2572
      %v2574 = vpop.f32.mrb[0].mxu0
      %v2575 = vpop.f32.mrb[0].mxu0
      %v2576 = vpop.f32.mrb[0].mxu0
      %2577 = vdwg.mxu0
      %v2578 = vadd.f32 %v2289, %v2565
      %v2579 = vadd.f32 %v2290, %v2568
      %v2580 = vadd.f32 %v2291, %v2573
      %s2581 = scalar_lea.vmem %s5, 1
      %v2582 = vld [vmem:[%s2581] sm:$0x1]
      %s2583 = scalar_lea.vmem %s6, 1
      %v2584 = vld [vmem:[%s2583] sm:$0x1]
      %v2585 = vsel %vm931, %v2578, 0.0
      %2586 = vadd.xlane.f32.xlu0 %v2585
      %v2587 = vpop.xlane.xlu0 %2586
      %v2588 = vsel %vm931, %v2579, 0.0
      %2589 = vadd.xlane.f32.xlu0 %v2588
      %v2590 = vpop.xlane.xlu0 %2589
      %v2591 = vsel %vm931, %v2580, 0.0
      %2592 = vadd.xlane.f32.xlu0 %v2591
      %v2593 = vpop.xlane.xlu0 %2592
      %v2594 = vmul.f32 %v2587, %v941
      %v2595 = vmul.f32 %v2590, %v941
      %v2596 = vmul.f32 %v2593, %v941
      %v2597 = vsub.f32 %v2578, %v2594
      %v2598 = vsub.f32 %v2579, %v2595
      %v2599 = vsub.f32 %v2580, %v2596
      %v2600 = vmul.f32 %v2597, %v2597
      %v2601 = vmul.f32 %v2598, %v2598
      %v2602 = vmul.f32 %v2599, %v2599
      %v2603 = vsel %vm931, %v2600, 0.0
      %2604 = vadd.xlane.f32.xlu0 %v2603
      %v2605 = vpop.xlane.xlu0 %2604
      %v2606 = vsel %vm931, %v2601, 0.0
      %2607 = vadd.xlane.f32.xlu0 %v2606
      %v2608 = vpop.xlane.xlu0 %2607
      %v2609 = vsel %vm931, %v2602, 0.0
      %2610 = vadd.xlane.f32.xlu0 %v2609
      %v2611 = vpop.xlane.xlu0 %2610
      %v2612 = vmul.f32 %v2605, %v941
      %v2613 = vmul.f32 %v2608, %v941
      %v2614 = vmul.f32 %v2611, %v941
      %v2615 = vadd.f32 %v2612, 1e-05
      %v2616 = vadd.f32 %v2613, 1e-05
      %v2617 = vadd.f32 %v2614, 1e-05
      %v2618 = vrsqrt.pop %v2615
      %v2619 = vrsqrt.pop %v2616
      %v2620 = vrsqrt.pop %v2617
      %v2621 = vmul.f32 %v2597, %v2618
      %v2622 = vmul.f32 %v2598, %v2619
      %v2623 = vmul.f32 %v2599, %v2620
      %v2625 = vlaneseq
      %v2626 = vshrl.u32 %v2625, 7
      %v2627 = vsub.s32 0, %v2626
      %v2628 = vrot.slane %v2582, %v2627
      %v2630 = vmul.f32 %v2621, %v2628
      %v2631 = vmul.f32 %v2622, %v2628
      %v2632 = vmul.f32 %v2623, %v2628
      %v2634 = vlaneseq
      %v2635 = vshrl.u32 %v2634, 7
      %v2636 = vsub.s32 0, %v2635
      %v2637 = vrot.slane %v2584, %v2636
      %v2639 = vadd.f32 %v2630, %v2637
      %v2640 = vadd.f32 %v2631, %v2637
      %v2641 = vadd.f32 %v2632, %v2637
      %v2642 = vpack.c.bf16 %v2640, %v2639
      %v2643 = vpack.c.bf16 %v2641, %v2641
      %s2644 = scalar_lea.vmem %s7, 16
      %v2645 = vld [vmem:[%s2644] sm:$0xf]
      %v2646 = vld [vmem:[%s2644 + $0x4] sm:$0xf]
      %v2647 = vld [vmem:[%s2644 + $0x8] sm:$0xf]
      %v2648 = vld [vmem:[%s2644 + $0xc] sm:$0xf]
      %s2649 = scalar_lea.vmem %s8, 1
      %v2650 = vld [vmem:[%s2649] sm:$0x1]
      %v2652 = vlaneseq
      %v2653 = vshrl.u32 %v2652, 7
      %v2654 = vsub.s32 0, %v2653
      %v2655 = vrot.slane %v2650, %v2654
      %v2661 = vunpack.c.l.b16 %v2645
      %v2662 = vunpack.c.l.b16 %v2646
      %v2663 = vunpack.c.l.b16 %v2647
      %v2664 = vunpack.c.l.b16 %v2648
      %v2665 = vpack.c.b16 %v2662, %v2661
      %v2666 = vpack.c.b16 %v2664, %v2663
      %v2670 = vsel %vm931, %v2642, 0
      %v2673 = vsel %vm931, %v2643, 0
      %2675 = vmatprep.subr.bf16.mxu0 0
      %2676 = vmatpush1.bf16.msra.mxu0 %v2665
      %2677 = vmatprep.subr.bf16.mxu0 0
      %2678 = vmatpush1.bf16.msra.mxu0 %v2666
      %2679 = vmatprep.subr.bf16.mxu0 0
      %2680 = vmatpush1.bf16.msra.mxu0 0
      %2681 = vmatprep.subr.bf16.mxu0 0
      %2682 = vmatpush1.bf16.msra.mxu0 0
      %2683 = vmatprep.subr.bf16.mxu0 0
      %2684 = vmatpush1.bf16.msra.mxu0 0
      %2685 = vmatprep.subr.bf16.mxu0 0
      %2686 = vmatpush1.bf16.msra.mxu0 0
      %2687 = vmatprep.subr.bf16.mxu0 0
      %2688 = vmatpush1.bf16.msra.mxu0 0
      %2689 = vmatprep.subr.bf16.mxu0 0
      %2690 = vmatpush1.bf16.msra.mxu0 0
      %2691 = vmatprep.subr.bf16.mxu0 0
      %2692 = vmatpush1.bf16.msra.mxu0 0
      %2693 = vmatprep.subr.bf16.mxu0 0
      %2694 = vmatpush1.bf16.msra.mxu0 0
      %2695 = vmatprep.subr.bf16.mxu0 0
      %2696 = vmatpush1.bf16.msra.mxu0 0
      %2697 = vmatprep.subr.bf16.mxu0 0
      %2698 = vmatpush1.bf16.msra.mxu0 0
      %2699 = vmatprep.subr.bf16.mxu0 0
      %2700 = vmatpush1.bf16.msra.mxu0 0
      %2701 = vmatprep.subr.bf16.mxu0 0
      %2702 = vmatpush1.bf16.msra.mxu0 0
      %2703 = vmatprep.subr.bf16.mxu0 0
      %2704 = vmatpush1.bf16.msra.mxu0 0
      %2705 = vmatprep.subr.bf16.mxu0 0
      %2706 = vmatpush1.bf16.msra.mxu0 0
      %2707 = vmatprep.mubr.bf16.mxu0 0
      %2708 = vmatmul.mubr.bf16.gmra.mrb[0].mxu0 %v2670
      %v2709 = vpop.f32.mrb[0].mxu0
      %v2710 = vadd.f32 %v2655, %v2709
      %v2711 = vpop.f32.mrb[0].mxu0
      %v2712 = vpop.f32.mrb[0].mxu0
      %v2713 = vadd.f32 %v2655, %v2712
      %v2714 = vpop.f32.mrb[0].mxu0
      %2715 = vmatprep.mubr.bf16.mxu0 0
      %2716 = vmatmul.mubr.bf16.gmra.mrb[0].mxu0 %v2673
      %v2717 = vpop.f32.mrb[0].mxu0
      %v2718 = vadd.f32 %v2655, %v2717
      %v2719 = vpop.f32.mrb[0].mxu0
      %v2720 = vpop.f32.mrb[0].mxu0
      %v2721 = vpop.f32.mrb[0].mxu0
      %2722 = vdwg.mxu0
      %s2723 = scalar_lea.vmem %s9, 16
      %v2724 = vld [vmem:[%s2723] sm:$0xf]
      %v2725 = vld [vmem:[%s2723 + $0x4] sm:$0xf]
      %v2726 = vld [vmem:[%s2723 + $0x8] sm:$0xf]
      %v2727 = vld [vmem:[%s2723 + $0xc] sm:$0xf]
      %2731 = vrot.lane.b32.xlu0 %v2710, 96
      %v2732 = vpop.permute.xlu0 %2731
      %2733 = vrot.lane.b32.xlu0 %v2713, 96
      %v2734 = vpop.permute.xlu0 %2733
      %2735 = vrot.lane.b32.xlu0 %v2718, 96
      %v2736 = vpop.permute.xlu0 %2735
      %v2737 = vsel %vm1082, %v2710, 0
      %v2739 = vsel %vm1082, %v2713, 0
      %v2741 = vsel %vm1082, %v2718, 0
      %v2743 = vsel %vm1082, %v2732, 0
      %v2745 = vsel %vm1082, %v2734, 0
      %v2747 = vsel %vm1082, %v2736, 0
      %2749 = vmatprep.subr.mxu0 0.0
      %2750 = vmatpush1.xpose.msra.mxu0 %v2743
      %2751 = vmatprep.subr.mxu0 0.0
      %2752 = vmatpush1.xpose.msra.mxu0 %v2745
      %2753 = vmatprep.subr.mxu0 0.0
      %2754 = vmatpush1.xpose.msra.mxu0 %v2747
      %2755 = vmatprep.subr.mxu0 0.0
      %2756 = vmatpush1.xpose.msra.mxu0 0.0
      %2757 = vmatprep.subr.mxu0 0.0
      %2758 = vmatpush1.xpose.msra.mxu0 0.0
      %2759 = vmatprep.subr.mxu0 0.0
      %2760 = vmatpush1.xpose.msra.mxu0 0.0
      %2761 = vmatprep.subr.mxu0 0.0
      %2762 = vmatpush1.xpose.msra.mxu0 0.0
      %2763 = vmatprep.subr.mxu0 0.0
      %2764 = vmatpush1.xpose.msra.mxu0 0.0
      %2765 = vmatprep.subr.mxu0 0.0
      %2766 = vmatpush1.xpose.msra.mxu0 0.0
      %2767 = vmatprep.subr.mxu0 0.0
      %2768 = vmatpush1.xpose.msra.mxu0 0.0
      %2769 = vmatprep.subr.mxu0 0.0
      %2770 = vmatpush1.xpose.msra.mxu0 0.0
      %2771 = vmatprep.subr.mxu0 0.0
      %2772 = vmatpush1.xpose.msra.mxu0 0.0
      %2773 = vmatprep.subr.mxu0 0.0
      %2774 = vmatpush1.xpose.msra.mxu0 0.0
      %2775 = vmatprep.subr.mxu0 0.0
      %2776 = vmatpush1.xpose.msra.mxu0 0.0
      %2777 = vmatprep.subr.mxu0 0.0
      %2778 = vmatpush1.xpose.msra.mxu0 0.0
      %2779 = vmatprep.subr.mxu0 0.0
      %2780 = vmatpush1.xpose.msra.mxu0 0.0
      %2781 = vmatprep.subr.mxu0 0.0
      %2782 = vmatpush1.xpose.msra.mxu0 0.0
      %2783 = vmatprep.subr.mxu0 0.0
      %2784 = vmatpush1.xpose.msra.mxu0 0.0
      %2785 = vmatprep.subr.mxu0 0.0
      %2786 = vmatpush1.xpose.msra.mxu0 0.0
      %2787 = vmatprep.subr.mxu0 0.0
      %2788 = vmatpush1.xpose.msra.mxu0 0.0
      %2789 = vmatprep.subr.mxu0 0.0
      %2790 = vmatpush1.xpose.msra.mxu0 0.0
      %2791 = vmatprep.subr.mxu0 0.0
      %2792 = vmatpush1.xpose.msra.mxu0 0.0
      %2793 = vmatprep.subr.mxu0 0.0
      %2794 = vmatpush1.xpose.msra.mxu0 0.0
      %2795 = vmatprep.subr.mxu0 0.0
      %2796 = vmatpush1.xpose.msra.mxu0 0.0
      %2797 = vmatprep.subr.mxu0 0.0
      %2798 = vmatpush1.xpose.msra.mxu0 0.0
      %2799 = vmatprep.subr.mxu0 0.0
      %2800 = vmatpush1.xpose.msra.mxu0 0.0
      %2801 = vmatprep.subr.mxu0 0.0
      %2802 = vmatpush1.xpose.msra.mxu0 0.0
      %2803 = vmatprep.subr.mxu0 0.0
      %2804 = vmatpush1.xpose.msra.mxu0 0.0
      %2805 = vmatprep.subr.mxu0 0.0
      %2806 = vmatpush1.xpose.msra.mxu0 0.0
      %2807 = vmatprep.subr.mxu0 0.0
      %2808 = vmatpush1.xpose.msra.mxu0 0.0
      %2809 = vmatprep.subr.mxu0 0.0
      %2810 = vmatpush1.xpose.msra.mxu0 0.0
      %2811 = vmatprep.subr.mxu0 0.0
      %2812 = vmatpush1.xpose.msra.mxu0 0.0
      %2813 = vmatprep.mubr.f32.mxu0 0.0
      %2814 = vmatmul.mubr.f32.gmra.mrb[0].mxu0 %v2737
      %v2815 = vpop.f32.mrb[0].mxu0
      %v2816 = vadd.f32 0.0, %v2815
      %v2817 = vpop.f32.mrb[0].mxu0
      %2818 = vmatprep.mubr.f32.mxu0 0.0
      %2819 = vmatmul.mubr.f32.gmra.mrb[0].mxu0 %v2739
      %v2820 = vpop.f32.mrb[0].mxu0
      %v2821 = vadd.f32 0.0, %v2820
      %v2822 = vpop.f32.mrb[0].mxu0
      %2823 = vmatprep.mubr.f32.mxu0 0.0
      %2824 = vmatmul.mubr.f32.gmra.mrb[0].mxu0 %v2741
      %v2825 = vpop.f32.mrb[0].mxu0
      %v2826 = vadd.f32 0.0, %v2825
      %v2827 = vpop.f32.mrb[0].mxu0
      %2828 = vdwg.mxu0
      %v2829 = vmul.f32 %v2816, 0.35355338
      %v2830 = vmul.f32 %v2821, 0.35355338
      %v2831 = vmul.f32 %v2826, 0.35355338
      %v2832 = vsel %vm926, %v2829, -1e+30
      %v2833 = vsel %vm927, %v2830, -1e+30
      %v2834 = vsel %vm928, %v2831, -1e+30
      %v2835 = vsel %vm1181, %v2832, -inf
      %2836 = vmax.xlane.f32.xlu0 %v2835
      %v2837 = vpop.xlane.xlu0 %2836
      %v2838 = vsel %vm1181, %v2833, -inf
      %2839 = vmax.xlane.f32.xlu0 %v2838
      %v2840 = vpop.xlane.xlu0 %2839
      %v2841 = vsel %vm1181, %v2834, -inf
      %2842 = vmax.xlane.f32.xlu0 %v2841
      %v2843 = vpop.xlane.xlu0 %2842
      %v2844 = vsub.f32 %v2832, %v2837
      %v2845 = vsub.f32 %v2833, %v2840
      %v2846 = vsub.f32 %v2834, %v2843
      %v2847 = vmul.f32 %v2844, 1.442695
      %v2848 = vpow.pop %v2847
      %v2849 = vmul.f32 %v2845, 1.442695
      %v2850 = vpow.pop %v2849
      %v2851 = vmul.f32 %v2846, 1.442695
      %v2852 = vpow.pop %v2851
      %v2853 = vsel %vm1181, %v2848, 0.0
      %2854 = vadd.xlane.f32.xlu0 %v2853
      %v2855 = vpop.xlane.xlu0 %2854
      %v2856 = vsel %vm1181, %v2850, 0.0
      %2857 = vadd.xlane.f32.xlu0 %v2856
      %v2858 = vpop.xlane.xlu0 %2857
      %v2859 = vsel %vm1181, %v2852, 0.0
      %2860 = vadd.xlane.f32.xlu0 %v2859
      %v2861 = vpop.xlane.xlu0 %2860
      %v2862 = vrcp.pop %v2855
      %v2863 = vrcp.pop %v2858
      %v2864 = vrcp.pop %v2861
      %v2865 = vmul.f32 %v2848, %v2862
      %v2866 = vmul.f32 %v2850, %v2863
      %v2867 = vmul.f32 %v2852, %v2864
      %2868 = vrot.lane.b32.xlu0 %v2710, 64
      %v2869 = vpop.permute.xlu0 %2868
      %2870 = vrot.lane.b32.xlu0 %v2713, 64
      %v2871 = vpop.permute.xlu0 %2870
      %2872 = vrot.lane.b32.xlu0 %v2718, 64
      %v2873 = vpop.permute.xlu0 %2872
      %v2878 = vsel %vm1181, %v2865, 0
      %v2881 = vsel %vm1181, %v2866, 0
      %v2884 = vsel %vm1181, %v2867, 0
      %2886 = vmatprep.subr.mxu0 0.0
      %2887 = vmatpush1.msra.mxu0 %v2869
      %2888 = vmatprep.subr.mxu0 0.0
      %2889 = vmatpush1.msra.mxu0 %v2871
      %2890 = vmatprep.subr.mxu0 0.0
      %2891 = vmatpush1.msra.mxu0 %v2873
      %2892 = vmatprep.subr.mxu0 0.0
      %2893 = vmatpush1.msra.mxu0 0.0
      %2894 = vmatprep.subr.mxu0 0.0
      %2895 = vmatpush1.msra.mxu0 0.0
      %2896 = vmatprep.subr.mxu0 0.0
      %2897 = vmatpush1.msra.mxu0 0.0
      %2898 = vmatprep.subr.mxu0 0.0
      %2899 = vmatpush1.msra.mxu0 0.0
      %2900 = vmatprep.subr.mxu0 0.0
      %2901 = vmatpush1.msra.mxu0 0.0
      %2902 = vmatprep.subr.mxu0 0.0
      %2903 = vmatpush1.msra.mxu0 0.0
      %2904 = vmatprep.subr.mxu0 0.0
      %2905 = vmatpush1.msra.mxu0 0.0
      %2906 = vmatprep.subr.mxu0 0.0
      %2907 = vmatpush1.msra.mxu0 0.0
      %2908 = vmatprep.subr.mxu0 0.0
      %2909 = vmatpush1.msra.mxu0 0.0
      %2910 = vmatprep.subr.mxu0 0.0
      %2911 = vmatpush1.msra.mxu0 0.0
      %2912 = vmatprep.subr.mxu0 0.0
      %2913 = vmatpush1.msra.mxu0 0.0
      %2914 = vmatprep.subr.mxu0 0.0
      %2915 = vmatpush1.msra.mxu0 0.0
      %2916 = vmatprep.subr.mxu0 0.0
      %2917 = vmatpush1.msra.mxu0 0.0
      %2918 = vmatprep.subr.mxu0 0.0
      %2919 = vmatpush1.msra.mxu0 0.0
      %2920 = vmatprep.subr.mxu0 0.0
      %2921 = vmatpush1.msra.mxu0 0.0
      %2922 = vmatprep.subr.mxu0 0.0
      %2923 = vmatpush1.msra.mxu0 0.0
      %2924 = vmatprep.subr.mxu0 0.0
      %2925 = vmatpush1.msra.mxu0 0.0
      %2926 = vmatprep.subr.mxu0 0.0
      %2927 = vmatpush1.msra.mxu0 0.0
      %2928 = vmatprep.subr.mxu0 0.0
      %2929 = vmatpush1.msra.mxu0 0.0
      %2930 = vmatprep.subr.mxu0 0.0
      %2931 = vmatpush1.msra.mxu0 0.0
      %2932 = vmatprep.subr.mxu0 0.0
      %2933 = vmatpush1.msra.mxu0 0.0
      %2934 = vmatprep.subr.mxu0 0.0
      %2935 = vmatpush1.msra.mxu0 0.0
      %2936 = vmatprep.subr.mxu0 0.0
      %2937 = vmatpush1.msra.mxu0 0.0
      %2938 = vmatprep.subr.mxu0 0.0
      %2939 = vmatpush1.msra.mxu0 0.0
      %2940 = vmatprep.subr.mxu0 0.0
      %2941 = vmatpush1.msra.mxu0 0.0
      %2942 = vmatprep.subr.mxu0 0.0
      %2943 = vmatpush1.msra.mxu0 0.0
      %2944 = vmatprep.subr.mxu0 0.0
      %2945 = vmatpush1.msra.mxu0 0.0
      %2946 = vmatprep.subr.mxu0 0.0
      %2947 = vmatpush1.msra.mxu0 0.0
      %2948 = vmatprep.subr.mxu0 0.0
      %2949 = vmatpush1.msra.mxu0 0.0
      %2950 = vmatprep.mubr.f32.mxu0 0.0
      %2951 = vmatmul.mubr.f32.gmra.mrb[0].mxu0 %v2878
      %v2952 = vpop.f32.mrb[0].mxu0
      %v2953 = vadd.f32 0.0, %v2952
      %v2954 = vpop.f32.mrb[0].mxu0
      %2955 = vmatprep.mubr.f32.mxu0 0.0
      %2956 = vmatmul.mubr.f32.gmra.mrb[0].mxu0 %v2881
      %v2957 = vpop.f32.mrb[0].mxu0
      %v2958 = vadd.f32 0.0, %v2957
      %v2959 = vpop.f32.mrb[0].mxu0
      %2960 = vmatprep.mubr.f32.mxu0 0.0
      %2961 = vmatmul.mubr.f32.gmra.mrb[0].mxu0 %v2884
      %v2962 = vpop.f32.mrb[0].mxu0
      %v2963 = vadd.f32 0.0, %v2962
      %v2964 = vpop.f32.mrb[0].mxu0
      %2965 = vdwg.mxu0
      %v2966 = vpack.c.bf16 %v2958, %v2953
      %v2967 = vpack.c.bf16 %v2963, %v2963
      %2968 = vrot.lane.b32.xlu0 %v2710, 120
      %v2969 = vpop.permute.xlu0 %2968
      %2970 = vrot.lane.b32.xlu0 %v2713, 120
      %v2971 = vpop.permute.xlu0 %2970
      %2972 = vrot.lane.b32.xlu0 %v2718, 120
      %v2973 = vpop.permute.xlu0 %2972
      %2974 = vrot.lane.b32.xlu0 %v2710, 88
      %v2975 = vpop.permute.xlu0 %2974
      %2976 = vrot.lane.b32.xlu0 %v2713, 88
      %v2977 = vpop.permute.xlu0 %2976
      %2978 = vrot.lane.b32.xlu0 %v2718, 88
      %v2979 = vpop.permute.xlu0 %2978
      %v2980 = vsel %vm1082, %v2969, 0
      %v2982 = vsel %vm1082, %v2971, 0
      %v2984 = vsel %vm1082, %v2973, 0
      %v2986 = vsel %vm1082, %v2975, 0
      %v2988 = vsel %vm1082, %v2977, 0
      %v2990 = vsel %vm1082, %v2979, 0
      %2992 = vmatprep.subr.mxu0 0.0
      %2993 = vmatpush1.xpose.msra.mxu0 %v2986
      %2994 = vmatprep.subr.mxu0 0.0
      %2995 = vmatpush1.xpose.msra.mxu0 %v2988
      %2996 = vmatprep.subr.mxu0 0.0
      %2997 = vmatpush1.xpose.msra.mxu0 %v2990
      %2998 = vmatprep.subr.mxu0 0.0
      %2999 = vmatpush1.xpose.msra.mxu0 0.0
      %3000 = vmatprep.subr.mxu0 0.0
      %3001 = vmatpush1.xpose.msra.mxu0 0.0
      %3002 = vmatprep.subr.mxu0 0.0
      %3003 = vmatpush1.xpose.msra.mxu0 0.0
      %3004 = vmatprep.subr.mxu0 0.0
      %3005 = vmatpush1.xpose.msra.mxu0 0.0
      %3006 = vmatprep.subr.mxu0 0.0
      %3007 = vmatpush1.xpose.msra.mxu0 0.0
      %3008 = vmatprep.subr.mxu0 0.0
      %3009 = vmatpush1.xpose.msra.mxu0 0.0
      %3010 = vmatprep.subr.mxu0 0.0
      %3011 = vmatpush1.xpose.msra.mxu0 0.0
      %3012 = vmatprep.subr.mxu0 0.0
      %3013 = vmatpush1.xpose.msra.mxu0 0.0
      %3014 = vmatprep.subr.mxu0 0.0
      %3015 = vmatpush1.xpose.msra.mxu0 0.0
      %3016 = vmatprep.subr.mxu0 0.0
      %3017 = vmatpush1.xpose.msra.mxu0 0.0
      %3018 = vmatprep.subr.mxu0 0.0
      %3019 = vmatpush1.xpose.msra.mxu0 0.0
      %3020 = vmatprep.subr.mxu0 0.0
      %3021 = vmatpush1.xpose.msra.mxu0 0.0
      %3022 = vmatprep.subr.mxu0 0.0
      %3023 = vmatpush1.xpose.msra.mxu0 0.0
      %3024 = vmatprep.subr.mxu0 0.0
      %3025 = vmatpush1.xpose.msra.mxu0 0.0
      %3026 = vmatprep.subr.mxu0 0.0
      %3027 = vmatpush1.xpose.msra.mxu0 0.0
      %3028 = vmatprep.subr.mxu0 0.0
      %3029 = vmatpush1.xpose.msra.mxu0 0.0
      %3030 = vmatprep.subr.mxu0 0.0
      %3031 = vmatpush1.xpose.msra.mxu0 0.0
      %3032 = vmatprep.subr.mxu0 0.0
      %3033 = vmatpush1.xpose.msra.mxu0 0.0
      %3034 = vmatprep.subr.mxu0 0.0
      %3035 = vmatpush1.xpose.msra.mxu0 0.0
      %3036 = vmatprep.subr.mxu0 0.0
      %3037 = vmatpush1.xpose.msra.mxu0 0.0
      %3038 = vmatprep.subr.mxu0 0.0
      %3039 = vmatpush1.xpose.msra.mxu0 0.0
      %3040 = vmatprep.subr.mxu0 0.0
      %3041 = vmatpush1.xpose.msra.mxu0 0.0
      %3042 = vmatprep.subr.mxu0 0.0
      %3043 = vmatpush1.xpose.msra.mxu0 0.0
      %3044 = vmatprep.subr.mxu0 0.0
      %3045 = vmatpush1.xpose.msra.mxu0 0.0
      %3046 = vmatprep.subr.mxu0 0.0
      %3047 = vmatpush1.xpose.msra.mxu0 0.0
      %3048 = vmatprep.subr.mxu0 0.0
      %3049 = vmatpush1.xpose.msra.mxu0 0.0
      %3050 = vmatprep.subr.mxu0 0.0
      %3051 = vmatpush1.xpose.msra.mxu0 0.0
      %3052 = vmatprep.subr.mxu0 0.0
      %3053 = vmatpush1.xpose.msra.mxu0 0.0
      %3054 = vmatprep.subr.mxu0 0.0
      %3055 = vmatpush1.xpose.msra.mxu0 0.0
      %3056 = vmatprep.mubr.f32.mxu0 0.0
      %3057 = vmatmul.mubr.f32.gmra.mrb[0].mxu0 %v2980
      %v3058 = vpop.f32.mrb[0].mxu0
      %v3059 = vadd.f32 0.0, %v3058
      %v3060 = vpop.f32.mrb[0].mxu0
      %3061 = vmatprep.mubr.f32.mxu0 0.0
      %3062 = vmatmul.mubr.f32.gmra.mrb[0].mxu0 %v2982
      %v3063 = vpop.f32.mrb[0].mxu0
      %v3064 = vadd.f32 0.0, %v3063
      %v3065 = vpop.f32.mrb[0].mxu0
      %3066 = vmatprep.mubr.f32.mxu0 0.0
      %3067 = vmatmul.mubr.f32.gmra.mrb[0].mxu0 %v2984
      %v3068 = vpop.f32.mrb[0].mxu0
      %v3069 = vadd.f32 0.0, %v3068
      %v3070 = vpop.f32.mrb[0].mxu0
      %3071 = vdwg.mxu0
      %v3072 = vmul.f32 %v3059, 0.35355338
      %v3073 = vmul.f32 %v3064, 0.35355338
      %v3074 = vmul.f32 %v3069, 0.35355338
      %v3075 = vsel %vm926, %v3072, -1e+30
      %v3076 = vsel %vm927, %v3073, -1e+30
      %v3077 = vsel %vm928, %v3074, -1e+30
      %v3078 = vsel %vm1181, %v3075, -inf
      %3079 = vmax.xlane.f32.xlu0 %v3078
      %v3080 = vpop.xlane.xlu0 %3079
      %v3081 = vsel %vm1181, %v3076, -inf
      %3082 = vmax.xlane.f32.xlu0 %v3081
      %v3083 = vpop.xlane.xlu0 %3082
      %v3084 = vsel %vm1181, %v3077, -inf
      %3085 = vmax.xlane.f32.xlu0 %v3084
      %v3086 = vpop.xlane.xlu0 %3085
      %v3087 = vsub.f32 %v3075, %v3080
      %v3088 = vsub.f32 %v3076, %v3083
      %v3089 = vsub.f32 %v3077, %v3086
      %v3090 = vmul.f32 %v3087, 1.442695
      %v3091 = vpow.pop %v3090
      %v3092 = vmul.f32 %v3088, 1.442695
      %v3093 = vpow.pop %v3092
      %v3094 = vmul.f32 %v3089, 1.442695
      %v3095 = vpow.pop %v3094
      %v3096 = vsel %vm1181, %v3091, 0.0
      %3097 = vadd.xlane.f32.xlu0 %v3096
      %v3098 = vpop.xlane.xlu0 %3097
      %v3099 = vsel %vm1181, %v3093, 0.0
      %3100 = vadd.xlane.f32.xlu0 %v3099
      %v3101 = vpop.xlane.xlu0 %3100
      %v3102 = vsel %vm1181, %v3095, 0.0
      %3103 = vadd.xlane.f32.xlu0 %v3102
      %v3104 = vpop.xlane.xlu0 %3103
      %v3105 = vrcp.pop %v3098
      %v3106 = vrcp.pop %v3101
      %v3107 = vrcp.pop %v3104
      %v3108 = vmul.f32 %v3091, %v3105
      %v3109 = vmul.f32 %v3093, %v3106
      %v3110 = vmul.f32 %v3095, %v3107
      %3111 = vrot.lane.b32.xlu0 %v2710, 56
      %v3112 = vpop.permute.xlu0 %3111
      %3113 = vrot.lane.b32.xlu0 %v2713, 56
      %v3114 = vpop.permute.xlu0 %3113
      %3115 = vrot.lane.b32.xlu0 %v2718, 56
      %v3116 = vpop.permute.xlu0 %3115
      %v3121 = vsel %vm1181, %v3108, 0
      %v3124 = vsel %vm1181, %v3109, 0
      %v3127 = vsel %vm1181, %v3110, 0
      %3129 = vmatprep.subr.mxu0 0.0
      %3130 = vmatpush1.msra.mxu0 %v3112
      %3131 = vmatprep.subr.mxu0 0.0
      %3132 = vmatpush1.msra.mxu0 %v3114
      %3133 = vmatprep.subr.mxu0 0.0
      %3134 = vmatpush1.msra.mxu0 %v3116
      %3135 = vmatprep.subr.mxu0 0.0
      %3136 = vmatpush1.msra.mxu0 0.0
      %3137 = vmatprep.subr.mxu0 0.0
      %3138 = vmatpush1.msra.mxu0 0.0
      %3139 = vmatprep.subr.mxu0 0.0
      %3140 = vmatpush1.msra.mxu0 0.0
      %3141 = vmatprep.subr.mxu0 0.0
      %3142 = vmatpush1.msra.mxu0 0.0
      %3143 = vmatprep.subr.mxu0 0.0
      %3144 = vmatpush1.msra.mxu0 0.0
      %3145 = vmatprep.subr.mxu0 0.0
      %3146 = vmatpush1.msra.mxu0 0.0
      %3147 = vmatprep.subr.mxu0 0.0
      %3148 = vmatpush1.msra.mxu0 0.0
      %3149 = vmatprep.subr.mxu0 0.0
      %3150 = vmatpush1.msra.mxu0 0.0
      %3151 = vmatprep.subr.mxu0 0.0
      %3152 = vmatpush1.msra.mxu0 0.0
      %3153 = vmatprep.subr.mxu0 0.0
      %3154 = vmatpush1.msra.mxu0 0.0
      %3155 = vmatprep.subr.mxu0 0.0
      %3156 = vmatpush1.msra.mxu0 0.0
      %3157 = vmatprep.subr.mxu0 0.0
      %3158 = vmatpush1.msra.mxu0 0.0
      %3159 = vmatprep.subr.mxu0 0.0
      %3160 = vmatpush1.msra.mxu0 0.0
      %3161 = vmatprep.subr.mxu0 0.0
      %3162 = vmatpush1.msra.mxu0 0.0
      %3163 = vmatprep.subr.mxu0 0.0
      %3164 = vmatpush1.msra.mxu0 0.0
      %3165 = vmatprep.subr.mxu0 0.0
      %3166 = vmatpush1.msra.mxu0 0.0
      %3167 = vmatprep.subr.mxu0 0.0
      %3168 = vmatpush1.msra.mxu0 0.0
      %3169 = vmatprep.subr.mxu0 0.0
      %3170 = vmatpush1.msra.mxu0 0.0
      %3171 = vmatprep.subr.mxu0 0.0
      %3172 = vmatpush1.msra.mxu0 0.0
      %3173 = vmatprep.subr.mxu0 0.0
      %3174 = vmatpush1.msra.mxu0 0.0
      %3175 = vmatprep.subr.mxu0 0.0
      %3176 = vmatpush1.msra.mxu0 0.0
      %3177 = vmatprep.subr.mxu0 0.0
      %3178 = vmatpush1.msra.mxu0 0.0
      %3179 = vmatprep.subr.mxu0 0.0
      %3180 = vmatpush1.msra.mxu0 0.0
      %3181 = vmatprep.subr.mxu0 0.0
      %3182 = vmatpush1.msra.mxu0 0.0
      %3183 = vmatprep.subr.mxu0 0.0
      %3184 = vmatpush1.msra.mxu0 0.0
      %3185 = vmatprep.subr.mxu0 0.0
      %3186 = vmatpush1.msra.mxu0 0.0
      %3187 = vmatprep.subr.mxu0 0.0
      %3188 = vmatpush1.msra.mxu0 0.0
      %3189 = vmatprep.subr.mxu0 0.0
      %3190 = vmatpush1.msra.mxu0 0.0
      %3191 = vmatprep.subr.mxu0 0.0
      %3192 = vmatpush1.msra.mxu0 0.0
      %3193 = vmatprep.mubr.f32.mxu0 0.0
      %3194 = vmatmul.mubr.f32.gmra.mrb[0].mxu0 %v3121
      %v3195 = vpop.f32.mrb[0].mxu0
      %v3196 = vadd.f32 0.0, %v3195
      %v3197 = vpop.f32.mrb[0].mxu0
      %3198 = vmatprep.mubr.f32.mxu0 0.0
      %3199 = vmatmul.mubr.f32.gmra.mrb[0].mxu0 %v3124
      %v3200 = vpop.f32.mrb[0].mxu0
      %v3201 = vadd.f32 0.0, %v3200
      %v3202 = vpop.f32.mrb[0].mxu0
      %3203 = vmatprep.mubr.f32.mxu0 0.0
      %3204 = vmatmul.mubr.f32.gmra.mrb[0].mxu0 %v3127
      %v3205 = vpop.f32.mrb[0].mxu0
      %v3206 = vadd.f32 0.0, %v3205
      %v3207 = vpop.f32.mrb[0].mxu0
      %3208 = vdwg.mxu0
      %v3209 = vpack.c.bf16 %v3201, %v3196
      %v3210 = vpack.c.bf16 %v3206, %v3206
      %v3212 = vsel %vm1082, %v3209, 0
      %v3215 = vsel %vm1082, %v3210, 0
      %v3218 = vsel %vm1564, %v2725, 0
      %3220 = vmatprep.subr.bf16.mxu0 0
      %3221 = vmatpush1.bf16.msra.mxu0 %v3218
      %3222 = vmatprep.subr.bf16.mxu0 0
      %3223 = vmatpush1.bf16.msra.mxu0 0
      %3224 = vmatprep.subr.bf16.mxu0 0
      %3225 = vmatpush1.bf16.msra.mxu0 0
      %3226 = vmatprep.subr.bf16.mxu0 0
      %3227 = vmatpush1.bf16.msra.mxu0 0
      %3228 = vmatprep.subr.bf16.mxu0 0
      %3229 = vmatpush1.bf16.msra.mxu0 0
      %3230 = vmatprep.subr.bf16.mxu0 0
      %3231 = vmatpush1.bf16.msra.mxu0 0
      %3232 = vmatprep.subr.bf16.mxu0 0
      %3233 = vmatpush1.bf16.msra.mxu0 0
      %3234 = vmatprep.subr.bf16.mxu0 0
      %3235 = vmatpush1.bf16.msra.mxu0 0
      %3236 = vmatprep.subr.bf16.mxu0 0
      %3237 = vmatpush1.bf16.msra.mxu0 0
      %3238 = vmatprep.subr.bf16.mxu0 0
      %3239 = vmatpush1.bf16.msra.mxu0 0
      %3240 = vmatprep.subr.bf16.mxu0 0
      %3241 = vmatpush1.bf16.msra.mxu0 0
      %3242 = vmatprep.subr.bf16.mxu0 0
      %3243 = vmatpush1.bf16.msra.mxu0 0
      %3244 = vmatprep.subr.bf16.mxu0 0
      %3245 = vmatpush1.bf16.msra.mxu0 0
      %3246 = vmatprep.subr.bf16.mxu0 0
      %3247 = vmatpush1.bf16.msra.mxu0 0
      %3248 = vmatprep.subr.bf16.mxu0 0
      %3249 = vmatpush1.bf16.msra.mxu0 0
      %3250 = vmatprep.subr.bf16.mxu0 0
      %3251 = vmatpush1.bf16.msra.mxu0 0
      %3252 = vmatprep.mubr.bf16.mxu0 0
      %3253 = vmatmul.mubr.bf16.gmra.mrb[0].mxu0 %v3212
      %v3254 = vpop.f32.mrb[0].mxu0
      %v3255 = vadd.f32 0.0, %v3254
      %v3256 = vpop.f32.mrb[0].mxu0
      %v3257 = vpop.f32.mrb[0].mxu0
      %v3258 = vadd.f32 0.0, %v3257
      %v3259 = vpop.f32.mrb[0].mxu0
      %3260 = vmatprep.mubr.bf16.mxu0 0
      %3261 = vmatmul.mubr.bf16.gmra.mrb[0].mxu0 %v3215
      %v3262 = vpop.f32.mrb[0].mxu0
      %v3263 = vadd.f32 0.0, %v3262
      %v3264 = vpop.f32.mrb[0].mxu0
      %v3265 = vpop.f32.mrb[0].mxu0
      %v3266 = vpop.f32.mrb[0].mxu0
      %3267 = vdwg.mxu0
      %v3269 = vsel %vm1082, %v2966, 0
      %v3272 = vsel %vm1082, %v2967, 0
      %v3275 = vsel %vm1564, %v2724, 0
      %3277 = vmatprep.subr.bf16.mxu0 0
      %3278 = vmatpush1.bf16.msra.mxu0 %v3275
      %3279 = vmatprep.subr.bf16.mxu0 0
      %3280 = vmatpush1.bf16.msra.mxu0 0
      %3281 = vmatprep.subr.bf16.mxu0 0
      %3282 = vmatpush1.bf16.msra.mxu0 0
      %3283 = vmatprep.subr.bf16.mxu0 0
      %3284 = vmatpush1.bf16.msra.mxu0 0
      %3285 = vmatprep.subr.bf16.mxu0 0
      %3286 = vmatpush1.bf16.msra.mxu0 0
      %3287 = vmatprep.subr.bf16.mxu0 0
      %3288 = vmatpush1.bf16.msra.mxu0 0
      %3289 = vmatprep.subr.bf16.mxu0 0
      %3290 = vmatpush1.bf16.msra.mxu0 0
      %3291 = vmatprep.subr.bf16.mxu0 0
      %3292 = vmatpush1.bf16.msra.mxu0 0
      %3293 = vmatprep.subr.bf16.mxu0 0
      %3294 = vmatpush1.bf16.msra.mxu0 0
      %3295 = vmatprep.subr.bf16.mxu0 0
      %3296 = vmatpush1.bf16.msra.mxu0 0
      %3297 = vmatprep.subr.bf16.mxu0 0
      %3298 = vmatpush1.bf16.msra.mxu0 0
      %3299 = vmatprep.subr.bf16.mxu0 0
      %3300 = vmatpush1.bf16.msra.mxu0 0
      %3301 = vmatprep.subr.bf16.mxu0 0
      %3302 = vmatpush1.bf16.msra.mxu0 0
      %3303 = vmatprep.subr.bf16.mxu0 0
      %3304 = vmatpush1.bf16.msra.mxu0 0
      %3305 = vmatprep.subr.bf16.mxu0 0
      %3306 = vmatpush1.bf16.msra.mxu0 0
      %3307 = vmatprep.subr.bf16.mxu0 0
      %3308 = vmatpush1.bf16.msra.mxu0 0
      %3309 = vmatprep.mubr.bf16.mxu0 0
      %3310 = vmatmul.mubr.bf16.gmra.mrb[0].mxu0 %v3269
      %v3311 = vpop.f32.mrb[0].mxu0
      %v3312 = vadd.f32 %v3255, %v3311
      %v3313 = vpop.f32.mrb[0].mxu0
      %v3314 = vpop.f32.mrb[0].mxu0
      %v3315 = vadd.f32 %v3258, %v3314
      %v3316 = vpop.f32.mrb[0].mxu0
      %3317 = vmatprep.mubr.bf16.mxu0 0
      %3318 = vmatmul.mubr.bf16.gmra.mrb[0].mxu0 %v3272
      %v3319 = vpop.f32.mrb[0].mxu0
      %v3320 = vadd.f32 %v3263, %v3319
      %v3321 = vpop.f32.mrb[0].mxu0
      %v3322 = vpop.f32.mrb[0].mxu0
      %v3323 = vpop.f32.mrb[0].mxu0
      %3324 = vdwg.mxu0
      %3325 = vrot.lane.b32.xlu0 %v2710, 112
      %v3326 = vpop.permute.xlu0 %3325
      %3327 = vrot.lane.b32.xlu0 %v2713, 112
      %v3328 = vpop.permute.xlu0 %3327
      %3329 = vrot.lane.b32.xlu0 %v2718, 112
      %v3330 = vpop.permute.xlu0 %3329
      %3331 = vrot.lane.b32.xlu0 %v2710, 80
      %v3332 = vpop.permute.xlu0 %3331
      %3333 = vrot.lane.b32.xlu0 %v2713, 80
      %v3334 = vpop.permute.xlu0 %3333
      %3335 = vrot.lane.b32.xlu0 %v2718, 80
      %v3336 = vpop.permute.xlu0 %3335
      %v3337 = vsel %vm1082, %v3326, 0
      %v3339 = vsel %vm1082, %v3328, 0
      %v3341 = vsel %vm1082, %v3330, 0
      %v3343 = vsel %vm1082, %v3332, 0
      %v3345 = vsel %vm1082, %v3334, 0
      %v3347 = vsel %vm1082, %v3336, 0
      %3349 = vmatprep.subr.mxu0 0.0
      %3350 = vmatpush1.xpose.msra.mxu0 %v3343
      %3351 = vmatprep.subr.mxu0 0.0
      %3352 = vmatpush1.xpose.msra.mxu0 %v3345
      %3353 = vmatprep.subr.mxu0 0.0
      %3354 = vmatpush1.xpose.msra.mxu0 %v3347
      %3355 = vmatprep.subr.mxu0 0.0
      %3356 = vmatpush1.xpose.msra.mxu0 0.0
      %3357 = vmatprep.subr.mxu0 0.0
      %3358 = vmatpush1.xpose.msra.mxu0 0.0
      %3359 = vmatprep.subr.mxu0 0.0
      %3360 = vmatpush1.xpose.msra.mxu0 0.0
      %3361 = vmatprep.subr.mxu0 0.0
      %3362 = vmatpush1.xpose.msra.mxu0 0.0
      %3363 = vmatprep.subr.mxu0 0.0
      %3364 = vmatpush1.xpose.msra.mxu0 0.0
      %3365 = vmatprep.subr.mxu0 0.0
      %3366 = vmatpush1.xpose.msra.mxu0 0.0
      %3367 = vmatprep.subr.mxu0 0.0
      %3368 = vmatpush1.xpose.msra.mxu0 0.0
      %3369 = vmatprep.subr.mxu0 0.0
      %3370 = vmatpush1.xpose.msra.mxu0 0.0
      %3371 = vmatprep.subr.mxu0 0.0
      %3372 = vmatpush1.xpose.msra.mxu0 0.0
      %3373 = vmatprep.subr.mxu0 0.0
      %3374 = vmatpush1.xpose.msra.mxu0 0.0
      %3375 = vmatprep.subr.mxu0 0.0
      %3376 = vmatpush1.xpose.msra.mxu0 0.0
      %3377 = vmatprep.subr.mxu0 0.0
      %3378 = vmatpush1.xpose.msra.mxu0 0.0
      %3379 = vmatprep.subr.mxu0 0.0
      %3380 = vmatpush1.xpose.msra.mxu0 0.0
      %3381 = vmatprep.subr.mxu0 0.0
      %3382 = vmatpush1.xpose.msra.mxu0 0.0
      %3383 = vmatprep.subr.mxu0 0.0
      %3384 = vmatpush1.xpose.msra.mxu0 0.0
      %3385 = vmatprep.subr.mxu0 0.0
      %3386 = vmatpush1.xpose.msra.mxu0 0.0
      %3387 = vmatprep.subr.mxu0 0.0
      %3388 = vmatpush1.xpose.msra.mxu0 0.0
      %3389 = vmatprep.subr.mxu0 0.0
      %3390 = vmatpush1.xpose.msra.mxu0 0.0
      %3391 = vmatprep.subr.mxu0 0.0
      %3392 = vmatpush1.xpose.msra.mxu0 0.0
      %3393 = vmatprep.subr.mxu0 0.0
      %3394 = vmatpush1.xpose.msra.mxu0 0.0
      %3395 = vmatprep.subr.mxu0 0.0
      %3396 = vmatpush1.xpose.msra.mxu0 0.0
      %3397 = vmatprep.subr.mxu0 0.0
      %3398 = vmatpush1.xpose.msra.mxu0 0.0
      %3399 = vmatprep.subr.mxu0 0.0
      %3400 = vmatpush1.xpose.msra.mxu0 0.0
      %3401 = vmatprep.subr.mxu0 0.0
      %3402 = vmatpush1.xpose.msra.mxu0 0.0
      %3403 = vmatprep.subr.mxu0 0.0
      %3404 = vmatpush1.xpose.msra.mxu0 0.0
      %3405 = vmatprep.subr.mxu0 0.0
      %3406 = vmatpush1.xpose.msra.mxu0 0.0
      %3407 = vmatprep.subr.mxu0 0.0
      %3408 = vmatpush1.xpose.msra.mxu0 0.0
      %3409 = vmatprep.subr.mxu0 0.0
      %3410 = vmatpush1.xpose.msra.mxu0 0.0
      %3411 = vmatprep.subr.mxu0 0.0
      %3412 = vmatpush1.xpose.msra.mxu0 0.0
      %3413 = vmatprep.mubr.f32.mxu0 0.0
      %3414 = vmatmul.mubr.f32.gmra.mrb[0].mxu0 %v3337
      %v3415 = vpop.f32.mrb[0].mxu0
      %v3416 = vadd.f32 0.0, %v3415
      %v3417 = vpop.f32.mrb[0].mxu0
      %3418 = vmatprep.mubr.f32.mxu0 0.0
      %3419 = vmatmul.mubr.f32.gmra.mrb[0].mxu0 %v3339
      %v3420 = vpop.f32.mrb[0].mxu0
      %v3421 = vadd.f32 0.0, %v3420
      %v3422 = vpop.f32.mrb[0].mxu0
      %3423 = vmatprep.mubr.f32.mxu0 0.0
      %3424 = vmatmul.mubr.f32.gmra.mrb[0].mxu0 %v3341
      %v3425 = vpop.f32.mrb[0].mxu0
      %v3426 = vadd.f32 0.0, %v3425
      %v3427 = vpop.f32.mrb[0].mxu0
      %3428 = vdwg.mxu0
      %v3429 = vmul.f32 %v3416, 0.35355338
      %v3430 = vmul.f32 %v3421, 0.35355338
      %v3431 = vmul.f32 %v3426, 0.35355338
      %v3432 = vsel %vm926, %v3429, -1e+30
      %v3433 = vsel %vm927, %v3430, -1e+30
      %v3434 = vsel %vm928, %v3431, -1e+30
      %v3435 = vsel %vm1181, %v3432, -inf
      %3436 = vmax.xlane.f32.xlu0 %v3435
      %v3437 = vpop.xlane.xlu0 %3436
      %v3438 = vsel %vm1181, %v3433, -inf
      %3439 = vmax.xlane.f32.xlu0 %v3438
      %v3440 = vpop.xlane.xlu0 %3439
      %v3441 = vsel %vm1181, %v3434, -inf
      %3442 = vmax.xlane.f32.xlu0 %v3441
      %v3443 = vpop.xlane.xlu0 %3442
      %v3444 = vsub.f32 %v3432, %v3437
      %v3445 = vsub.f32 %v3433, %v3440
      %v3446 = vsub.f32 %v3434, %v3443
      %v3447 = vmul.f32 %v3444, 1.442695
      %v3448 = vpow.pop %v3447
      %v3449 = vmul.f32 %v3445, 1.442695
      %v3450 = vpow.pop %v3449
      %v3451 = vmul.f32 %v3446, 1.442695
      %v3452 = vpow.pop %v3451
      %v3453 = vsel %vm1181, %v3448, 0.0
      %3454 = vadd.xlane.f32.xlu0 %v3453
      %v3455 = vpop.xlane.xlu0 %3454
      %v3456 = vsel %vm1181, %v3450, 0.0
      %3457 = vadd.xlane.f32.xlu0 %v3456
      %v3458 = vpop.xlane.xlu0 %3457
      %v3459 = vsel %vm1181, %v3452, 0.0
      %3460 = vadd.xlane.f32.xlu0 %v3459
      %v3461 = vpop.xlane.xlu0 %3460
      %v3462 = vrcp.pop %v3455
      %v3463 = vrcp.pop %v3458
      %v3464 = vrcp.pop %v3461
      %v3465 = vmul.f32 %v3448, %v3462
      %v3466 = vmul.f32 %v3450, %v3463
      %v3467 = vmul.f32 %v3452, %v3464
      %3468 = vrot.lane.b32.xlu0 %v2710, 48
      %v3469 = vpop.permute.xlu0 %3468
      %3470 = vrot.lane.b32.xlu0 %v2713, 48
      %v3471 = vpop.permute.xlu0 %3470
      %3472 = vrot.lane.b32.xlu0 %v2718, 48
      %v3473 = vpop.permute.xlu0 %3472
      %v3478 = vsel %vm1181, %v3465, 0
      %v3481 = vsel %vm1181, %v3466, 0
      %v3484 = vsel %vm1181, %v3467, 0
      %3486 = vmatprep.subr.mxu0 0.0
      %3487 = vmatpush1.msra.mxu0 %v3469
      %3488 = vmatprep.subr.mxu0 0.0
      %3489 = vmatpush1.msra.mxu0 %v3471
      %3490 = vmatprep.subr.mxu0 0.0
      %3491 = vmatpush1.msra.mxu0 %v3473
      %3492 = vmatprep.subr.mxu0 0.0
      %3493 = vmatpush1.msra.mxu0 0.0
      %3494 = vmatprep.subr.mxu0 0.0
      %3495 = vmatpush1.msra.mxu0 0.0
      %3496 = vmatprep.subr.mxu0 0.0
      %3497 = vmatpush1.msra.mxu0 0.0
      %3498 = vmatprep.subr.mxu0 0.0
      %3499 = vmatpush1.msra.mxu0 0.0
      %3500 = vmatprep.subr.mxu0 0.0
      %3501 = vmatpush1.msra.mxu0 0.0
      %3502 = vmatprep.subr.mxu0 0.0
      %3503 = vmatpush1.msra.mxu0 0.0
      %3504 = vmatprep.subr.mxu0 0.0
      %3505 = vmatpush1.msra.mxu0 0.0
      %3506 = vmatprep.subr.mxu0 0.0
      %3507 = vmatpush1.msra.mxu0 0.0
      %3508 = vmatprep.subr.mxu0 0.0
      %3509 = vmatpush1.msra.mxu0 0.0
      %3510 = vmatprep.subr.mxu0 0.0
      %3511 = vmatpush1.msra.mxu0 0.0
      %3512 = vmatprep.subr.mxu0 0.0
      %3513 = vmatpush1.msra.mxu0 0.0
      %3514 = vmatprep.subr.mxu0 0.0
      %3515 = vmatpush1.msra.mxu0 0.0
      %3516 = vmatprep.subr.mxu0 0.0
      %3517 = vmatpush1.msra.mxu0 0.0
      %3518 = vmatprep.subr.mxu0 0.0
      %3519 = vmatpush1.msra.mxu0 0.0
      %3520 = vmatprep.subr.mxu0 0.0
      %3521 = vmatpush1.msra.mxu0 0.0
      %3522 = vmatprep.subr.mxu0 0.0
      %3523 = vmatpush1.msra.mxu0 0.0
      %3524 = vmatprep.subr.mxu0 0.0
      %3525 = vmatpush1.msra.mxu0 0.0
      %3526 = vmatprep.subr.mxu0 0.0
      %3527 = vmatpush1.msra.mxu0 0.0
      %3528 = vmatprep.subr.mxu0 0.0
      %3529 = vmatpush1.msra.mxu0 0.0
      %3530 = vmatprep.subr.mxu0 0.0
      %3531 = vmatpush1.msra.mxu0 0.0
      %3532 = vmatprep.subr.mxu0 0.0
      %3533 = vmatpush1.msra.mxu0 0.0
      %3534 = vmatprep.subr.mxu0 0.0
      %3535 = vmatpush1.msra.mxu0 0.0
      %3536 = vmatprep.subr.mxu0 0.0
      %3537 = vmatpush1.msra.mxu0 0.0
      %3538 = vmatprep.subr.mxu0 0.0
      %3539 = vmatpush1.msra.mxu0 0.0
      %3540 = vmatprep.subr.mxu0 0.0
      %3541 = vmatpush1.msra.mxu0 0.0
      %3542 = vmatprep.subr.mxu0 0.0
      %3543 = vmatpush1.msra.mxu0 0.0
      %3544 = vmatprep.subr.mxu0 0.0
      %3545 = vmatpush1.msra.mxu0 0.0
      %3546 = vmatprep.subr.mxu0 0.0
      %3547 = vmatpush1.msra.mxu0 0.0
      %3548 = vmatprep.subr.mxu0 0.0
      %3549 = vmatpush1.msra.mxu0 0.0
      %3550 = vmatprep.mubr.f32.mxu0 0.0
      %3551 = vmatmul.mubr.f32.gmra.mrb[0].mxu0 %v3478
      %v3552 = vpop.f32.mrb[0].mxu0
      %v3553 = vadd.f32 0.0, %v3552
      %v3554 = vpop.f32.mrb[0].mxu0
      %3555 = vmatprep.mubr.f32.mxu0 0.0
      %3556 = vmatmul.mubr.f32.gmra.mrb[0].mxu0 %v3481
      %v3557 = vpop.f32.mrb[0].mxu0
      %v3558 = vadd.f32 0.0, %v3557
      %v3559 = vpop.f32.mrb[0].mxu0
      %3560 = vmatprep.mubr.f32.mxu0 0.0
      %3561 = vmatmul.mubr.f32.gmra.mrb[0].mxu0 %v3484
      %v3562 = vpop.f32.mrb[0].mxu0
      %v3563 = vadd.f32 0.0, %v3562
      %v3564 = vpop.f32.mrb[0].mxu0
      %3565 = vdwg.mxu0
      %v3566 = vpack.c.bf16 %v3558, %v3553
      %v3567 = vpack.c.bf16 %v3563, %v3563
      %v3569 = vsel %vm1082, %v3566, 0
      %v3572 = vsel %vm1082, %v3567, 0
      %v3575 = vsel %vm1564, %v2726, 0
      %3577 = vmatprep.subr.bf16.mxu0 0
      %3578 = vmatpush1.bf16.msra.mxu0 %v3575
      %3579 = vmatprep.subr.bf16.mxu0 0
      %3580 = vmatpush1.bf16.msra.mxu0 0
      %3581 = vmatprep.subr.bf16.mxu0 0
      %3582 = vmatpush1.bf16.msra.mxu0 0
      %3583 = vmatprep.subr.bf16.mxu0 0
      %3584 = vmatpush1.bf16.msra.mxu0 0
      %3585 = vmatprep.subr.bf16.mxu0 0
      %3586 = vmatpush1.bf16.msra.mxu0 0
      %3587 = vmatprep.subr.bf16.mxu0 0
      %3588 = vmatpush1.bf16.msra.mxu0 0
      %3589 = vmatprep.subr.bf16.mxu0 0
      %3590 = vmatpush1.bf16.msra.mxu0 0
      %3591 = vmatprep.subr.bf16.mxu0 0
      %3592 = vmatpush1.bf16.msra.mxu0 0
      %3593 = vmatprep.subr.bf16.mxu0 0
      %3594 = vmatpush1.bf16.msra.mxu0 0
      %3595 = vmatprep.subr.bf16.mxu0 0
      %3596 = vmatpush1.bf16.msra.mxu0 0
      %3597 = vmatprep.subr.bf16.mxu0 0
      %3598 = vmatpush1.bf16.msra.mxu0 0
      %3599 = vmatprep.subr.bf16.mxu0 0
      %3600 = vmatpush1.bf16.msra.mxu0 0
      %3601 = vmatprep.subr.bf16.mxu0 0
      %3602 = vmatpush1.bf16.msra.mxu0 0
      %3603 = vmatprep.subr.bf16.mxu0 0
      %3604 = vmatpush1.bf16.msra.mxu0 0
      %3605 = vmatprep.subr.bf16.mxu0 0
      %3606 = vmatpush1.bf16.msra.mxu0 0
      %3607 = vmatprep.subr.bf16.mxu0 0
      %3608 = vmatpush1.bf16.msra.mxu0 0
      %3609 = vmatprep.mubr.bf16.mxu0 0
      %3610 = vmatmul.mubr.bf16.gmra.mrb[0].mxu0 %v3569
      %v3611 = vpop.f32.mrb[0].mxu0
      %v3612 = vadd.f32 0.0, %v3611
      %v3613 = vpop.f32.mrb[0].mxu0
      %v3614 = vpop.f32.mrb[0].mxu0
      %v3615 = vadd.f32 0.0, %v3614
      %v3616 = vpop.f32.mrb[0].mxu0
      %3617 = vmatprep.mubr.bf16.mxu0 0
      %3618 = vmatmul.mubr.bf16.gmra.mrb[0].mxu0 %v3572
      %v3619 = vpop.f32.mrb[0].mxu0
      %v3620 = vadd.f32 0.0, %v3619
      %v3621 = vpop.f32.mrb[0].mxu0
      %v3622 = vpop.f32.mrb[0].mxu0
      %v3623 = vpop.f32.mrb[0].mxu0
      %3624 = vdwg.mxu0
      %v3625 = vadd.f32 %v3312, %v3612
      %v3626 = vadd.f32 %v3315, %v3615
      %v3627 = vadd.f32 %v3320, %v3620
      %3628 = vrot.lane.b32.xlu0 %v2710, 104
      %v3629 = vpop.permute.xlu0 %3628
      %3630 = vrot.lane.b32.xlu0 %v2713, 104
      %v3631 = vpop.permute.xlu0 %3630
      %3632 = vrot.lane.b32.xlu0 %v2718, 104
      %v3633 = vpop.permute.xlu0 %3632
      %3634 = vrot.lane.b32.xlu0 %v2710, 72
      %v3635 = vpop.permute.xlu0 %3634
      %3636 = vrot.lane.b32.xlu0 %v2713, 72
      %v3637 = vpop.permute.xlu0 %3636
      %3638 = vrot.lane.b32.xlu0 %v2718, 72
      %v3639 = vpop.permute.xlu0 %3638
      %v3640 = vsel %vm1082, %v3629, 0
      %v3642 = vsel %vm1082, %v3631, 0
      %v3644 = vsel %vm1082, %v3633, 0
      %v3646 = vsel %vm1082, %v3635, 0
      %v3648 = vsel %vm1082, %v3637, 0
      %v3650 = vsel %vm1082, %v3639, 0
      %3652 = vmatprep.subr.mxu0 0.0
      %3653 = vmatpush1.xpose.msra.mxu0 %v3646
      %3654 = vmatprep.subr.mxu0 0.0
      %3655 = vmatpush1.xpose.msra.mxu0 %v3648
      %3656 = vmatprep.subr.mxu0 0.0
      %3657 = vmatpush1.xpose.msra.mxu0 %v3650
      %3658 = vmatprep.subr.mxu0 0.0
      %3659 = vmatpush1.xpose.msra.mxu0 0.0
      %3660 = vmatprep.subr.mxu0 0.0
      %3661 = vmatpush1.xpose.msra.mxu0 0.0
      %3662 = vmatprep.subr.mxu0 0.0
      %3663 = vmatpush1.xpose.msra.mxu0 0.0
      %3664 = vmatprep.subr.mxu0 0.0
      %3665 = vmatpush1.xpose.msra.mxu0 0.0
      %3666 = vmatprep.subr.mxu0 0.0
      %3667 = vmatpush1.xpose.msra.mxu0 0.0
      %3668 = vmatprep.subr.mxu0 0.0
      %3669 = vmatpush1.xpose.msra.mxu0 0.0
      %3670 = vmatprep.subr.mxu0 0.0
      %3671 = vmatpush1.xpose.msra.mxu0 0.0
      %3672 = vmatprep.subr.mxu0 0.0
      %3673 = vmatpush1.xpose.msra.mxu0 0.0
      %3674 = vmatprep.subr.mxu0 0.0
      %3675 = vmatpush1.xpose.msra.mxu0 0.0
      %3676 = vmatprep.subr.mxu0 0.0
      %3677 = vmatpush1.xpose.msra.mxu0 0.0
      %3678 = vmatprep.subr.mxu0 0.0
      %3679 = vmatpush1.xpose.msra.mxu0 0.0
      %3680 = vmatprep.subr.mxu0 0.0
      %3681 = vmatpush1.xpose.msra.mxu0 0.0
      %3682 = vmatprep.subr.mxu0 0.0
      %3683 = vmatpush1.xpose.msra.mxu0 0.0
      %3684 = vmatprep.subr.mxu0 0.0
      %3685 = vmatpush1.xpose.msra.mxu0 0.0
      %3686 = vmatprep.subr.mxu0 0.0
      %3687 = vmatpush1.xpose.msra.mxu0 0.0
      %3688 = vmatprep.subr.mxu0 0.0
      %3689 = vmatpush1.xpose.msra.mxu0 0.0
      %3690 = vmatprep.subr.mxu0 0.0
      %3691 = vmatpush1.xpose.msra.mxu0 0.0
      %3692 = vmatprep.subr.mxu0 0.0
      %3693 = vmatpush1.xpose.msra.mxu0 0.0
      %3694 = vmatprep.subr.mxu0 0.0
      %3695 = vmatpush1.xpose.msra.mxu0 0.0
      %3696 = vmatprep.subr.mxu0 0.0
      %3697 = vmatpush1.xpose.msra.mxu0 0.0
      %3698 = vmatprep.subr.mxu0 0.0
      %3699 = vmatpush1.xpose.msra.mxu0 0.0
      %3700 = vmatprep.subr.mxu0 0.0
      %3701 = vmatpush1.xpose.msra.mxu0 0.0
      %3702 = vmatprep.subr.mxu0 0.0
      %3703 = vmatpush1.xpose.msra.mxu0 0.0
      %3704 = vmatprep.subr.mxu0 0.0
      %3705 = vmatpush1.xpose.msra.mxu0 0.0
      %3706 = vmatprep.subr.mxu0 0.0
      %3707 = vmatpush1.xpose.msra.mxu0 0.0
      %3708 = vmatprep.subr.mxu0 0.0
      %3709 = vmatpush1.xpose.msra.mxu0 0.0
      %3710 = vmatprep.subr.mxu0 0.0
      %3711 = vmatpush1.xpose.msra.mxu0 0.0
      %3712 = vmatprep.subr.mxu0 0.0
      %3713 = vmatpush1.xpose.msra.mxu0 0.0
      %3714 = vmatprep.subr.mxu0 0.0
      %3715 = vmatpush1.xpose.msra.mxu0 0.0
      %3716 = vmatprep.mubr.f32.mxu0 0.0
      %3717 = vmatmul.mubr.f32.gmra.mrb[0].mxu0 %v3640
      %v3718 = vpop.f32.mrb[0].mxu0
      %v3719 = vadd.f32 0.0, %v3718
      %v3720 = vpop.f32.mrb[0].mxu0
      %3721 = vmatprep.mubr.f32.mxu0 0.0
      %3722 = vmatmul.mubr.f32.gmra.mrb[0].mxu0 %v3642
      %v3723 = vpop.f32.mrb[0].mxu0
      %v3724 = vadd.f32 0.0, %v3723
      %v3725 = vpop.f32.mrb[0].mxu0
      %3726 = vmatprep.mubr.f32.mxu0 0.0
      %3727 = vmatmul.mubr.f32.gmra.mrb[0].mxu0 %v3644
      %v3728 = vpop.f32.mrb[0].mxu0
      %v3729 = vadd.f32 0.0, %v3728
      %v3730 = vpop.f32.mrb[0].mxu0
      %3731 = vdwg.mxu0
      %v3732 = vmul.f32 %v3719, 0.35355338
      %v3733 = vmul.f32 %v3724, 0.35355338
      %v3734 = vmul.f32 %v3729, 0.35355338
      %v3735 = vsel %vm926, %v3732, -1e+30
      %v3736 = vsel %vm927, %v3733, -1e+30
      %v3737 = vsel %vm928, %v3734, -1e+30
      %v3738 = vsel %vm1181, %v3735, -inf
      %3739 = vmax.xlane.f32.xlu0 %v3738
      %v3740 = vpop.xlane.xlu0 %3739
      %v3741 = vsel %vm1181, %v3736, -inf
      %3742 = vmax.xlane.f32.xlu0 %v3741
      %v3743 = vpop.xlane.xlu0 %3742
      %v3744 = vsel %vm1181, %v3737, -inf
      %3745 = vmax.xlane.f32.xlu0 %v3744
      %v3746 = vpop.xlane.xlu0 %3745
      %v3747 = vsub.f32 %v3735, %v3740
      %v3748 = vsub.f32 %v3736, %v3743
      %v3749 = vsub.f32 %v3737, %v3746
      %v3750 = vmul.f32 %v3747, 1.442695
      %v3751 = vpow.pop %v3750
      %v3752 = vmul.f32 %v3748, 1.442695
      %v3753 = vpow.pop %v3752
      %v3754 = vmul.f32 %v3749, 1.442695
      %v3755 = vpow.pop %v3754
      %v3756 = vsel %vm1181, %v3751, 0.0
      %3757 = vadd.xlane.f32.xlu0 %v3756
      %v3758 = vpop.xlane.xlu0 %3757
      %v3759 = vsel %vm1181, %v3753, 0.0
      %3760 = vadd.xlane.f32.xlu0 %v3759
      %v3761 = vpop.xlane.xlu0 %3760
      %v3762 = vsel %vm1181, %v3755, 0.0
      %3763 = vadd.xlane.f32.xlu0 %v3762
      %v3764 = vpop.xlane.xlu0 %3763
      %v3765 = vrcp.pop %v3758
      %v3766 = vrcp.pop %v3761
      %v3767 = vrcp.pop %v3764
      %v3768 = vmul.f32 %v3751, %v3765
      %v3769 = vmul.f32 %v3753, %v3766
      %v3770 = vmul.f32 %v3755, %v3767
      %3771 = vrot.lane.b32.xlu0 %v2710, 40
      %v3772 = vpop.permute.xlu0 %3771
      %3773 = vrot.lane.b32.xlu0 %v2713, 40
      %v3774 = vpop.permute.xlu0 %3773
      %3775 = vrot.lane.b32.xlu0 %v2718, 40
      %v3776 = vpop.permute.xlu0 %3775
      %v3781 = vsel %vm1181, %v3768, 0
      %v3784 = vsel %vm1181, %v3769, 0
      %v3787 = vsel %vm1181, %v3770, 0
      %3789 = vmatprep.subr.mxu0 0.0
      %3790 = vmatpush1.msra.mxu0 %v3772
      %3791 = vmatprep.subr.mxu0 0.0
      %3792 = vmatpush1.msra.mxu0 %v3774
      %3793 = vmatprep.subr.mxu0 0.0
      %3794 = vmatpush1.msra.mxu0 %v3776
      %3795 = vmatprep.subr.mxu0 0.0
      %3796 = vmatpush1.msra.mxu0 0.0
      %3797 = vmatprep.subr.mxu0 0.0
      %3798 = vmatpush1.msra.mxu0 0.0
      %3799 = vmatprep.subr.mxu0 0.0
      %3800 = vmatpush1.msra.mxu0 0.0
      %3801 = vmatprep.subr.mxu0 0.0
      %3802 = vmatpush1.msra.mxu0 0.0
      %3803 = vmatprep.subr.mxu0 0.0
      %3804 = vmatpush1.msra.mxu0 0.0
      %3805 = vmatprep.subr.mxu0 0.0
      %3806 = vmatpush1.msra.mxu0 0.0
      %3807 = vmatprep.subr.mxu0 0.0
      %3808 = vmatpush1.msra.mxu0 0.0
      %3809 = vmatprep.subr.mxu0 0.0
      %3810 = vmatpush1.msra.mxu0 0.0
      %3811 = vmatprep.subr.mxu0 0.0
      %3812 = vmatpush1.msra.mxu0 0.0
      %3813 = vmatprep.subr.mxu0 0.0
      %3814 = vmatpush1.msra.mxu0 0.0
      %3815 = vmatprep.subr.mxu0 0.0
      %3816 = vmatpush1.msra.mxu0 0.0
      %3817 = vmatprep.subr.mxu0 0.0
      %3818 = vmatpush1.msra.mxu0 0.0
      %3819 = vmatprep.subr.mxu0 0.0
      %3820 = vmatpush1.msra.mxu0 0.0
      %3821 = vmatprep.subr.mxu0 0.0
      %3822 = vmatpush1.msra.mxu0 0.0
      %3823 = vmatprep.subr.mxu0 0.0
      %3824 = vmatpush1.msra.mxu0 0.0
      %3825 = vmatprep.subr.mxu0 0.0
      %3826 = vmatpush1.msra.mxu0 0.0
      %3827 = vmatprep.subr.mxu0 0.0
      %3828 = vmatpush1.msra.mxu0 0.0
      %3829 = vmatprep.subr.mxu0 0.0
      %3830 = vmatpush1.msra.mxu0 0.0
      %3831 = vmatprep.subr.mxu0 0.0
      %3832 = vmatpush1.msra.mxu0 0.0
      %3833 = vmatprep.subr.mxu0 0.0
      %3834 = vmatpush1.msra.mxu0 0.0
      %3835 = vmatprep.subr.mxu0 0.0
      %3836 = vmatpush1.msra.mxu0 0.0
      %3837 = vmatprep.subr.mxu0 0.0
      %3838 = vmatpush1.msra.mxu0 0.0
      %3839 = vmatprep.subr.mxu0 0.0
      %3840 = vmatpush1.msra.mxu0 0.0
      %3841 = vmatprep.subr.mxu0 0.0
      %3842 = vmatpush1.msra.mxu0 0.0
      %3843 = vmatprep.subr.mxu0 0.0
      %3844 = vmatpush1.msra.mxu0 0.0
      %3845 = vmatprep.subr.mxu0 0.0
      %3846 = vmatpush1.msra.mxu0 0.0
      %3847 = vmatprep.subr.mxu0 0.0
      %3848 = vmatpush1.msra.mxu0 0.0
      %3849 = vmatprep.subr.mxu0 0.0
      %3850 = vmatpush1.msra.mxu0 0.0
      %3851 = vmatprep.subr.mxu0 0.0
      %3852 = vmatpush1.msra.mxu0 0.0
      %3853 = vmatprep.mubr.f32.mxu0 0.0
      %3854 = vmatmul.mubr.f32.gmra.mrb[0].mxu0 %v3781
      %v3855 = vpop.f32.mrb[0].mxu0
      %v3856 = vadd.f32 0.0, %v3855
      %v3857 = vpop.f32.mrb[0].mxu0
      %3858 = vmatprep.mubr.f32.mxu0 0.0
      %3859 = vmatmul.mubr.f32.gmra.mrb[0].mxu0 %v3784
      %v3860 = vpop.f32.mrb[0].mxu0
      %v3861 = vadd.f32 0.0, %v3860
      %v3862 = vpop.f32.mrb[0].mxu0
      %3863 = vmatprep.mubr.f32.mxu0 0.0
      %3864 = vmatmul.mubr.f32.gmra.mrb[0].mxu0 %v3787
      %v3865 = vpop.f32.mrb[0].mxu0
      %v3866 = vadd.f32 0.0, %v3865
      %v3867 = vpop.f32.mrb[0].mxu0
      %3868 = vdwg.mxu0
      %v3869 = vpack.c.bf16 %v3861, %v3856
      %v3870 = vpack.c.bf16 %v3866, %v3866
      %v3872 = vsel %vm1082, %v3869, 0
      %v3875 = vsel %vm1082, %v3870, 0
      %v3878 = vsel %vm1564, %v2727, 0
      %3880 = vmatprep.subr.bf16.mxu0 0
      %3881 = vmatpush1.bf16.msra.mxu0 %v3878
      %3882 = vmatprep.subr.bf16.mxu0 0
      %3883 = vmatpush1.bf16.msra.mxu0 0
      %3884 = vmatprep.subr.bf16.mxu0 0
      %3885 = vmatpush1.bf16.msra.mxu0 0
      %3886 = vmatprep.subr.bf16.mxu0 0
      %3887 = vmatpush1.bf16.msra.mxu0 0
      %3888 = vmatprep.subr.bf16.mxu0 0
      %3889 = vmatpush1.bf16.msra.mxu0 0
      %3890 = vmatprep.subr.bf16.mxu0 0
      %3891 = vmatpush1.bf16.msra.mxu0 0
      %3892 = vmatprep.subr.bf16.mxu0 0
      %3893 = vmatpush1.bf16.msra.mxu0 0
      %3894 = vmatprep.subr.bf16.mxu0 0
      %3895 = vmatpush1.bf16.msra.mxu0 0
      %3896 = vmatprep.subr.bf16.mxu0 0
      %3897 = vmatpush1.bf16.msra.mxu0 0
      %3898 = vmatprep.subr.bf16.mxu0 0
      %3899 = vmatpush1.bf16.msra.mxu0 0
      %3900 = vmatprep.subr.bf16.mxu0 0
      %3901 = vmatpush1.bf16.msra.mxu0 0
      %3902 = vmatprep.subr.bf16.mxu0 0
      %3903 = vmatpush1.bf16.msra.mxu0 0
      %3904 = vmatprep.subr.bf16.mxu0 0
      %3905 = vmatpush1.bf16.msra.mxu0 0
      %3906 = vmatprep.subr.bf16.mxu0 0
      %3907 = vmatpush1.bf16.msra.mxu0 0
      %3908 = vmatprep.subr.bf16.mxu0 0
      %3909 = vmatpush1.bf16.msra.mxu0 0
      %3910 = vmatprep.subr.bf16.mxu0 0
      %3911 = vmatpush1.bf16.msra.mxu0 0
      %3912 = vmatprep.mubr.bf16.mxu0 0
      %3913 = vmatmul.mubr.bf16.gmra.mrb[0].mxu0 %v3872
      %v3914 = vpop.f32.mrb[0].mxu0
      %v3915 = vadd.f32 0.0, %v3914
      %v3916 = vpop.f32.mrb[0].mxu0
      %v3917 = vpop.f32.mrb[0].mxu0
      %v3918 = vadd.f32 0.0, %v3917
      %v3919 = vpop.f32.mrb[0].mxu0
      %3920 = vmatprep.mubr.bf16.mxu0 0
      %3921 = vmatmul.mubr.bf16.gmra.mrb[0].mxu0 %v3875
      %v3922 = vpop.f32.mrb[0].mxu0
      %v3923 = vadd.f32 0.0, %v3922
      %v3924 = vpop.f32.mrb[0].mxu0
      %v3925 = vpop.f32.mrb[0].mxu0
      %v3926 = vpop.f32.mrb[0].mxu0
      %3927 = vdwg.mxu0
      %v3928 = vadd.f32 %v3625, %v3915
      %v3929 = vadd.f32 %v3626, %v3918
      %v3930 = vadd.f32 %v3627, %v3923
      %v3931 = vadd.f32 %v2578, %v3928
      %v3932 = vadd.f32 %v2579, %v3929
      %v3933 = vadd.f32 %v2580, %v3930
      %s3934 = scalar_lea.vmem %s10, 1
      %v3935 = vld [vmem:[%s3934] sm:$0x1]
      %v3937 = vlaneseq
      %v3938 = vshrl.u32 %v3937, 7
      %v3939 = vsub.s32 0, %v3938
      %v3940 = vrot.slane %v3935, %v3939
      %v3942 = vadd.f32 %v3931, %v3940
      %v3943 = vadd.f32 %v3932, %v3940
      %v3944 = vadd.f32 %v3933, %v3940
      %s3945 = scalar_lea.vmem %s11, 1
      %v3946 = vld [vmem:[%s3945] sm:$0x1]
      %s3947 = scalar_lea.vmem %s12, 1
      %v3948 = vld [vmem:[%s3947] sm:$0x1]
      %v3949 = vsel %vm931, %v3942, 0.0
      %3950 = vadd.xlane.f32.xlu0 %v3949
      %v3951 = vpop.xlane.xlu0 %3950
      %v3952 = vsel %vm931, %v3943, 0.0
      %3953 = vadd.xlane.f32.xlu0 %v3952
      %v3954 = vpop.xlane.xlu0 %3953
      %v3955 = vsel %vm931, %v3944, 0.0
      %3956 = vadd.xlane.f32.xlu0 %v3955
      %v3957 = vpop.xlane.xlu0 %3956
      %v3958 = vmul.f32 %v3951, %v941
      %v3959 = vmul.f32 %v3954, %v941
      %v3960 = vmul.f32 %v3957, %v941
      %v3961 = vsub.f32 %v3942, %v3958
      %v3962 = vsub.f32 %v3943, %v3959
      %v3963 = vsub.f32 %v3944, %v3960
      %v3964 = vmul.f32 %v3961, %v3961
      %v3965 = vmul.f32 %v3962, %v3962
      %v3966 = vmul.f32 %v3963, %v3963
      %v3967 = vsel %vm931, %v3964, 0.0
      %3968 = vadd.xlane.f32.xlu0 %v3967
      %v3969 = vpop.xlane.xlu0 %3968
      %v3970 = vsel %vm931, %v3965, 0.0
      %3971 = vadd.xlane.f32.xlu0 %v3970
      %v3972 = vpop.xlane.xlu0 %3971
      %v3973 = vsel %vm931, %v3966, 0.0
      %3974 = vadd.xlane.f32.xlu0 %v3973
      %v3975 = vpop.xlane.xlu0 %3974
      %v3976 = vmul.f32 %v3969, %v941
      %v3977 = vmul.f32 %v3972, %v941
      %v3978 = vmul.f32 %v3975, %v941
      %v3979 = vadd.f32 %v3976, 1e-05
      %v3980 = vadd.f32 %v3977, 1e-05
      %v3981 = vadd.f32 %v3978, 1e-05
      %v3982 = vrsqrt.pop %v3979
      %v3983 = vrsqrt.pop %v3980
      %v3984 = vrsqrt.pop %v3981
      %v3985 = vmul.f32 %v3961, %v3982
      %v3986 = vmul.f32 %v3962, %v3983
      %v3987 = vmul.f32 %v3963, %v3984
      %v3989 = vlaneseq
      %v3990 = vshrl.u32 %v3989, 7
      %v3991 = vsub.s32 0, %v3990
      %v3992 = vrot.slane %v3946, %v3991
      %v3994 = vmul.f32 %v3985, %v3992
      %v3995 = vmul.f32 %v3986, %v3992
      %v3996 = vmul.f32 %v3987, %v3992
      %v3998 = vlaneseq
      %v3999 = vshrl.u32 %v3998, 7
      %v4000 = vsub.s32 0, %v3999
      %v4001 = vrot.slane %v3948, %v4000
      %v4003 = vadd.f32 %v3994, %v4001
      %v4004 = vadd.f32 %v3995, %v4001
      %v4005 = vadd.f32 %v3996, %v4001
      %v4006 = vpack.c.bf16 %v4004, %v4003
      %v4007 = vpack.c.bf16 %v4005, %v4005
      %s4008 = scalar_lea.vmem %s13, 16
      %v4009 = vld [vmem:[%s4008] sm:$0xf]
      %v4010 = vld [vmem:[%s4008 + $0x4] sm:$0xf]
      %v4011 = vld [vmem:[%s4008 + $0x8] sm:$0xf]
      %v4012 = vld [vmem:[%s4008 + $0xc] sm:$0xf]
      %s4013 = scalar_lea.vmem %s14, 1
      %v4014 = vld [vmem:[%s4013] sm:$0x1]
      %v4016 = vlaneseq
      %v4017 = vshrl.u32 %v4016, 7
      %v4018 = vsub.s32 0, %v4017
      %v4019 = vrot.slane %v4014, %v4018
      %v4025 = vunpack.c.l.b16 %v4009
      %v4026 = vunpack.c.l.b16 %v4010
      %v4027 = vunpack.c.l.b16 %v4011
      %v4028 = vunpack.c.l.b16 %v4012
      %v4029 = vpack.c.b16 %v4026, %v4025
      %v4030 = vpack.c.b16 %v4028, %v4027
      %v4034 = vsel %vm931, %v4006, 0
      %v4037 = vsel %vm931, %v4007, 0
      %4039 = vmatprep.subr.bf16.mxu0 0
      %4040 = vmatpush1.bf16.msra.mxu0 %v4029
      %4041 = vmatprep.subr.bf16.mxu0 0
      %4042 = vmatpush1.bf16.msra.mxu0 %v4030
      %4043 = vmatprep.subr.bf16.mxu0 0
      %4044 = vmatpush1.bf16.msra.mxu0 0
      %4045 = vmatprep.subr.bf16.mxu0 0
      %4046 = vmatpush1.bf16.msra.mxu0 0
      %4047 = vmatprep.subr.bf16.mxu0 0
      %4048 = vmatpush1.bf16.msra.mxu0 0
      %4049 = vmatprep.subr.bf16.mxu0 0
      %4050 = vmatpush1.bf16.msra.mxu0 0
      %4051 = vmatprep.subr.bf16.mxu0 0
      %4052 = vmatpush1.bf16.msra.mxu0 0
      %4053 = vmatprep.subr.bf16.mxu0 0
      %4054 = vmatpush1.bf16.msra.mxu0 0
      %4055 = vmatprep.subr.bf16.mxu0 0
      %4056 = vmatpush1.bf16.msra.mxu0 0
      %4057 = vmatprep.subr.bf16.mxu0 0
      %4058 = vmatpush1.bf16.msra.mxu0 0
      %4059 = vmatprep.subr.bf16.mxu0 0
      %4060 = vmatpush1.bf16.msra.mxu0 0
      %4061 = vmatprep.subr.bf16.mxu0 0
      %4062 = vmatpush1.bf16.msra.mxu0 0
      %4063 = vmatprep.subr.bf16.mxu0 0
      %4064 = vmatpush1.bf16.msra.mxu0 0
      %4065 = vmatprep.subr.bf16.mxu0 0
      %4066 = vmatpush1.bf16.msra.mxu0 0
      %4067 = vmatprep.subr.bf16.mxu0 0
      %4068 = vmatpush1.bf16.msra.mxu0 0
      %4069 = vmatprep.subr.bf16.mxu0 0
      %4070 = vmatpush1.bf16.msra.mxu0 0
      %4071 = vmatprep.mubr.bf16.mxu0 0
      %4072 = vmatmul.mubr.bf16.gmra.mrb[0].mxu0 %v4034
      %v4073 = vpop.f32.mrb[0].mxu0
      %v4074 = vadd.f32 %v4019, %v4073
      %v4075 = vpop.f32.mrb[0].mxu0
      %v4076 = vpop.f32.mrb[0].mxu0
      %v4077 = vadd.f32 %v4019, %v4076
      %v4078 = vpop.f32.mrb[0].mxu0
      %4079 = vmatprep.mubr.bf16.mxu0 0
      %4080 = vmatmul.mubr.bf16.gmra.mrb[0].mxu0 %v4037
      %v4081 = vpop.f32.mrb[0].mxu0
      %v4082 = vadd.f32 %v4019, %v4081
      %v4083 = vpop.f32.mrb[0].mxu0
      %v4084 = vpop.f32.mrb[0].mxu0
      %v4085 = vpop.f32.mrb[0].mxu0
      %4086 = vdwg.mxu0
      %v4087 = vmul.f32 %v4074, %v4074
      %v4088 = vmul.f32 %v4077, %v4077
      %v4089 = vmul.f32 %v4082, %v4082
      %v4090 = vmul.f32 %v4074, %v4087
      %v4091 = vmul.f32 %v4077, %v4088
      %v4092 = vmul.f32 %v4082, %v4089
      %v4093 = vmul.f32 %v4090, 0.044715
      %v4094 = vmul.f32 %v4091, 0.044715
      %v4095 = vmul.f32 %v4092, 0.044715
      %v4096 = vadd.f32 %v4074, %v4093
      %v4097 = vadd.f32 %v4077, %v4094
      %v4098 = vadd.f32 %v4082, %v4095
      %v4099 = vmul.f32 %v4096, 0.7978846
      %v4100 = vmul.f32 %v4097, 0.7978846
      %v4101 = vmul.f32 %v4098, 0.7978846
      %v4102 = vtanh.pop %v4099
      %v4103 = vtanh.pop %v4100
      %v4104 = vtanh.pop %v4101
      %v4105 = vadd.f32 %v4102, 1.0
      %v4106 = vadd.f32 %v4103, 1.0
      %v4107 = vadd.f32 %v4104, 1.0
      %v4108 = vmul.f32 %v4105, 0.5
      %v4109 = vmul.f32 %v4106, 0.5
      %v4110 = vmul.f32 %v4107, 0.5
      %v4111 = vmul.f32 %v4074, %v4108
      %v4112 = vmul.f32 %v4077, %v4109
      %v4113 = vmul.f32 %v4082, %v4110
      %v4114 = vpack.c.bf16 %v4112, %v4111
      %v4115 = vpack.c.bf16 %v4113, %v4113
      %s4116 = scalar_lea.vmem %s15, 64
      %v4117 = vld [vmem:[%s4116] sm:$0xf]
      %v4118 = vld [vmem:[%s4116 + $0x4] sm:$0xf]
      %v4119 = vld [vmem:[%s4116 + $0x8] sm:$0xf]
      %v4120 = vld [vmem:[%s4116 + $0xc] sm:$0xf]
      %v4121 = vld [vmem:[%s4116 + $0x10] sm:$0xf]
      %v4122 = vld [vmem:[%s4116 + $0x14] sm:$0xf]
      %v4123 = vld [vmem:[%s4116 + $0x18] sm:$0xf]
      %v4124 = vld [vmem:[%s4116 + $0x1c] sm:$0xf]
      %v4125 = vld [vmem:[%s4116 + $0x20] sm:$0xf]
      %v4126 = vld [vmem:[%s4116 + $0x24] sm:$0xf]
      %v4127 = vld [vmem:[%s4116 + $0x28] sm:$0xf]
      %v4128 = vld [vmem:[%s4116 + $0x2c] sm:$0xf]
      %v4129 = vld [vmem:[%s4116 + $0x30] sm:$0xf]
      %v4130 = vld [vmem:[%s4116 + $0x34] sm:$0xf]
      %v4131 = vld [vmem:[%s4116 + $0x38] sm:$0xf]
      %v4132 = vld [vmem:[%s4116 + $0x3c] sm:$0xf]
      %s4133 = scalar_lea.vmem %s16, 1
      %v4134 = vld [vmem:[%s4133] sm:$0x1]
      %v4136 = vlaneseq
      %v4137 = vshrl.u32 %v4136, 7
      %v4138 = vsub.s32 0, %v4137
      %v4139 = vrot.slane %v4134, %v4138
      %v4157 = vunpack.c.l.b16 %v4117
      %v4158 = vunpack.c.l.b16 %v4118
      %v4159 = vunpack.c.l.b16 %v4119
      %v4160 = vunpack.c.l.b16 %v4120
      %v4161 = vunpack.c.l.b16 %v4121
      %v4162 = vunpack.c.l.b16 %v4122
      %v4163 = vunpack.c.l.b16 %v4123
      %v4164 = vunpack.c.l.b16 %v4124
      %v4165 = vunpack.c.l.b16 %v4125
      %v4166 = vunpack.c.l.b16 %v4126
      %v4167 = vunpack.c.l.b16 %v4127
      %v4168 = vunpack.c.l.b16 %v4128
      %v4169 = vunpack.c.l.b16 %v4129
      %v4170 = vunpack.c.l.b16 %v4130
      %v4171 = vunpack.c.l.b16 %v4131
      %v4172 = vunpack.c.l.b16 %v4132
      %v4173 = vpack.c.b16 %v4158, %v4157
      %v4174 = vpack.c.b16 %v4160, %v4159
      %v4175 = vpack.c.b16 %v4162, %v4161
      %v4176 = vpack.c.b16 %v4164, %v4163
      %v4177 = vpack.c.b16 %v4166, %v4165
      %v4178 = vpack.c.b16 %v4168, %v4167
      %v4179 = vpack.c.b16 %v4170, %v4169
      %v4180 = vpack.c.b16 %v4172, %v4171
      %4189 = vmatprep.subr.bf16.mxu0 0
      %4190 = vmatpush1.bf16.msra.mxu0 %v4173
      %4191 = vmatprep.subr.bf16.mxu0 0
      %4192 = vmatpush1.bf16.msra.mxu0 %v4174
      %4193 = vmatprep.subr.bf16.mxu0 0
      %4194 = vmatpush1.bf16.msra.mxu0 %v4175
      %4195 = vmatprep.subr.bf16.mxu0 0
      %4196 = vmatpush1.bf16.msra.mxu0 %v4176
      %4197 = vmatprep.subr.bf16.mxu0 0
      %4198 = vmatpush1.bf16.msra.mxu0 %v4177
      %4199 = vmatprep.subr.bf16.mxu0 0
      %4200 = vmatpush1.bf16.msra.mxu0 %v4178
      %4201 = vmatprep.subr.bf16.mxu0 0
      %4202 = vmatpush1.bf16.msra.mxu0 %v4179
      %4203 = vmatprep.subr.bf16.mxu0 0
      %4204 = vmatpush1.bf16.msra.mxu0 %v4180
      %4205 = vmatprep.subr.bf16.mxu0 0
      %4206 = vmatpush1.bf16.msra.mxu0 0
      %4207 = vmatprep.subr.bf16.mxu0 0
      %4208 = vmatpush1.bf16.msra.mxu0 0
      %4209 = vmatprep.subr.bf16.mxu0 0
      %4210 = vmatpush1.bf16.msra.mxu0 0
      %4211 = vmatprep.subr.bf16.mxu0 0
      %4212 = vmatpush1.bf16.msra.mxu0 0
      %4213 = vmatprep.subr.bf16.mxu0 0
      %4214 = vmatpush1.bf16.msra.mxu0 0
      %4215 = vmatprep.subr.bf16.mxu0 0
      %4216 = vmatpush1.bf16.msra.mxu0 0
      %4217 = vmatprep.subr.bf16.mxu0 0
      %4218 = vmatpush1.bf16.msra.mxu0 0
      %4219 = vmatprep.subr.bf16.mxu0 0
      %4220 = vmatpush1.bf16.msra.mxu0 0
      %4221 = vmatprep.mubr.bf16.mxu0 0
      %4222 = vmatmul.mubr.bf16.gmra.mrb[0].mxu0 %v4114
      %v4223 = vpop.f32.mrb[0].mxu0
      %v4224 = vadd.f32 %v4139, %v4223
      %v4225 = vpop.f32.mrb[0].mxu0
      %v4226 = vpop.f32.mrb[0].mxu0
      %v4227 = vadd.f32 %v4139, %v4226
      %v4228 = vpop.f32.mrb[0].mxu0
      %4229 = vmatprep.mubr.bf16.mxu0 0
      %4230 = vmatmul.mubr.bf16.gmra.mrb[0].mxu0 %v4115
      %v4231 = vpop.f32.mrb[0].mxu0
      %v4232 = vadd.f32 %v4139, %v4231
      %v4233 = vpop.f32.mrb[0].mxu0
      %v4234 = vpop.f32.mrb[0].mxu0
      %v4235 = vpop.f32.mrb[0].mxu0
      %4236 = vdwg.mxu0
      %v4237 = vadd.f32 %v3942, %v4224
      %v4238 = vadd.f32 %v3943, %v4227
      %v4239 = vadd.f32 %v3944, %v4232
      %v4240 = vmul.u32 %v723, 3
      %v4241 = vadd.s32 %v4240, 1
      %vm4242 = vcmp.eq.s32.totalorder %v925, %v4241
      %v4243 = vsel %vm4242, 1, 0
      %v4244 = vcvt.s32.f32 %v4243
      %v4246 = vsel %vm1181, %v4244, 0
      %4248 = vmatprep.subr.mxu0 0.0
      %4249 = vmatpush1.msra.mxu0 %v4237
      %4250 = vmatprep.subr.mxu0 0.0
      %4251 = vmatpush1.msra.mxu0 %v4238
      %4252 = vmatprep.subr.mxu0 0.0
      %4253 = vmatpush1.msra.mxu0 %v4239
      %4254 = vmatprep.subr.mxu0 0.0
      %4255 = vmatpush1.msra.mxu0 0.0
      %4256 = vmatprep.subr.mxu0 0.0
      %4257 = vmatpush1.msra.mxu0 0.0
      %4258 = vmatprep.subr.mxu0 0.0
      %4259 = vmatpush1.msra.mxu0 0.0
      %4260 = vmatprep.subr.mxu0 0.0
      %4261 = vmatpush1.msra.mxu0 0.0
      %4262 = vmatprep.subr.mxu0 0.0
      %4263 = vmatpush1.msra.mxu0 0.0
      %4264 = vmatprep.subr.mxu0 0.0
      %4265 = vmatpush1.msra.mxu0 0.0
      %4266 = vmatprep.subr.mxu0 0.0
      %4267 = vmatpush1.msra.mxu0 0.0
      %4268 = vmatprep.subr.mxu0 0.0
      %4269 = vmatpush1.msra.mxu0 0.0
      %4270 = vmatprep.subr.mxu0 0.0
      %4271 = vmatpush1.msra.mxu0 0.0
      %4272 = vmatprep.subr.mxu0 0.0
      %4273 = vmatpush1.msra.mxu0 0.0
      %4274 = vmatprep.subr.mxu0 0.0
      %4275 = vmatpush1.msra.mxu0 0.0
      %4276 = vmatprep.subr.mxu0 0.0
      %4277 = vmatpush1.msra.mxu0 0.0
      %4278 = vmatprep.subr.mxu0 0.0
      %4279 = vmatpush1.msra.mxu0 0.0
      %4280 = vmatprep.subr.mxu0 0.0
      %4281 = vmatpush1.msra.mxu0 0.0
      %4282 = vmatprep.subr.mxu0 0.0
      %4283 = vmatpush1.msra.mxu0 0.0
      %4284 = vmatprep.subr.mxu0 0.0
      %4285 = vmatpush1.msra.mxu0 0.0
      %4286 = vmatprep.subr.mxu0 0.0
      %4287 = vmatpush1.msra.mxu0 0.0
      %4288 = vmatprep.subr.mxu0 0.0
      %4289 = vmatpush1.msra.mxu0 0.0
      %4290 = vmatprep.subr.mxu0 0.0
      %4291 = vmatpush1.msra.mxu0 0.0
      %4292 = vmatprep.subr.mxu0 0.0
      %4293 = vmatpush1.msra.mxu0 0.0
      %4294 = vmatprep.subr.mxu0 0.0
      %4295 = vmatpush1.msra.mxu0 0.0
      %4296 = vmatprep.subr.mxu0 0.0
      %4297 = vmatpush1.msra.mxu0 0.0
      %4298 = vmatprep.subr.mxu0 0.0
      %4299 = vmatpush1.msra.mxu0 0.0
      %4300 = vmatprep.subr.mxu0 0.0
      %4301 = vmatpush1.msra.mxu0 0.0
      %4302 = vmatprep.subr.mxu0 0.0
      %4303 = vmatpush1.msra.mxu0 0.0
      %4304 = vmatprep.subr.mxu0 0.0
      %4305 = vmatpush1.msra.mxu0 0.0
      %4306 = vmatprep.subr.mxu0 0.0
      %4307 = vmatpush1.msra.mxu0 0.0
      %4308 = vmatprep.subr.mxu0 0.0
      %4309 = vmatpush1.msra.mxu0 0.0
      %4310 = vmatprep.subr.mxu0 0.0
      %4311 = vmatpush1.msra.mxu0 0.0
      %4312 = vmatprep.mubr.f32.mxu0 0.0
      %4313 = vmatmul.mubr.f32.gmra.mrb[0].mxu0 %v4246
      %v4314 = vpop.f32.mrb[0].mxu0
      %v4315 = vadd.f32 0.0, %v4314
      %v4316 = vpop.f32.mrb[0].mxu0
      %4317 = vdwg.mxu0
      %v4318 = vld [vmem:[%s17] sm:$0x1]
      %v4319 = vld [vmem:[%s18] sm:$0x1]
      %v4320 = vsel %vm931, %v4315, 0.0
      %4321 = vadd.xlane.f32.xlu0 %v4320
      %v4322 = vpop.xlane.xlu0 %4321
      %v4323 = vmul.f32 %v4322, %v941
      %v4324 = vsub.f32 %v4315, %v4323
      %v4325 = vmul.f32 %v4324, %v4324
      %v4326 = vsel %vm931, %v4325, 0.0
      %4327 = vadd.xlane.f32.xlu0 %v4326
      %v4328 = vpop.xlane.xlu0 %4327
      %v4329 = vmul.f32 %v4328, %v941
      %v4330 = vadd.f32 %v4329, 1e-05
      %v4331 = vrsqrt.pop %v4330
      %v4332 = vmul.f32 %v4324, %v4331
      %v4334 = vlaneseq
      %v4335 = vshrl.u32 %v4334, 7
      %v4336 = vsub.s32 0, %v4335
      %v4337 = vrot.slane %v4318, %v4336
      %v4339 = vmul.f32 %v4332, %v4337
      %v4341 = vlaneseq
      %v4342 = vshrl.u32 %v4341, 7
      %v4343 = vsub.s32 0, %v4342
      %v4344 = vrot.slane %v4319, %v4343
      %v4346 = vadd.f32 %v4339, %v4344
      %v4347 = vpack.c.bf16 %v4346, %v4346
      %v4348 = vld [vmem:[%s19] sm:$0xf]
      %v4349 = vld [vmem:[%s19 + $0x4] sm:$0xf]
      %v4350 = vld [vmem:[%s19 + $0x8] sm:$0xf]
      %v4351 = vld [vmem:[%s19 + $0xc] sm:$0xf]
      %v4356 = vunpack.c.l.b16 %v4348
      %v4357 = vunpack.c.l.b16 %v4349
      %v4358 = vunpack.c.l.b16 %v4350
      %v4359 = vunpack.c.l.b16 %v4351
      %v4360 = vpack.c.b16 %v4357, %v4356
      %v4361 = vpack.c.b16 %v4359, %v4358
      %v4365 = vsel %vm931, %v4347, 0
      %4367 = vmatprep.subr.bf16.mxu0 0
      %4368 = vmatpush1.bf16.msra.mxu0 %v4360
      %4369 = vmatprep.subr.bf16.mxu0 0
      %4370 = vmatpush1.bf16.msra.mxu0 %v4361
      %4371 = vmatprep.subr.bf16.mxu0 0
      %4372 = vmatpush1.bf16.msra.mxu0 0
      %4373 = vmatprep.subr.bf16.mxu0 0
      %4374 = vmatpush1.bf16.msra.mxu0 0
      %4375 = vmatprep.subr.bf16.mxu0 0
      %4376 = vmatpush1.bf16.msra.mxu0 0
      %4377 = vmatprep.subr.bf16.mxu0 0
      %4378 = vmatpush1.bf16.msra.mxu0 0
      %4379 = vmatprep.subr.bf16.mxu0 0
      %4380 = vmatpush1.bf16.msra.mxu0 0
      %4381 = vmatprep.subr.bf16.mxu0 0
      %4382 = vmatpush1.bf16.msra.mxu0 0
      %4383 = vmatprep.subr.bf16.mxu0 0
      %4384 = vmatpush1.bf16.msra.mxu0 0
      %4385 = vmatprep.subr.bf16.mxu0 0
      %4386 = vmatpush1.bf16.msra.mxu0 0
      %4387 = vmatprep.subr.bf16.mxu0 0
      %4388 = vmatpush1.bf16.msra.mxu0 0
      %4389 = vmatprep.subr.bf16.mxu0 0
      %4390 = vmatpush1.bf16.msra.mxu0 0
      %4391 = vmatprep.subr.bf16.mxu0 0
      %4392 = vmatpush1.bf16.msra.mxu0 0
      %4393 = vmatprep.subr.bf16.mxu0 0
      %4394 = vmatpush1.bf16.msra.mxu0 0
      %4395 = vmatprep.subr.bf16.mxu0 0
      %4396 = vmatpush1.bf16.msra.mxu0 0
      %4397 = vmatprep.subr.bf16.mxu0 0
      %4398 = vmatpush1.bf16.msra.mxu0 0
      %4399 = vmatprep.mubr.bf16.mxu0 0
      %4400 = vmatmul.mubr.bf16.gmra.mrb[0].mxu0 %v4365
      %v4401 = vpop.f32.mrb[0].mxu0
      %v4402 = vadd.f32 0.0, %v4401
      %v4403 = vpop.f32.mrb[0].mxu0
      %v4404 = vpop.f32.mrb[0].mxu0
      %v4405 = vpop.f32.mrb[0].mxu0
      %4406 = vdwg.mxu0
      %vm4407 = vcmask 31744
      %4408 = vst.msk [vmem:[%s709] sm:$0xff] %vm4407, %v4402
      %v4409 = vld [vmem:[%s705] sm:$0xff]
      %vm4410 = vcmp.ne.s32.totalorder %v4409, 4294967286
      %v4411 = vsel %vm4410, %v4409, 0
      %v4412 = vsel %vm4407, %v4402, -inf
      %4413 = vmax.xlane.f32.xlu0 %v4412
      %v4414 = vpop.xlane.xlu0 %4413
      %v4415 = vsub.f32 %v4402, %v4414
      %v4416 = vmul.f32 %v4415, 1.442695
      %v4417 = vpow.pop %v4416
      %v4418 = vsel %vm4407, %v4417, 0.0
      %4419 = vadd.xlane.f32.xlu0 %v4418
      %v4420 = vpop.xlane.xlu0 %4419
      %v4421 = vlog2.pop %v4420
      %v4422 = vmul.f32 %v4421, 0.6931472
      %4423 = vset.pattern.permute.xlu0 0
      %4424 = vperm.xlu0 %4423, %v4411
      %v4425 = vpop.permute.xlu0 %4424
      %vm4426 = vcmp.eq.s32.totalorder %v925, %v4425
      %v4427 = vsel %vm4426, %v4415, 0.0
      %v4428 = vsel %vm4407, %v4427, 0.0
      %4429 = vadd.xlane.f32.xlu0 %v4428
      %v4430 = vpop.xlane.xlu0 %4429
      %v4431 = vsub.f32 %v4422, %v4430
      %v4432 = vsel %vm4410, %v4431, 0.0
      %vm4433 = vcmask 7168
      %v4434 = vsel %vm4433, %v4432, 0.0
      %v4435 = vrot.slane %v4434, 4
      %v4436 = vadd.f32 %v4434, %v4435
      %v4437 = vrot.slane %v4436, 2
      %v4438 = vadd.f32 %v4436, %v4437
      %v4439 = vrot.slane %v4438, 1
      %v4440 = vadd.f32 %v4438, %v4439
      %vm4441 = vcmask 0
      %4442 = vst.msk [vmem:[%s712] sm:$0x1] %vm4441, %v4440
      %v4443 = vsel %vm4410, 1, 0
      %v4444 = vcvt.s32.f32 %v4443
      %v4445 = vsel %vm4433, %v4444, 0.0
      %v4446 = vrot.slane %v4445, 4
      %v4447 = vadd.f32 %v4445, %v4446
      %v4448 = vrot.slane %v4447, 2
      %v4449 = vadd.f32 %v4447, %v4448
      %v4450 = vrot.slane %v4449, 1
      %v4451 = vadd.f32 %v4449, %v4450
      %4452 = vst.msk [vmem:[%s715] sm:$0x1] %vm4441, %v4451
      %p4453 = scmp.lt.s32.totalorder %s34, 1
      %s4454 = scalar_select %p4453, %s34, 1
      %s4455 = smul.addr %s4454, 8
      %s4456 = scalar_lea.vmem %s20, %s4455
      %p4457 = scmp.lt.s32.totalorder %s34, 1
      %s4458 = scalar_select %p4457, %s34, 1
      %s4459 = scalar_lea.vmem %s21, %s4458
      %p4460 = scmp.lt.s32.totalorder %s34, 1
      %s4461 = scalar_select %p4460, %s34, 1
      %s4462 = scalar_lea.vmem %s22, %s4461
      // Predicated region
      $region101: #{gpt_forward.1} parent=99 // pred_check
        %p4463 = pneg %p482
      $region102: #{gpt_forward.1} parent=99 // pred_check_branch
        %4465 = sbr.rel (%p4463) target = $region104
      $region103: #{gpt_forward.1} parent=99 // pred_region
        _
      $region104: #{gpt_forward.1} parent=99 // pred_fallthru
        _
      // Predicated region
      $region105: #{gpt_forward.1} parent=99 // pred_check
        %p4466 = pneg %p508
      $region106: #{gpt_forward.1} parent=99 // pred_check_branch
        %4468 = sbr.rel (%p4466) target = $region108
      $region107: #{gpt_forward.1} parent=99 // pred_region
        _
      $region108: #{gpt_forward.1} parent=99 // pred_fallthru
        _
      // Predicated region
      $region109: #{gpt_forward.1} parent=99 // pred_check
        %p4469 = pneg %p534
      $region110: #{gpt_forward.1} parent=99 // pred_check_branch
        %4471 = sbr.rel (%p4469) target = $region112
      $region111: #{gpt_forward.1} parent=99 // pred_region
        _
      $region112: #{gpt_forward.1} parent=99 // pred_fallthru
        _
    $region100: #{gpt_forward.1} parent=5 // pred_fallthru
      _
    %p4472 = scmp.le.s32.totalorder 2, %s29
    // Predicated region
    $region113: #{gpt_forward.1} parent=5 // pred_check
      %p4473 = pneg %p4472
    $region114: #{gpt_forward.1} parent=5 // pred_check_branch
      %4475 = sbr.rel (%p4473) target = $region116
    $region115: #{gpt_forward.1} parent=5 // pred_region
      %s4476 = ssub.s32 %s29, 2
      // Predicated region
      $region117: #{gpt_forward.1} parent=115 // pred_check
        %p4477 = pneg %p488
      $region118: #{gpt_forward.1} parent=115 // pred_check_branch
        %4479 = sbr.rel (%p4477) target = $region120
      $region119: #{gpt_forward.1} parent=115 // pred_region
        %p4480 = scmp.lt.s32.totalorder %s35, 1
        %s4481 = scalar_select %p4480, %s35, 1
        %s4482 = smul.addr %s4481, 8
        %s4483 = scalar_lea.vmem %s20, %s4482
      $region120: #{gpt_forward.1} parent=115 // pred_fallthru
        _
      // Predicated region
      $region121: #{gpt_forward.1} parent=115 // pred_check
        %p4484 = pneg %p514
      $region122: #{gpt_forward.1} parent=115 // pred_check_branch
        %4486 = sbr.rel (%p4484) target = $region124
      $region123: #{gpt_forward.1} parent=115 // pred_region
        %p4487 = scmp.lt.s32.totalorder %s35, 1
        %s4488 = scalar_select %p4487, %s35, 1
        %s4489 = scalar_lea.vmem %s21, %s4488
      $region124: #{gpt_forward.1} parent=115 // pred_fallthru
        _
      // Predicated region
      $region125: #{gpt_forward.1} parent=115 // pred_check
        %p4490 = pneg %p540
      $region126: #{gpt_forward.1} parent=115 // pred_check_branch
        %4492 = sbr.rel (%p4490) target = $region128
      $region127: #{gpt_forward.1} parent=115 // pred_region
        %p4493 = scmp.lt.s32.totalorder %s35, 1
        %s4494 = scalar_select %p4493, %s35, 1
        %s4495 = scalar_lea.vmem %s22, %s4494
      $region128: #{gpt_forward.1} parent=115 // pred_fallthru
        _
    $region116: #{gpt_forward.1} parent=5 // pred_fallthru
      _
  $region6: #{gpt_forward.1} parent=0 // loop_footer
    %s33 = sadd.s32 1, %s29
  $region7: #{gpt_forward.1} parent=0 // loop_footer_branch
    %28 = sbr.rel target = $region3
  $region8: #{gpt_forward.1} parent=0 // loop_exit
    _

</llo_original>
